<compile_context>
chip_gen: v7x
topology: tpu7x:2x2x1
jax: 0.10.0
libtpu: 0.0.40
codegen_flags: <defaults>
</compile_context>

<pallas_src>
import functools

import jax
import jax.numpy as jnp
from jax.experimental import pallas as pl
from jax.experimental.pallas import tpu as pltpu


# ------------------------------ Fused model kernel ------------------------------
def _fused_lstm_kernel(x_ref, *refs, hidden_dim, batch, seq_length, num_layers):
    # refs layout:
    #   [w_ih0, w_hh0, b0, ..., w_ih{L-1}, w_hh{L-1}, b{L-1},
    #    w_lin, b_lin, out_ref, hbuf_scratch]
    hbuf_ref = refs[-1]          # (S*B, H) scratch, reused across layers
    out_ref = refs[-2]           # (B, 1)
    blin_ref = refs[-3]          # (1, 1)
    wlin_ref = refs[-4]          # (1, H)
    layer_refs = refs[:3 * num_layers]

    H, B, S = hidden_dim, batch, seq_length

    h = None
    for l in range(num_layers):                     # static unroll over layers
        w_ih = layer_refs[3 * l][...]               # (D_in, 4H), g-cols pre-scaled x2
        w_hh = layer_refs[3 * l + 1][...]           # (H,   4H), g-cols pre-scaled x2
        b = layer_refs[3 * l + 2][...]              # (1,   4H), g-slice pre-scaled x2

        # Time-major (row = t*B + b) input slab for this layer.
        lin = x_ref[...] if l == 0 else hbuf_ref[...]          # (S*B, D_in)

        # Input projection + bias for ALL timesteps: ONE MXU matmul, off the
        # serial recurrence (uses S*B=16 sublanes instead of 2).
        xproj = jnp.dot(lin, w_ih,
                        preferred_element_type=jnp.float32) + b  # (S*B, 4H)

        h = jnp.zeros((B, H), jnp.float32)
        c = jnp.zeros((B, H), jnp.float32)
        is_last_layer = (l == num_layers - 1)

        for t in range(S):                          # static unroll over time (serial chain)
            gates = xproj[t * B:(t + 1) * B, :] + jnp.dot(
                h, w_hh, preferred_element_type=jnp.float32)     # (B, 4H)

            # Single sigmoid pass over the 128-lane gate tile; tanh(g) is
            # recovered as 2*sigmoid(2g) - 1 (g columns pre-scaled by 2).
            sig = jax.nn.sigmoid(gates)
            i_g = sig[:, 0 * H:1 * H]
            f_g = sig[:, 1 * H:2 * H]
            g_g = 2.0 * sig[:, 2 * H:3 * H] - 1.0
            o_g = sig[:, 3 * H:4 * H]

            c = f_g * c + i_g * g_g
            h = o_g * jnp.tanh(c)

            if not is_last_layer:                   # next layer's input slab
                hbuf_ref[t * B:(t + 1) * B, :] = h

    # Linear(hidden_dim, 1) on the top layer's final hidden state:
    # VPU multiply + lane reduction (no degenerate (H,1) MXU matmul).
    out_ref[...] = (jnp.sum(h * wlin_ref[...], axis=-1, keepdims=True)
                    + blin_ref[...])                # (B, 1)


def time_series_predictor_forward(x_bsd, lstm_params, w_lin, b_lin):
    """x_bsd: (B, S, D) f32. lstm_params: [(w_ih (D_in,4H), w_hh (H,4H), b (4H,)), ...]."""
    B, S, D = x_bsd.shape
    H = lstm_params[0][1].shape[0]
    num_layers = len(lstm_params)

    # Time-major flattened input: row index = t*B + b.
    x_tm = jnp.transpose(x_bsd, (1, 0, 2)).reshape(S * B, D)

    # tanh(x) = 2*sigmoid(2x) - 1: pre-scale BOTH the g-gate weight columns and
    # the g-gate bias slice by 2 so the kernel runs a single sigmoid pass.
    gscale = jnp.ones((4 * H,), jnp.float32).at[2 * H:3 * H].set(2.0)

    inputs = [x_tm]
    for (w_ih, w_hh, bias) in lstm_params:
        inputs.append(w_ih * gscale)                            # (D_in, 4H)
        inputs.append(w_hh * gscale)                            # (H, 4H)
        inputs.append((bias * gscale).reshape(1, 4 * H))        # (1, 4H)
    inputs.append(w_lin.reshape(1, H))                          # (1, H)
    inputs.append(b_lin.reshape(1, 1))                          # (1, 1)

    kernel = functools.partial(_fused_lstm_kernel, hidden_dim=H, batch=B,
                               seq_length=S, num_layers=num_layers)

    # Tiny advisory cost estimate so XLA does not over-schedule around us.
    flops = 0
    d_in = D
    for _ in range(num_layers):
        flops += 2 * (S * B) * d_in * 4 * H      # input projection (all timesteps)
        flops += 2 * S * B * H * 4 * H           # recurrent h @ W_hh
        d_in = H
    flops += 2 * B * H                           # linear head
    transcendentals = num_layers * S * (B * 4 * H + B * H)
    bytes_accessed = sum(int(a.size) * a.dtype.itemsize for a in inputs) + B * 4
    cost = pl.CostEstimate(flops=flops, transcendentals=transcendentals,
                           bytes_accessed=bytes_accessed)

    vmem = pl.BlockSpec(memory_space=pltpu.MemorySpace.VMEM)    # whole array, VMEM-resident
    return pl.pallas_call(
        kernel,
        out_shape=jax.ShapeDtypeStruct((B, 1), jnp.float32),
        in_specs=[vmem] * len(inputs),
        out_specs=vmem,
        scratch_shapes=[pltpu.VMEM((S * B, H), jnp.float32)],   # inter-layer hidden slab
        cost_estimate=cost,
    )(*inputs)


# ------------------------------ Pure-JAX reference ------------------------------
def reference_forward(x_bsd, lstm_params, w_lin, b_lin):
    h = x_bsd
    for (w_ih, w_hh, bias) in lstm_params:
        B = h.shape[0]
        H = w_hh.shape[0]

        def step(carry, xt):
            hp, cp = carry
            g = xt @ w_ih + hp @ w_hh + bias
            i_g = jax.nn.sigmoid(g[:, :H])
            f_g = jax.nn.sigmoid(g[:, H:2 * H])
            g_g = jnp.tanh(g[:, 2 * H:3 * H])
            o_g = jax.nn.sigmoid(g[:, 3 * H:])
            c = f_g * cp + i_g * g_g
            hn = o_g * jnp.tanh(c)
            return (hn, c), hn

        init = (jnp.zeros((B, H), jnp.float32), jnp.zeros((B, H), jnp.float32))
        _, outs = jax.lax.scan(step, init, jnp.transpose(h, (1, 0, 2)))
        h = jnp.transpose(outs, (1, 0, 2))
    return h[:, -1, :] @ w_lin + b_lin


# ------------------------------------ Main -------------------------------------
if __name__ == "__main__":
    # Module hyperparameters (small, consistent with the forward pass).
    input_dim, hidden_dim, seq_length, num_layers = 4, 32, 8, 3
    batch = 2

    key = jax.random.PRNGKey(0)
    k_x, k_p = jax.random.split(key)
    x = jax.random.normal(k_x, (batch, seq_length, input_dim), dtype=jnp.float32)

    # Deterministic parameter init (PyTorch LSTM uses U(-1/sqrt(H), 1/sqrt(H))).
    scale = 1.0 / jnp.sqrt(jnp.float32(hidden_dim))
    lstm_params = []
    d_in = input_dim
    for layer in range(num_layers):
        k_p, k1, k2, k3, k4 = jax.random.split(k_p, 5)
        # Stored transposed w.r.t. PyTorch (weight_ih_l{n}: (4H, D) -> (D, 4H)).
        w_ih = jax.random.uniform(k1, (d_in, 4 * hidden_dim), jnp.float32,
                                  -scale, scale)
        w_hh = jax.random.uniform(k2, (hidden_dim, 4 * hidden_dim), jnp.float32,
                                  -scale, scale)
        b_ih = jax.random.uniform(k3, (4 * hidden_dim,), jnp.float32, -scale, scale)
        b_hh = jax.random.uniform(k4, (4 * hidden_dim,), jnp.float32, -scale, scale)
        lstm_params.append((w_ih, w_hh, b_ih + b_hh))
        d_in = hidden_dim

    k_p, k5, k6 = jax.random.split(k_p, 3)
    w_lin = jax.random.uniform(k5, (hidden_dim, 1), jnp.float32, -scale, scale)
    b_lin = jax.random.uniform(k6, (1,), jnp.float32, -scale, scale)

    out = time_series_predictor_forward(x, lstm_params, w_lin, b_lin)
    out = jax.block_until_ready(out)

    ref = reference_forward(x, lstm_params, w_lin, b_lin)
    assert out.shape == (batch, 1), out.shape
    assert jnp.allclose(out, ref, rtol=1e-4, atol=1e-4), (out, ref)

    print("KERNEL_OK")
</pallas_src>

<mosaic_0001>
module attributes {stable_mosaic.version = 11 : i64} {
  func.func @_fused_lstm_kernel(%arg0: memref<16x4xf32, #tpu.memory_space<vmem>>, %arg1: memref<4x128xf32, #tpu.memory_space<vmem>>, %arg2: memref<32x128xf32, #tpu.memory_space<vmem>>, %arg3: memref<1x128xf32, #tpu.memory_space<vmem>>, %arg4: memref<32x128xf32, #tpu.memory_space<vmem>>, %arg5: memref<32x128xf32, #tpu.memory_space<vmem>>, %arg6: memref<1x128xf32, #tpu.memory_space<vmem>>, %arg7: memref<32x128xf32, #tpu.memory_space<vmem>>, %arg8: memref<32x128xf32, #tpu.memory_space<vmem>>, %arg9: memref<1x128xf32, #tpu.memory_space<vmem>>, %arg10: memref<1x32xf32, #tpu.memory_space<vmem>>, %arg11: memref<1x1xf32, #tpu.memory_space<vmem>>, %arg12: memref<2x1xf32, #tpu.memory_space<vmem>>, %arg13: memref<16x32xf32, #tpu.memory_space<vmem>>) attributes {dimension_semantics = [], scalar_prefetch = 0 : i64, scratch_operands = 1 : i64, tpu.core_type = #tpu.core_type<tc>} {
    %c0 = arith.constant 0 : index
    %c0_0 = arith.constant 0 : index
    %0 = vector.load %arg1[%c0, %c0_0] : memref<4x128xf32, #tpu.memory_space<vmem>>, vector<4x128xf32>
    %c0_1 = arith.constant 0 : index
    %c0_2 = arith.constant 0 : index
    %1 = vector.load %arg2[%c0_1, %c0_2] : memref<32x128xf32, #tpu.memory_space<vmem>>, vector<32x128xf32>
    %c0_3 = arith.constant 0 : index
    %c0_4 = arith.constant 0 : index
    %2 = vector.load %arg3[%c0_3, %c0_4] : memref<1x128xf32, #tpu.memory_space<vmem>>, vector<1x128xf32>
    %c0_5 = arith.constant 0 : index
    %c0_6 = arith.constant 0 : index
    %3 = vector.load %arg0[%c0_5, %c0_6] : memref<16x4xf32, #tpu.memory_space<vmem>>, vector<16x4xf32>
    %cst = arith.constant dense<0.000000e+00> : vector<16x128xf32>
    %4 = tpu.matmul %3, %0, %cst {dimension_numbers = #tpu.dot_dimension_numbers<[1], [0], [0], [1], [0, 0, 1, 1], [], []>} : vector<16x4xf32>, vector<4x128xf32>, vector<16x128xf32> -> vector<16x128xf32>
    %5 = vector.broadcast %2 : vector<1x128xf32> to vector<16x128xf32>
    %6 = arith.addf %4, %5 : vector<16x128xf32>
    %cst_7 = arith.constant 0.000000e+00 : f32
    %7 = vector.broadcast %cst_7 : f32 to vector<2x32xf32>
    %cst_8 = arith.constant 0.000000e+00 : f32
    %8 = vector.broadcast %cst_8 : f32 to vector<2x32xf32>
    %9 = vector.extract_strided_slice %6 {offsets = [0, 0], sizes = [2, 128], strides = [1, 1]} : vector<16x128xf32> to vector<2x128xf32>
    %cst_9 = arith.constant dense<0.000000e+00> : vector<2x128xf32>
    %10 = tpu.matmul %7, %1, %cst_9 {dimension_numbers = #tpu.dot_dimension_numbers<[1], [0], [0], [1], [0, 0, 1, 1], [], []>} : vector<2x32xf32>, vector<32x128xf32>, vector<2x128xf32> -> vector<2x128xf32>
    %11 = arith.addf %9, %10 : vector<2x128xf32>
    %12 = arith.negf %11 : vector<2x128xf32>
    %13 = math.exp %12 : vector<2x128xf32>
    %cst_10 = arith.constant 1.000000e+00 : f32
    %14 = vector.broadcast %cst_10 : f32 to vector<2x128xf32>
    %15 = arith.addf %14, %13 : vector<2x128xf32>
    %16 = arith.divf %14, %15 : vector<2x128xf32>
    %17 = vector.extract_strided_slice %16 {offsets = [0, 0], sizes = [2, 32], strides = [1, 1]} : vector<2x128xf32> to vector<2x32xf32>
    %18 = vector.extract_strided_slice %16 {offsets = [0, 32], sizes = [2, 32], strides = [1, 1]} : vector<2x128xf32> to vector<2x32xf32>
    %19 = vector.extract_strided_slice %16 {offsets = [0, 64], sizes = [2, 32], strides = [1, 1]} : vector<2x128xf32> to vector<2x32xf32>
    %cst_11 = arith.constant 2.000000e+00 : f32
    %20 = vector.broadcast %cst_11 : f32 to vector<2x32xf32>
    %21 = arith.mulf %20, %19 : vector<2x32xf32>
    %cst_12 = arith.constant 1.000000e+00 : f32
    %22 = vector.broadcast %cst_12 : f32 to vector<2x32xf32>
    %23 = arith.subf %21, %22 : vector<2x32xf32>
    %24 = vector.extract_strided_slice %16 {offsets = [0, 96], sizes = [2, 32], strides = [1, 1]} : vector<2x128xf32> to vector<2x32xf32>
    %25 = arith.mulf %18, %8 : vector<2x32xf32>
    %26 = arith.mulf %17, %23 : vector<2x32xf32>
    %27 = arith.addf %25, %26 : vector<2x32xf32>
    %28 = math.tanh %27 : vector<2x32xf32>
    %29 = arith.mulf %24, %28 : vector<2x32xf32>
    %c0_13 = arith.constant 0 : index
    %c0_14 = arith.constant 0 : index
    %30 = vector.load %arg13[%c0_13, %c0_14] : memref<16x32xf32, #tpu.memory_space<vmem>>, vector<2x32xf32>
    tpu.vector_store %arg13[%c0_13, %c0_14], %29 {strides = array<i32>} : memref<16x32xf32, #tpu.memory_space<vmem>>, vector<2x32xf32>,
    %31 = vector.extract_strided_slice %6 {offsets = [2, 0], sizes = [2, 128], strides = [1, 1]} : vector<16x128xf32> to vector<2x128xf32>
    %cst_15 = arith.constant dense<0.000000e+00> : vector<2x128xf32>
    %32 = tpu.matmul %29, %1, %cst_15 {dimension_numbers = #tpu.dot_dimension_numbers<[1], [0], [0], [1], [0, 0, 1, 1], [], []>} : vector<2x32xf32>, vector<32x128xf32>, vector<2x128xf32> -> vector<2x128xf32>
    %33 = arith.addf %31, %32 : vector<2x128xf32>
    %34 = arith.negf %33 : vector<2x128xf32>
    %35 = math.exp %34 : vector<2x128xf32>
    %cst_16 = arith.constant 1.000000e+00 : f32
    %36 = vector.broadcast %cst_16 : f32 to vector<2x128xf32>
    %37 = arith.addf %36, %35 : vector<2x128xf32>
    %38 = arith.divf %36, %37 : vector<2x128xf32>
    %39 = vector.extract_strided_slice %38 {offsets = [0, 0], sizes = [2, 32], strides = [1, 1]} : vector<2x128xf32> to vector<2x32xf32>
    %40 = vector.extract_strided_slice %38 {offsets = [0, 32], sizes = [2, 32], strides = [1, 1]} : vector<2x128xf32> to vector<2x32xf32>
    %41 = vector.extract_strided_slice %38 {offsets = [0, 64], sizes = [2, 32], strides = [1, 1]} : vector<2x128xf32> to vector<2x32xf32>
    %cst_17 = arith.constant 2.000000e+00 : f32
    %42 = vector.broadcast %cst_17 : f32 to vector<2x32xf32>
    %43 = arith.mulf %42, %41 : vector<2x32xf32>
    %cst_18 = arith.constant 1.000000e+00 : f32
    %44 = vector.broadcast %cst_18 : f32 to vector<2x32xf32>
    %45 = arith.subf %43, %44 : vector<2x32xf32>
    %46 = vector.extract_strided_slice %38 {offsets = [0, 96], sizes = [2, 32], strides = [1, 1]} : vector<2x128xf32> to vector<2x32xf32>
    %47 = arith.mulf %40, %27 : vector<2x32xf32>
    %48 = arith.mulf %39, %45 : vector<2x32xf32>
    %49 = arith.addf %47, %48 : vector<2x32xf32>
    %50 = math.tanh %49 : vector<2x32xf32>
    %51 = arith.mulf %46, %50 : vector<2x32xf32>
    %c2 = arith.constant 2 : index
    %c0_19 = arith.constant 0 : index
    %52 = vector.load %arg13[%c2, %c0_19] : memref<16x32xf32, #tpu.memory_space<vmem>>, vector<2x32xf32>
    tpu.vector_store %arg13[%c2, %c0_19], %51 {strides = array<i32>} : memref<16x32xf32, #tpu.memory_space<vmem>>, vector<2x32xf32>,
    %53 = vector.extract_strided_slice %6 {offsets = [4, 0], sizes = [2, 128], strides = [1, 1]} : vector<16x128xf32> to vector<2x128xf32>
    %cst_20 = arith.constant dense<0.000000e+00> : vector<2x128xf32>
    %54 = tpu.matmul %51, %1, %cst_20 {dimension_numbers = #tpu.dot_dimension_numbers<[1], [0], [0], [1], [0, 0, 1, 1], [], []>} : vector<2x32xf32>, vector<32x128xf32>, vector<2x128xf32> -> vector<2x128xf32>
    %55 = arith.addf %53, %54 : vector<2x128xf32>
    %56 = arith.negf %55 : vector<2x128xf32>
    %57 = math.exp %56 : vector<2x128xf32>
    %cst_21 = arith.constant 1.000000e+00 : f32
    %58 = vector.broadcast %cst_21 : f32 to vector<2x128xf32>
    %59 = arith.addf %58, %57 : vector<2x128xf32>
    %60 = arith.divf %58, %59 : vector<2x128xf32>
    %61 = vector.extract_strided_slice %60 {offsets = [0, 0], sizes = [2, 32], strides = [1, 1]} : vector<2x128xf32> to vector<2x32xf32>
    %62 = vector.extract_strided_slice %60 {offsets = [0, 32], sizes = [2, 32], strides = [1, 1]} : vector<2x128xf32> to vector<2x32xf32>
    %63 = vector.extract_strided_slice %60 {offsets = [0, 64], sizes = [2, 32], strides = [1, 1]} : vector<2x128xf32> to vector<2x32xf32>
    %cst_22 = arith.constant 2.000000e+00 : f32
    %64 = vector.broadcast %cst_22 : f32 to vector<2x32xf32>
    %65 = arith.mulf %64, %63 : vector<2x32xf32>
    %cst_23 = arith.constant 1.000000e+00 : f32
    %66 = vector.broadcast %cst_23 : f32 to vector<2x32xf32>
    %67 = arith.subf %65, %66 : vector<2x32xf32>
    %68 = vector.extract_strided_slice %60 {offsets = [0, 96], sizes = [2, 32], strides = [1, 1]} : vector<2x128xf32> to vector<2x32xf32>
    %69 = arith.mulf %62, %49 : vector<2x32xf32>
    %70 = arith.mulf %61, %67 : vector<2x32xf32>
    %71 = arith.addf %69, %70 : vector<2x32xf32>
    %72 = math.tanh %71 : vector<2x32xf32>
    %73 = arith.mulf %68, %72 : vector<2x32xf32>
    %c4 = arith.constant 4 : index
    %c0_24 = arith.constant 0 : index
    %74 = vector.load %arg13[%c4, %c0_24] : memref<16x32xf32, #tpu.memory_space<vmem>>, vector<2x32xf32>
    tpu.vector_store %arg13[%c4, %c0_24], %73 {strides = array<i32>} : memref<16x32xf32, #tpu.memory_space<vmem>>, vector<2x32xf32>,
    %75 = vector.extract_strided_slice %6 {offsets = [6, 0], sizes = [2, 128], strides = [1, 1]} : vector<16x128xf32> to vector<2x128xf32>
    %cst_25 = arith.constant dense<0.000000e+00> : vector<2x128xf32>
    %76 = tpu.matmul %73, %1, %cst_25 {dimension_numbers = #tpu.dot_dimension_numbers<[1], [0], [0], [1], [0, 0, 1, 1], [], []>} : vector<2x32xf32>, vector<32x128xf32>, vector<2x128xf32> -> vector<2x128xf32>
    %77 = arith.addf %75, %76 : vector<2x128xf32>
    %78 = arith.negf %77 : vector<2x128xf32>
    %79 = math.exp %78 : vector<2x128xf32>
    %cst_26 = arith.constant 1.000000e+00 : f32
    %80 = vector.broadcast %cst_26 : f32 to vector<2x128xf32>
    %81 = arith.addf %80, %79 : vector<2x128xf32>
    %82 = arith.divf %80, %81 : vector<2x128xf32>
    %83 = vector.extract_strided_slice %82 {offsets = [0, 0], sizes = [2, 32], strides = [1, 1]} : vector<2x128xf32> to vector<2x32xf32>
    %84 = vector.extract_strided_slice %82 {offsets = [0, 32], sizes = [2, 32], strides = [1, 1]} : vector<2x128xf32> to vector<2x32xf32>
    %85 = vector.extract_strided_slice %82 {offsets = [0, 64], sizes = [2, 32], strides = [1, 1]} : vector<2x128xf32> to vector<2x32xf32>
    %cst_27 = arith.constant 2.000000e+00 : f32
    %86 = vector.broadcast %cst_27 : f32 to vector<2x32xf32>
    %87 = arith.mulf %86, %85 : vector<2x32xf32>
    %cst_28 = arith.constant 1.000000e+00 : f32
    %88 = vector.broadcast %cst_28 : f32 to vector<2x32xf32>
    %89 = arith.subf %87, %88 : vector<2x32xf32>
    %90 = vector.extract_strided_slice %82 {offsets = [0, 96], sizes = [2, 32], strides = [1, 1]} : vector<2x128xf32> to vector<2x32xf32>
    %91 = arith.mulf %84, %71 : vector<2x32xf32>
    %92 = arith.mulf %83, %89 : vector<2x32xf32>
    %93 = arith.addf %91, %92 : vector<2x32xf32>
    %94 = math.tanh %93 : vector<2x32xf32>
    %95 = arith.mulf %90, %94 : vector<2x32xf32>
    %c6 = arith.constant 6 : index
    %c0_29 = arith.constant 0 : index
    %96 = vector.load %arg13[%c6, %c0_29] : memref<16x32xf32, #tpu.memory_space<vmem>>, vector<2x32xf32>
    tpu.vector_store %arg13[%c6, %c0_29], %95 {strides = array<i32>} : memref<16x32xf32, #tpu.memory_space<vmem>>, vector<2x32xf32>,
    %97 = vector.extract_strided_slice %6 {offsets = [8, 0], sizes = [2, 128], strides = [1, 1]} : vector<16x128xf32> to vector<2x128xf32>
    %cst_30 = arith.constant dense<0.000000e+00> : vector<2x128xf32>
    %98 = tpu.matmul %95, %1, %cst_30 {dimension_numbers = #tpu.dot_dimension_numbers<[1], [0], [0], [1], [0, 0, 1, 1], [], []>} : vector<2x32xf32>, vector<32x128xf32>, vector<2x128xf32> -> vector<2x128xf32>
    %99 = arith.addf %97, %98 : vector<2x128xf32>
    %100 = arith.negf %99 : vector<2x128xf32>
    %101 = math.exp %100 : vector<2x128xf32>
    %cst_31 = arith.constant 1.000000e+00 : f32
    %102 = vector.broadcast %cst_31 : f32 to vector<2x128xf32>
    %103 = arith.addf %102, %101 : vector<2x128xf32>
    %104 = arith.divf %102, %103 : vector<2x128xf32>
    %105 = vector.extract_strided_slice %104 {offsets = [0, 0], sizes = [2, 32], strides = [1, 1]} : vector<2x128xf32> to vector<2x32xf32>
    %106 = vector.extract_strided_slice %104 {offsets = [0, 32], sizes = [2, 32], strides = [1, 1]} : vector<2x128xf32> to vector<2x32xf32>
    %107 = vector.extract_strided_slice %104 {offsets = [0, 64], sizes = [2, 32], strides = [1, 1]} : vector<2x128xf32> to vector<2x32xf32>
    %cst_32 = arith.constant 2.000000e+00 : f32
    %108 = vector.broadcast %cst_32 : f32 to vector<2x32xf32>
    %109 = arith.mulf %108, %107 : vector<2x32xf32>
    %cst_33 = arith.constant 1.000000e+00 : f32
    %110 = vector.broadcast %cst_33 : f32 to vector<2x32xf32>
    %111 = arith.subf %109, %110 : vector<2x32xf32>
    %112 = vector.extract_strided_slice %104 {offsets = [0, 96], sizes = [2, 32], strides = [1, 1]} : vector<2x128xf32> to vector<2x32xf32>
    %113 = arith.mulf %106, %93 : vector<2x32xf32>
    %114 = arith.mulf %105, %111 : vector<2x32xf32>
    %115 = arith.addf %113, %114 : vector<2x32xf32>
    %116 = math.tanh %115 : vector<2x32xf32>
    %117 = arith.mulf %112, %116 : vector<2x32xf32>
    %c8 = arith.constant 8 : index
    %c0_34 = arith.constant 0 : index
    %118 = vector.load %arg13[%c8, %c0_34] : memref<16x32xf32, #tpu.memory_space<vmem>>, vector<2x32xf32>
    tpu.vector_store %arg13[%c8, %c0_34], %117 {strides = array<i32>} : memref<16x32xf32, #tpu.memory_space<vmem>>, vector<2x32xf32>,
    %119 = vector.extract_strided_slice %6 {offsets = [10, 0], sizes = [2, 128], strides = [1, 1]} : vector<16x128xf32> to vector<2x128xf32>
    %cst_35 = arith.constant dense<0.000000e+00> : vector<2x128xf32>
    %120 = tpu.matmul %117, %1, %cst_35 {dimension_numbers = #tpu.dot_dimension_numbers<[1], [0], [0], [1], [0, 0, 1, 1], [], []>} : vector<2x32xf32>, vector<32x128xf32>, vector<2x128xf32> -> vector<2x128xf32>
    %121 = arith.addf %119, %120 : vector<2x128xf32>
    %122 = arith.negf %121 : vector<2x128xf32>
    %123 = math.exp %122 : vector<2x128xf32>
    %cst_36 = arith.constant 1.000000e+00 : f32
    %124 = vector.broadcast %cst_36 : f32 to vector<2x128xf32>
    %125 = arith.addf %124, %123 : vector<2x128xf32>
    %126 = arith.divf %124, %125 : vector<2x128xf32>
    %127 = vector.extract_strided_slice %126 {offsets = [0, 0], sizes = [2, 32], strides = [1, 1]} : vector<2x128xf32> to vector<2x32xf32>
    %128 = vector.extract_strided_slice %126 {offsets = [0, 32], sizes = [2, 32], strides = [1, 1]} : vector<2x128xf32> to vector<2x32xf32>
    %129 = vector.extract_strided_slice %126 {offsets = [0, 64], sizes = [2, 32], strides = [1, 1]} : vector<2x128xf32> to vector<2x32xf32>
    %cst_37 = arith.constant 2.000000e+00 : f32
    %130 = vector.broadcast %cst_37 : f32 to vector<2x32xf32>
    %131 = arith.mulf %130, %129 : vector<2x32xf32>
    %cst_38 = arith.constant 1.000000e+00 : f32
    %132 = vector.broadcast %cst_38 : f32 to vector<2x32xf32>
    %133 = arith.subf %131, %132 : vector<2x32xf32>
    %134 = vector.extract_strided_slice %126 {offsets = [0, 96], sizes = [2, 32], strides = [1, 1]} : vector<2x128xf32> to vector<2x32xf32>
    %135 = arith.mulf %128, %115 : vector<2x32xf32>
    %136 = arith.mulf %127, %133 : vector<2x32xf32>
    %137 = arith.addf %135, %136 : vector<2x32xf32>
    %138 = math.tanh %137 : vector<2x32xf32>
    %139 = arith.mulf %134, %138 : vector<2x32xf32>
    %c10 = arith.constant 10 : index
    %c0_39 = arith.constant 0 : index
    %140 = vector.load %arg13[%c10, %c0_39] : memref<16x32xf32, #tpu.memory_space<vmem>>, vector<2x32xf32>
    tpu.vector_store %arg13[%c10, %c0_39], %139 {strides = array<i32>} : memref<16x32xf32, #tpu.memory_space<vmem>>, vector<2x32xf32>,
    %141 = vector.extract_strided_slice %6 {offsets = [12, 0], sizes = [2, 128], strides = [1, 1]} : vector<16x128xf32> to vector<2x128xf32>
    %cst_40 = arith.constant dense<0.000000e+00> : vector<2x128xf32>
    %142 = tpu.matmul %139, %1, %cst_40 {dimension_numbers = #tpu.dot_dimension_numbers<[1], [0], [0], [1], [0, 0, 1, 1], [], []>} : vector<2x32xf32>, vector<32x128xf32>, vector<2x128xf32> -> vector<2x128xf32>
    %143 = arith.addf %141, %142 : vector<2x128xf32>
    %144 = arith.negf %143 : vector<2x128xf32>
    %145 = math.exp %144 : vector<2x128xf32>
    %cst_41 = arith.constant 1.000000e+00 : f32
    %146 = vector.broadcast %cst_41 : f32 to vector<2x128xf32>
    %147 = arith.addf %146, %145 : vector<2x128xf32>
    %148 = arith.divf %146, %147 : vector<2x128xf32>
    %149 = vector.extract_strided_slice %148 {offsets = [0, 0], sizes = [2, 32], strides = [1, 1]} : vector<2x128xf32> to vector<2x32xf32>
    %150 = vector.extract_strided_slice %148 {offsets = [0, 32], sizes = [2, 32], strides = [1, 1]} : vector<2x128xf32> to vector<2x32xf32>
    %151 = vector.extract_strided_slice %148 {offsets = [0, 64], sizes = [2, 32], strides = [1, 1]} : vector<2x128xf32> to vector<2x32xf32>
    %cst_42 = arith.constant 2.000000e+00 : f32
    %152 = vector.broadcast %cst_42 : f32 to vector<2x32xf32>
    %153 = arith.mulf %152, %151 : vector<2x32xf32>
    %cst_43 = arith.constant 1.000000e+00 : f32
    %154 = vector.broadcast %cst_43 : f32 to vector<2x32xf32>
    %155 = arith.subf %153, %154 : vector<2x32xf32>
    %156 = vector.extract_strided_slice %148 {offsets = [0, 96], sizes = [2, 32], strides = [1, 1]} : vector<2x128xf32> to vector<2x32xf32>
    %157 = arith.mulf %150, %137 : vector<2x32xf32>
    %158 = arith.mulf %149, %155 : vector<2x32xf32>
    %159 = arith.addf %157, %158 : vector<2x32xf32>
    %160 = math.tanh %159 : vector<2x32xf32>
    %161 = arith.mulf %156, %160 : vector<2x32xf32>
    %c12 = arith.constant 12 : index
    %c0_44 = arith.constant 0 : index
    %162 = vector.load %arg13[%c12, %c0_44] : memref<16x32xf32, #tpu.memory_space<vmem>>, vector<2x32xf32>
    tpu.vector_store %arg13[%c12, %c0_44], %161 {strides = array<i32>} : memref<16x32xf32, #tpu.memory_space<vmem>>, vector<2x32xf32>,
    %163 = vector.extract_strided_slice %6 {offsets = [14, 0], sizes = [2, 128], strides = [1, 1]} : vector<16x128xf32> to vector<2x128xf32>
    %cst_45 = arith.constant dense<0.000000e+00> : vector<2x128xf32>
    %164 = tpu.matmul %161, %1, %cst_45 {dimension_numbers = #tpu.dot_dimension_numbers<[1], [0], [0], [1], [0, 0, 1, 1], [], []>} : vector<2x32xf32>, vector<32x128xf32>, vector<2x128xf32> -> vector<2x128xf32>
    %165 = arith.addf %163, %164 : vector<2x128xf32>
    %166 = arith.negf %165 : vector<2x128xf32>
    %167 = math.exp %166 : vector<2x128xf32>
    %cst_46 = arith.constant 1.000000e+00 : f32
    %168 = vector.broadcast %cst_46 : f32 to vector<2x128xf32>
    %169 = arith.addf %168, %167 : vector<2x128xf32>
    %170 = arith.divf %168, %169 : vector<2x128xf32>
    %171 = vector.extract_strided_slice %170 {offsets = [0, 0], sizes = [2, 32], strides = [1, 1]} : vector<2x128xf32> to vector<2x32xf32>
    %172 = vector.extract_strided_slice %170 {offsets = [0, 32], sizes = [2, 32], strides = [1, 1]} : vector<2x128xf32> to vector<2x32xf32>
    %173 = vector.extract_strided_slice %170 {offsets = [0, 64], sizes = [2, 32], strides = [1, 1]} : vector<2x128xf32> to vector<2x32xf32>
    %cst_47 = arith.constant 2.000000e+00 : f32
    %174 = vector.broadcast %cst_47 : f32 to vector<2x32xf32>
    %175 = arith.mulf %174, %173 : vector<2x32xf32>
    %cst_48 = arith.constant 1.000000e+00 : f32
    %176 = vector.broadcast %cst_48 : f32 to vector<2x32xf32>
    %177 = arith.subf %175, %176 : vector<2x32xf32>
    %178 = vector.extract_strided_slice %170 {offsets = [0, 96], sizes = [2, 32], strides = [1, 1]} : vector<2x128xf32> to vector<2x32xf32>
    %179 = arith.mulf %172, %159 : vector<2x32xf32>
    %180 = arith.mulf %171, %177 : vector<2x32xf32>
    %181 = arith.addf %179, %180 : vector<2x32xf32>
    %182 = math.tanh %181 : vector<2x32xf32>
    %183 = arith.mulf %178, %182 : vector<2x32xf32>
    %c14 = arith.constant 14 : index
    %c0_49 = arith.constant 0 : index
    %184 = vector.load %arg13[%c14, %c0_49] : memref<16x32xf32, #tpu.memory_space<vmem>>, vector<2x32xf32>
    tpu.vector_store %arg13[%c14, %c0_49], %183 {strides = array<i32>} : memref<16x32xf32, #tpu.memory_space<vmem>>, vector<2x32xf32>,
    %c0_50 = arith.constant 0 : index
    %c0_51 = arith.constant 0 : index
    %185 = vector.load %arg4[%c0_50, %c0_51] : memref<32x128xf32, #tpu.memory_space<vmem>>, vector<32x128xf32>
    %c0_52 = arith.constant 0 : index
    %c0_53 = arith.constant 0 : index
    %186 = vector.load %arg5[%c0_52, %c0_53] : memref<32x128xf32, #tpu.memory_space<vmem>>, vector<32x128xf32>
    %c0_54 = arith.constant 0 : index
    %c0_55 = arith.constant 0 : index
    %187 = vector.load %arg6[%c0_54, %c0_55] : memref<1x128xf32, #tpu.memory_space<vmem>>, vector<1x128xf32>
    %c0_56 = arith.constant 0 : index
    %c0_57 = arith.constant 0 : index
    %188 = vector.load %arg13[%c0_56, %c0_57] : memref<16x32xf32, #tpu.memory_space<vmem>>, vector<16x32xf32>
    %cst_58 = arith.constant dense<0.000000e+00> : vector<16x128xf32>
    %189 = tpu.matmul %188, %185, %cst_58 {dimension_numbers = #tpu.dot_dimension_numbers<[1], [0], [0], [1], [0, 0, 1, 1], [], []>} : vector<16x32xf32>, vector<32x128xf32>, vector<16x128xf32> -> vector<16x128xf32>
    %190 = vector.broadcast %187 : vector<1x128xf32> to vector<16x128xf32>
    %191 = arith.addf %189, %190 : vector<16x128xf32>
    %cst_59 = arith.constant 0.000000e+00 : f32
    %192 = vector.broadcast %cst_59 : f32 to vector<2x32xf32>
    %cst_60 = arith.constant 0.000000e+00 : f32
    %193 = vector.broadcast %cst_60 : f32 to vector<2x32xf32>
    %194 = vector.extract_strided_slice %191 {offsets = [0, 0], sizes = [2, 128], strides = [1, 1]} : vector<16x128xf32> to vector<2x128xf32>
    %cst_61 = arith.constant dense<0.000000e+00> : vector<2x128xf32>
    %195 = tpu.matmul %192, %186, %cst_61 {dimension_numbers = #tpu.dot_dimension_numbers<[1], [0], [0], [1], [0, 0, 1, 1], [], []>} : vector<2x32xf32>, vector<32x128xf32>, vector<2x128xf32> -> vector<2x128xf32>
    %196 = arith.addf %194, %195 : vector<2x128xf32>
    %197 = arith.negf %196 : vector<2x128xf32>
    %198 = math.exp %197 : vector<2x128xf32>
    %cst_62 = arith.constant 1.000000e+00 : f32
    %199 = vector.broadcast %cst_62 : f32 to vector<2x128xf32>
    %200 = arith.addf %199, %198 : vector<2x128xf32>
    %201 = arith.divf %199, %200 : vector<2x128xf32>
    %202 = vector.extract_strided_slice %201 {offsets = [0, 0], sizes = [2, 32], strides = [1, 1]} : vector<2x128xf32> to vector<2x32xf32>
    %203 = vector.extract_strided_slice %201 {offsets = [0, 32], sizes = [2, 32], strides = [1, 1]} : vector<2x128xf32> to vector<2x32xf32>
    %204 = vector.extract_strided_slice %201 {offsets = [0, 64], sizes = [2, 32], strides = [1, 1]} : vector<2x128xf32> to vector<2x32xf32>
    %cst_63 = arith.constant 2.000000e+00 : f32
    %205 = vector.broadcast %cst_63 : f32 to vector<2x32xf32>
    %206 = arith.mulf %205, %204 : vector<2x32xf32>
    %cst_64 = arith.constant 1.000000e+00 : f32
    %207 = vector.broadcast %cst_64 : f32 to vector<2x32xf32>
    %208 = arith.subf %206, %207 : vector<2x32xf32>
    %209 = vector.extract_strided_slice %201 {offsets = [0, 96], sizes = [2, 32], strides = [1, 1]} : vector<2x128xf32> to vector<2x32xf32>
    %210 = arith.mulf %203, %193 : vector<2x32xf32>
    %211 = arith.mulf %202, %208 : vector<2x32xf32>
    %212 = arith.addf %210, %211 : vector<2x32xf32>
    %213 = math.tanh %212 : vector<2x32xf32>
    %214 = arith.mulf %209, %213 : vector<2x32xf32>
    %c0_65 = arith.constant 0 : index
    %c0_66 = arith.constant 0 : index
    %215 = vector.load %arg13[%c0_65, %c0_66] : memref<16x32xf32, #tpu.memory_space<vmem>>, vector<2x32xf32>
    tpu.vector_store %arg13[%c0_65, %c0_66], %214 {strides = array<i32>} : memref<16x32xf32, #tpu.memory_space<vmem>>, vector<2x32xf32>,
    %216 = vector.extract_strided_slice %191 {offsets = [2, 0], sizes = [2, 128], strides = [1, 1]} : vector<16x128xf32> to vector<2x128xf32>
    %cst_67 = arith.constant dense<0.000000e+00> : vector<2x128xf32>
    %217 = tpu.matmul %214, %186, %cst_67 {dimension_numbers = #tpu.dot_dimension_numbers<[1], [0], [0], [1], [0, 0, 1, 1], [], []>} : vector<2x32xf32>, vector<32x128xf32>, vector<2x128xf32> -> vector<2x128xf32>
    %218 = arith.addf %216, %217 : vector<2x128xf32>
    %219 = arith.negf %218 : vector<2x128xf32>
    %220 = math.exp %219 : vector<2x128xf32>
    %cst_68 = arith.constant 1.000000e+00 : f32
    %221 = vector.broadcast %cst_68 : f32 to vector<2x128xf32>
    %222 = arith.addf %221, %220 : vector<2x128xf32>
    %223 = arith.divf %221, %222 : vector<2x128xf32>
    %224 = vector.extract_strided_slice %223 {offsets = [0, 0], sizes = [2, 32], strides = [1, 1]} : vector<2x128xf32> to vector<2x32xf32>
    %225 = vector.extract_strided_slice %223 {offsets = [0, 32], sizes = [2, 32], strides = [1, 1]} : vector<2x128xf32> to vector<2x32xf32>
    %226 = vector.extract_strided_slice %223 {offsets = [0, 64], sizes = [2, 32], strides = [1, 1]} : vector<2x128xf32> to vector<2x32xf32>
    %cst_69 = arith.constant 2.000000e+00 : f32
    %227 = vector.broadcast %cst_69 : f32 to vector<2x32xf32>
    %228 = arith.mulf %227, %226 : vector<2x32xf32>
    %cst_70 = arith.constant 1.000000e+00 : f32
    %229 = vector.broadcast %cst_70 : f32 to vector<2x32xf32>
    %230 = arith.subf %228, %229 : vector<2x32xf32>
    %231 = vector.extract_strided_slice %223 {offsets = [0, 96], sizes = [2, 32], strides = [1, 1]} : vector<2x128xf32> to vector<2x32xf32>
    %232 = arith.mulf %225, %212 : vector<2x32xf32>
    %233 = arith.mulf %224, %230 : vector<2x32xf32>
    %234 = arith.addf %232, %233 : vector<2x32xf32>
    %235 = math.tanh %234 : vector<2x32xf32>
    %236 = arith.mulf %231, %235 : vector<2x32xf32>
    %c2_71 = arith.constant 2 : index
    %c0_72 = arith.constant 0 : index
    %237 = vector.load %arg13[%c2_71, %c0_72] : memref<16x32xf32, #tpu.memory_space<vmem>>, vector<2x32xf32>
    tpu.vector_store %arg13[%c2_71, %c0_72], %236 {strides = array<i32>} : memref<16x32xf32, #tpu.memory_space<vmem>>, vector<2x32xf32>,
    %238 = vector.extract_strided_slice %191 {offsets = [4, 0], sizes = [2, 128], strides = [1, 1]} : vector<16x128xf32> to vector<2x128xf32>
    %cst_73 = arith.constant dense<0.000000e+00> : vector<2x128xf32>
    %239 = tpu.matmul %236, %186, %cst_73 {dimension_numbers = #tpu.dot_dimension_numbers<[1], [0], [0], [1], [0, 0, 1, 1], [], []>} : vector<2x32xf32>, vector<32x128xf32>, vector<2x128xf32> -> vector<2x128xf32>
    %240 = arith.addf %238, %239 : vector<2x128xf32>
    %241 = arith.negf %240 : vector<2x128xf32>
    %242 = math.exp %241 : vector<2x128xf32>
    %cst_74 = arith.constant 1.000000e+00 : f32
    %243 = vector.broadcast %cst_74 : f32 to vector<2x128xf32>
    %244 = arith.addf %243, %242 : vector<2x128xf32>
    %245 = arith.divf %243, %244 : vector<2x128xf32>
    %246 = vector.extract_strided_slice %245 {offsets = [0, 0], sizes = [2, 32], strides = [1, 1]} : vector<2x128xf32> to vector<2x32xf32>
    %247 = vector.extract_strided_slice %245 {offsets = [0, 32], sizes = [2, 32], strides = [1, 1]} : vector<2x128xf32> to vector<2x32xf32>
    %248 = vector.extract_strided_slice %245 {offsets = [0, 64], sizes = [2, 32], strides = [1, 1]} : vector<2x128xf32> to vector<2x32xf32>
    %cst_75 = arith.constant 2.000000e+00 : f32
    %249 = vector.broadcast %cst_75 : f32 to vector<2x32xf32>
    %250 = arith.mulf %249, %248 : vector<2x32xf32>
    %cst_76 = arith.constant 1.000000e+00 : f32
    %251 = vector.broadcast %cst_76 : f32 to vector<2x32xf32>
    %252 = arith.subf %250, %251 : vector<2x32xf32>
    %253 = vector.extract_strided_slice %245 {offsets = [0, 96], sizes = [2, 32], strides = [1, 1]} : vector<2x128xf32> to vector<2x32xf32>
    %254 = arith.mulf %247, %234 : vector<2x32xf32>
    %255 = arith.mulf %246, %252 : vector<2x32xf32>
    %256 = arith.addf %254, %255 : vector<2x32xf32>
    %257 = math.tanh %256 : vector<2x32xf32>
    %258 = arith.mulf %253, %257 : vector<2x32xf32>
    %c4_77 = arith.constant 4 : index
    %c0_78 = arith.constant 0 : index
    %259 = vector.load %arg13[%c4_77, %c0_78] : memref<16x32xf32, #tpu.memory_space<vmem>>, vector<2x32xf32>
    tpu.vector_store %arg13[%c4_77, %c0_78], %258 {strides = array<i32>} : memref<16x32xf32, #tpu.memory_space<vmem>>, vector<2x32xf32>,
    %260 = vector.extract_strided_slice %191 {offsets = [6, 0], sizes = [2, 128], strides = [1, 1]} : vector<16x128xf32> to vector<2x128xf32>
    %cst_79 = arith.constant dense<0.000000e+00> : vector<2x128xf32>
    %261 = tpu.matmul %258, %186, %cst_79 {dimension_numbers = #tpu.dot_dimension_numbers<[1], [0], [0], [1], [0, 0, 1, 1], [], []>} : vector<2x32xf32>, vector<32x128xf32>, vector<2x128xf32> -> vector<2x128xf32>
    %262 = arith.addf %260, %261 : vector<2x128xf32>
    %263 = arith.negf %262 : vector<2x128xf32>
    %264 = math.exp %263 : vector<2x128xf32>
    %cst_80 = arith.constant 1.000000e+00 : f32
    %265 = vector.broadcast %cst_80 : f32 to vector<2x128xf32>
    %266 = arith.addf %265, %264 : vector<2x128xf32>
    %267 = arith.divf %265, %266 : vector<2x128xf32>
    %268 = vector.extract_strided_slice %267 {offsets = [0, 0], sizes = [2, 32], strides = [1, 1]} : vector<2x128xf32> to vector<2x32xf32>
    %269 = vector.extract_strided_slice %267 {offsets = [0, 32], sizes = [2, 32], strides = [1, 1]} : vector<2x128xf32> to vector<2x32xf32>
    %270 = vector.extract_strided_slice %267 {offsets = [0, 64], sizes = [2, 32], strides = [1, 1]} : vector<2x128xf32> to vector<2x32xf32>
    %cst_81 = arith.constant 2.000000e+00 : f32
    %271 = vector.broadcast %cst_81 : f32 to vector<2x32xf32>
    %272 = arith.mulf %271, %270 : vector<2x32xf32>
    %cst_82 = arith.constant 1.000000e+00 : f32
    %273 = vector.broadcast %cst_82 : f32 to vector<2x32xf32>
    %274 = arith.subf %272, %273 : vector<2x32xf32>
    %275 = vector.extract_strided_slice %267 {offsets = [0, 96], sizes = [2, 32], strides = [1, 1]} : vector<2x128xf32> to vector<2x32xf32>
    %276 = arith.mulf %269, %256 : vector<2x32xf32>
    %277 = arith.mulf %268, %274 : vector<2x32xf32>
    %278 = arith.addf %276, %277 : vector<2x32xf32>
    %279 = math.tanh %278 : vector<2x32xf32>
    %280 = arith.mulf %275, %279 : vector<2x32xf32>
    %c6_83 = arith.constant 6 : index
    %c0_84 = arith.constant 0 : index
    %281 = vector.load %arg13[%c6_83, %c0_84] : memref<16x32xf32, #tpu.memory_space<vmem>>, vector<2x32xf32>
    tpu.vector_store %arg13[%c6_83, %c0_84], %280 {strides = array<i32>} : memref<16x32xf32, #tpu.memory_space<vmem>>, vector<2x32xf32>,
    %282 = vector.extract_strided_slice %191 {offsets = [8, 0], sizes = [2, 128], strides = [1, 1]} : vector<16x128xf32> to vector<2x128xf32>
    %cst_85 = arith.constant dense<0.000000e+00> : vector<2x128xf32>
    %283 = tpu.matmul %280, %186, %cst_85 {dimension_numbers = #tpu.dot_dimension_numbers<[1], [0], [0], [1], [0, 0, 1, 1], [], []>} : vector<2x32xf32>, vector<32x128xf32>, vector<2x128xf32> -> vector<2x128xf32>
    %284 = arith.addf %282, %283 : vector<2x128xf32>
    %285 = arith.negf %284 : vector<2x128xf32>
    %286 = math.exp %285 : vector<2x128xf32>
    %cst_86 = arith.constant 1.000000e+00 : f32
    %287 = vector.broadcast %cst_86 : f32 to vector<2x128xf32>
    %288 = arith.addf %287, %286 : vector<2x128xf32>
    %289 = arith.divf %287, %288 : vector<2x128xf32>
    %290 = vector.extract_strided_slice %289 {offsets = [0, 0], sizes = [2, 32], strides = [1, 1]} : vector<2x128xf32> to vector<2x32xf32>
    %291 = vector.extract_strided_slice %289 {offsets = [0, 32], sizes = [2, 32], strides = [1, 1]} : vector<2x128xf32> to vector<2x32xf32>
    %292 = vector.extract_strided_slice %289 {offsets = [0, 64], sizes = [2, 32], strides = [1, 1]} : vector<2x128xf32> to vector<2x32xf32>
    %cst_87 = arith.constant 2.000000e+00 : f32
    %293 = vector.broadcast %cst_87 : f32 to vector<2x32xf32>
    %294 = arith.mulf %293, %292 : vector<2x32xf32>
    %cst_88 = arith.constant 1.000000e+00 : f32
    %295 = vector.broadcast %cst_88 : f32 to vector<2x32xf32>
    %296 = arith.subf %294, %295 : vector<2x32xf32>
    %297 = vector.extract_strided_slice %289 {offsets = [0, 96], sizes = [2, 32], strides = [1, 1]} : vector<2x128xf32> to vector<2x32xf32>
    %298 = arith.mulf %291, %278 : vector<2x32xf32>
    %299 = arith.mulf %290, %296 : vector<2x32xf32>
    %300 = arith.addf %298, %299 : vector<2x32xf32>
    %301 = math.tanh %300 : vector<2x32xf32>
    %302 = arith.mulf %297, %301 : vector<2x32xf32>
    %c8_89 = arith.constant 8 : index
    %c0_90 = arith.constant 0 : index
    %303 = vector.load %arg13[%c8_89, %c0_90] : memref<16x32xf32, #tpu.memory_space<vmem>>, vector<2x32xf32>
    tpu.vector_store %arg13[%c8_89, %c0_90], %302 {strides = array<i32>} : memref<16x32xf32, #tpu.memory_space<vmem>>, vector<2x32xf32>,
    %304 = vector.extract_strided_slice %191 {offsets = [10, 0], sizes = [2, 128], strides = [1, 1]} : vector<16x128xf32> to vector<2x128xf32>
    %cst_91 = arith.constant dense<0.000000e+00> : vector<2x128xf32>
    %305 = tpu.matmul %302, %186, %cst_91 {dimension_numbers = #tpu.dot_dimension_numbers<[1], [0], [0], [1], [0, 0, 1, 1], [], []>} : vector<2x32xf32>, vector<32x128xf32>, vector<2x128xf32> -> vector<2x128xf32>
    %306 = arith.addf %304, %305 : vector<2x128xf32>
    %307 = arith.negf %306 : vector<2x128xf32>
    %308 = math.exp %307 : vector<2x128xf32>
    %cst_92 = arith.constant 1.000000e+00 : f32
    %309 = vector.broadcast %cst_92 : f32 to vector<2x128xf32>
    %310 = arith.addf %309, %308 : vector<2x128xf32>
    %311 = arith.divf %309, %310 : vector<2x128xf32>
    %312 = vector.extract_strided_slice %311 {offsets = [0, 0], sizes = [2, 32], strides = [1, 1]} : vector<2x128xf32> to vector<2x32xf32>
    %313 = vector.extract_strided_slice %311 {offsets = [0, 32], sizes = [2, 32], strides = [1, 1]} : vector<2x128xf32> to vector<2x32xf32>
    %314 = vector.extract_strided_slice %311 {offsets = [0, 64], sizes = [2, 32], strides = [1, 1]} : vector<2x128xf32> to vector<2x32xf32>
    %cst_93 = arith.constant 2.000000e+00 : f32
    %315 = vector.broadcast %cst_93 : f32 to vector<2x32xf32>
    %316 = arith.mulf %315, %314 : vector<2x32xf32>
    %cst_94 = arith.constant 1.000000e+00 : f32
    %317 = vector.broadcast %cst_94 : f32 to vector<2x32xf32>
    %318 = arith.subf %316, %317 : vector<2x32xf32>
    %319 = vector.extract_strided_slice %311 {offsets = [0, 96], sizes = [2, 32], strides = [1, 1]} : vector<2x128xf32> to vector<2x32xf32>
    %320 = arith.mulf %313, %300 : vector<2x32xf32>
    %321 = arith.mulf %312, %318 : vector<2x32xf32>
    %322 = arith.addf %320, %321 : vector<2x32xf32>
    %323 = math.tanh %322 : vector<2x32xf32>
    %324 = arith.mulf %319, %323 : vector<2x32xf32>
    %c10_95 = arith.constant 10 : index
    %c0_96 = arith.constant 0 : index
    %325 = vector.load %arg13[%c10_95, %c0_96] : memref<16x32xf32, #tpu.memory_space<vmem>>, vector<2x32xf32>
    tpu.vector_store %arg13[%c10_95, %c0_96], %324 {strides = array<i32>} : memref<16x32xf32, #tpu.memory_space<vmem>>, vector<2x32xf32>,
    %326 = vector.extract_strided_slice %191 {offsets = [12, 0], sizes = [2, 128], strides = [1, 1]} : vector<16x128xf32> to vector<2x128xf32>
    %cst_97 = arith.constant dense<0.000000e+00> : vector<2x128xf32>
    %327 = tpu.matmul %324, %186, %cst_97 {dimension_numbers = #tpu.dot_dimension_numbers<[1], [0], [0], [1], [0, 0, 1, 1], [], []>} : vector<2x32xf32>, vector<32x128xf32>, vector<2x128xf32> -> vector<2x128xf32>
    %328 = arith.addf %326, %327 : vector<2x128xf32>
    %329 = arith.negf %328 : vector<2x128xf32>
    %330 = math.exp %329 : vector<2x128xf32>
    %cst_98 = arith.constant 1.000000e+00 : f32
    %331 = vector.broadcast %cst_98 : f32 to vector<2x128xf32>
    %332 = arith.addf %331, %330 : vector<2x128xf32>
    %333 = arith.divf %331, %332 : vector<2x128xf32>
    %334 = vector.extract_strided_slice %333 {offsets = [0, 0], sizes = [2, 32], strides = [1, 1]} : vector<2x128xf32> to vector<2x32xf32>
    %335 = vector.extract_strided_slice %333 {offsets = [0, 32], sizes = [2, 32], strides = [1, 1]} : vector<2x128xf32> to vector<2x32xf32>
    %336 = vector.extract_strided_slice %333 {offsets = [0, 64], sizes = [2, 32], strides = [1, 1]} : vector<2x128xf32> to vector<2x32xf32>
    %cst_99 = arith.constant 2.000000e+00 : f32
    %337 = vector.broadcast %cst_99 : f32 to vector<2x32xf32>
    %338 = arith.mulf %337, %336 : vector<2x32xf32>
    %cst_100 = arith.constant 1.000000e+00 : f32
    %339 = vector.broadcast %cst_100 : f32 to vector<2x32xf32>
    %340 = arith.subf %338, %339 : vector<2x32xf32>
    %341 = vector.extract_strided_slice %333 {offsets = [0, 96], sizes = [2, 32], strides = [1, 1]} : vector<2x128xf32> to vector<2x32xf32>
    %342 = arith.mulf %335, %322 : vector<2x32xf32>
    %343 = arith.mulf %334, %340 : vector<2x32xf32>
    %344 = arith.addf %342, %343 : vector<2x32xf32>
    %345 = math.tanh %344 : vector<2x32xf32>
    %346 = arith.mulf %341, %345 : vector<2x32xf32>
    %c12_101 = arith.constant 12 : index
    %c0_102 = arith.constant 0 : index
    %347 = vector.load %arg13[%c12_101, %c0_102] : memref<16x32xf32, #tpu.memory_space<vmem>>, vector<2x32xf32>
    tpu.vector_store %arg13[%c12_101, %c0_102], %346 {strides = array<i32>} : memref<16x32xf32, #tpu.memory_space<vmem>>, vector<2x32xf32>,
    %348 = vector.extract_strided_slice %191 {offsets = [14, 0], sizes = [2, 128], strides = [1, 1]} : vector<16x128xf32> to vector<2x128xf32>
    %cst_103 = arith.constant dense<0.000000e+00> : vector<2x128xf32>
    %349 = tpu.matmul %346, %186, %cst_103 {dimension_numbers = #tpu.dot_dimension_numbers<[1], [0], [0], [1], [0, 0, 1, 1], [], []>} : vector<2x32xf32>, vector<32x128xf32>, vector<2x128xf32> -> vector<2x128xf32>
    %350 = arith.addf %348, %349 : vector<2x128xf32>
    %351 = arith.negf %350 : vector<2x128xf32>
    %352 = math.exp %351 : vector<2x128xf32>
    %cst_104 = arith.constant 1.000000e+00 : f32
    %353 = vector.broadcast %cst_104 : f32 to vector<2x128xf32>
    %354 = arith.addf %353, %352 : vector<2x128xf32>
    %355 = arith.divf %353, %354 : vector<2x128xf32>
    %356 = vector.extract_strided_slice %355 {offsets = [0, 0], sizes = [2, 32], strides = [1, 1]} : vector<2x128xf32> to vector<2x32xf32>
    %357 = vector.extract_strided_slice %355 {offsets = [0, 32], sizes = [2, 32], strides = [1, 1]} : vector<2x128xf32> to vector<2x32xf32>
    %358 = vector.extract_strided_slice %355 {offsets = [0, 64], sizes = [2, 32], strides = [1, 1]} : vector<2x128xf32> to vector<2x32xf32>
    %cst_105 = arith.constant 2.000000e+00 : f32
    %359 = vector.broadcast %cst_105 : f32 to vector<2x32xf32>
    %360 = arith.mulf %359, %358 : vector<2x32xf32>
    %cst_106 = arith.constant 1.000000e+00 : f32
    %361 = vector.broadcast %cst_106 : f32 to vector<2x32xf32>
    %362 = arith.subf %360, %361 : vector<2x32xf32>
    %363 = vector.extract_strided_slice %355 {offsets = [0, 96], sizes = [2, 32], strides = [1, 1]} : vector<2x128xf32> to vector<2x32xf32>
    %364 = arith.mulf %357, %344 : vector<2x32xf32>
    %365 = arith.mulf %356, %362 : vector<2x32xf32>
    %366 = arith.addf %364, %365 : vector<2x32xf32>
    %367 = math.tanh %366 : vector<2x32xf32>
    %368 = arith.mulf %363, %367 : vector<2x32xf32>
    %c14_107 = arith.constant 14 : index
    %c0_108 = arith.constant 0 : index
    %369 = vector.load %arg13[%c14_107, %c0_108] : memref<16x32xf32, #tpu.memory_space<vmem>>, vector<2x32xf32>
    tpu.vector_store %arg13[%c14_107, %c0_108], %368 {strides = array<i32>} : memref<16x32xf32, #tpu.memory_space<vmem>>, vector<2x32xf32>,
    %c0_109 = arith.constant 0 : index
    %c0_110 = arith.constant 0 : index
    %370 = vector.load %arg7[%c0_109, %c0_110] : memref<32x128xf32, #tpu.memory_space<vmem>>, vector<32x128xf32>
    %c0_111 = arith.constant 0 : index
    %c0_112 = arith.constant 0 : index
    %371 = vector.load %arg8[%c0_111, %c0_112] : memref<32x128xf32, #tpu.memory_space<vmem>>, vector<32x128xf32>
    %c0_113 = arith.constant 0 : index
    %c0_114 = arith.constant 0 : index
    %372 = vector.load %arg9[%c0_113, %c0_114] : memref<1x128xf32, #tpu.memory_space<vmem>>, vector<1x128xf32>
    %c0_115 = arith.constant 0 : index
    %c0_116 = arith.constant 0 : index
    %373 = vector.load %arg13[%c0_115, %c0_116] : memref<16x32xf32, #tpu.memory_space<vmem>>, vector<16x32xf32>
    %cst_117 = arith.constant dense<0.000000e+00> : vector<16x128xf32>
    %374 = tpu.matmul %373, %370, %cst_117 {dimension_numbers = #tpu.dot_dimension_numbers<[1], [0], [0], [1], [0, 0, 1, 1], [], []>} : vector<16x32xf32>, vector<32x128xf32>, vector<16x128xf32> -> vector<16x128xf32>
    %375 = vector.broadcast %372 : vector<1x128xf32> to vector<16x128xf32>
    %376 = arith.addf %374, %375 : vector<16x128xf32>
    %cst_118 = arith.constant 0.000000e+00 : f32
    %377 = vector.broadcast %cst_118 : f32 to vector<2x32xf32>
    %cst_119 = arith.constant 0.000000e+00 : f32
    %378 = vector.broadcast %cst_119 : f32 to vector<2x32xf32>
    %379 = vector.extract_strided_slice %376 {offsets = [0, 0], sizes = [2, 128], strides = [1, 1]} : vector<16x128xf32> to vector<2x128xf32>
    %cst_120 = arith.constant dense<0.000000e+00> : vector<2x128xf32>
    %380 = tpu.matmul %377, %371, %cst_120 {dimension_numbers = #tpu.dot_dimension_numbers<[1], [0], [0], [1], [0, 0, 1, 1], [], []>} : vector<2x32xf32>, vector<32x128xf32>, vector<2x128xf32> -> vector<2x128xf32>
    %381 = arith.addf %379, %380 : vector<2x128xf32>
    %382 = arith.negf %381 : vector<2x128xf32>
    %383 = math.exp %382 : vector<2x128xf32>
    %cst_121 = arith.constant 1.000000e+00 : f32
    %384 = vector.broadcast %cst_121 : f32 to vector<2x128xf32>
    %385 = arith.addf %384, %383 : vector<2x128xf32>
    %386 = arith.divf %384, %385 : vector<2x128xf32>
    %387 = vector.extract_strided_slice %386 {offsets = [0, 0], sizes = [2, 32], strides = [1, 1]} : vector<2x128xf32> to vector<2x32xf32>
    %388 = vector.extract_strided_slice %386 {offsets = [0, 32], sizes = [2, 32], strides = [1, 1]} : vector<2x128xf32> to vector<2x32xf32>
    %389 = vector.extract_strided_slice %386 {offsets = [0, 64], sizes = [2, 32], strides = [1, 1]} : vector<2x128xf32> to vector<2x32xf32>
    %cst_122 = arith.constant 2.000000e+00 : f32
    %390 = vector.broadcast %cst_122 : f32 to vector<2x32xf32>
    %391 = arith.mulf %390, %389 : vector<2x32xf32>
    %cst_123 = arith.constant 1.000000e+00 : f32
    %392 = vector.broadcast %cst_123 : f32 to vector<2x32xf32>
    %393 = arith.subf %391, %392 : vector<2x32xf32>
    %394 = vector.extract_strided_slice %386 {offsets = [0, 96], sizes = [2, 32], strides = [1, 1]} : vector<2x128xf32> to vector<2x32xf32>
    %395 = arith.mulf %388, %378 : vector<2x32xf32>
    %396 = arith.mulf %387, %393 : vector<2x32xf32>
    %397 = arith.addf %395, %396 : vector<2x32xf32>
    %398 = math.tanh %397 : vector<2x32xf32>
    %399 = arith.mulf %394, %398 : vector<2x32xf32>
    %400 = vector.extract_strided_slice %376 {offsets = [2, 0], sizes = [2, 128], strides = [1, 1]} : vector<16x128xf32> to vector<2x128xf32>
    %cst_124 = arith.constant dense<0.000000e+00> : vector<2x128xf32>
    %401 = tpu.matmul %399, %371, %cst_124 {dimension_numbers = #tpu.dot_dimension_numbers<[1], [0], [0], [1], [0, 0, 1, 1], [], []>} : vector<2x32xf32>, vector<32x128xf32>, vector<2x128xf32> -> vector<2x128xf32>
    %402 = arith.addf %400, %401 : vector<2x128xf32>
    %403 = arith.negf %402 : vector<2x128xf32>
    %404 = math.exp %403 : vector<2x128xf32>
    %cst_125 = arith.constant 1.000000e+00 : f32
    %405 = vector.broadcast %cst_125 : f32 to vector<2x128xf32>
    %406 = arith.addf %405, %404 : vector<2x128xf32>
    %407 = arith.divf %405, %406 : vector<2x128xf32>
    %408 = vector.extract_strided_slice %407 {offsets = [0, 0], sizes = [2, 32], strides = [1, 1]} : vector<2x128xf32> to vector<2x32xf32>
    %409 = vector.extract_strided_slice %407 {offsets = [0, 32], sizes = [2, 32], strides = [1, 1]} : vector<2x128xf32> to vector<2x32xf32>
    %410 = vector.extract_strided_slice %407 {offsets = [0, 64], sizes = [2, 32], strides = [1, 1]} : vector<2x128xf32> to vector<2x32xf32>
    %cst_126 = arith.constant 2.000000e+00 : f32
    %411 = vector.broadcast %cst_126 : f32 to vector<2x32xf32>
    %412 = arith.mulf %411, %410 : vector<2x32xf32>
    %cst_127 = arith.constant 1.000000e+00 : f32
    %413 = vector.broadcast %cst_127 : f32 to vector<2x32xf32>
    %414 = arith.subf %412, %413 : vector<2x32xf32>
    %415 = vector.extract_strided_slice %407 {offsets = [0, 96], sizes = [2, 32], strides = [1, 1]} : vector<2x128xf32> to vector<2x32xf32>
    %416 = arith.mulf %409, %397 : vector<2x32xf32>
    %417 = arith.mulf %408, %414 : vector<2x32xf32>
    %418 = arith.addf %416, %417 : vector<2x32xf32>
    %419 = math.tanh %418 : vector<2x32xf32>
    %420 = arith.mulf %415, %419 : vector<2x32xf32>
    %421 = vector.extract_strided_slice %376 {offsets = [4, 0], sizes = [2, 128], strides = [1, 1]} : vector<16x128xf32> to vector<2x128xf32>
    %cst_128 = arith.constant dense<0.000000e+00> : vector<2x128xf32>
    %422 = tpu.matmul %420, %371, %cst_128 {dimension_numbers = #tpu.dot_dimension_numbers<[1], [0], [0], [1], [0, 0, 1, 1], [], []>} : vector<2x32xf32>, vector<32x128xf32>, vector<2x128xf32> -> vector<2x128xf32>
    %423 = arith.addf %421, %422 : vector<2x128xf32>
    %424 = arith.negf %423 : vector<2x128xf32>
    %425 = math.exp %424 : vector<2x128xf32>
    %cst_129 = arith.constant 1.000000e+00 : f32
    %426 = vector.broadcast %cst_129 : f32 to vector<2x128xf32>
    %427 = arith.addf %426, %425 : vector<2x128xf32>
    %428 = arith.divf %426, %427 : vector<2x128xf32>
    %429 = vector.extract_strided_slice %428 {offsets = [0, 0], sizes = [2, 32], strides = [1, 1]} : vector<2x128xf32> to vector<2x32xf32>
    %430 = vector.extract_strided_slice %428 {offsets = [0, 32], sizes = [2, 32], strides = [1, 1]} : vector<2x128xf32> to vector<2x32xf32>
    %431 = vector.extract_strided_slice %428 {offsets = [0, 64], sizes = [2, 32], strides = [1, 1]} : vector<2x128xf32> to vector<2x32xf32>
    %cst_130 = arith.constant 2.000000e+00 : f32
    %432 = vector.broadcast %cst_130 : f32 to vector<2x32xf32>
    %433 = arith.mulf %432, %431 : vector<2x32xf32>
    %cst_131 = arith.constant 1.000000e+00 : f32
    %434 = vector.broadcast %cst_131 : f32 to vector<2x32xf32>
    %435 = arith.subf %433, %434 : vector<2x32xf32>
    %436 = vector.extract_strided_slice %428 {offsets = [0, 96], sizes = [2, 32], strides = [1, 1]} : vector<2x128xf32> to vector<2x32xf32>
    %437 = arith.mulf %430, %418 : vector<2x32xf32>
    %438 = arith.mulf %429, %435 : vector<2x32xf32>
    %439 = arith.addf %437, %438 : vector<2x32xf32>
    %440 = math.tanh %439 : vector<2x32xf32>
    %441 = arith.mulf %436, %440 : vector<2x32xf32>
    %442 = vector.extract_strided_slice %376 {offsets = [6, 0], sizes = [2, 128], strides = [1, 1]} : vector<16x128xf32> to vector<2x128xf32>
    %cst_132 = arith.constant dense<0.000000e+00> : vector<2x128xf32>
    %443 = tpu.matmul %441, %371, %cst_132 {dimension_numbers = #tpu.dot_dimension_numbers<[1], [0], [0], [1], [0, 0, 1, 1], [], []>} : vector<2x32xf32>, vector<32x128xf32>, vector<2x128xf32> -> vector<2x128xf32>
    %444 = arith.addf %442, %443 : vector<2x128xf32>
    %445 = arith.negf %444 : vector<2x128xf32>
    %446 = math.exp %445 : vector<2x128xf32>
    %cst_133 = arith.constant 1.000000e+00 : f32
    %447 = vector.broadcast %cst_133 : f32 to vector<2x128xf32>
    %448 = arith.addf %447, %446 : vector<2x128xf32>
    %449 = arith.divf %447, %448 : vector<2x128xf32>
    %450 = vector.extract_strided_slice %449 {offsets = [0, 0], sizes = [2, 32], strides = [1, 1]} : vector<2x128xf32> to vector<2x32xf32>
    %451 = vector.extract_strided_slice %449 {offsets = [0, 32], sizes = [2, 32], strides = [1, 1]} : vector<2x128xf32> to vector<2x32xf32>
    %452 = vector.extract_strided_slice %449 {offsets = [0, 64], sizes = [2, 32], strides = [1, 1]} : vector<2x128xf32> to vector<2x32xf32>
    %cst_134 = arith.constant 2.000000e+00 : f32
    %453 = vector.broadcast %cst_134 : f32 to vector<2x32xf32>
    %454 = arith.mulf %453, %452 : vector<2x32xf32>
    %cst_135 = arith.constant 1.000000e+00 : f32
    %455 = vector.broadcast %cst_135 : f32 to vector<2x32xf32>
    %456 = arith.subf %454, %455 : vector<2x32xf32>
    %457 = vector.extract_strided_slice %449 {offsets = [0, 96], sizes = [2, 32], strides = [1, 1]} : vector<2x128xf32> to vector<2x32xf32>
    %458 = arith.mulf %451, %439 : vector<2x32xf32>
    %459 = arith.mulf %450, %456 : vector<2x32xf32>
    %460 = arith.addf %458, %459 : vector<2x32xf32>
    %461 = math.tanh %460 : vector<2x32xf32>
    %462 = arith.mulf %457, %461 : vector<2x32xf32>
    %463 = vector.extract_strided_slice %376 {offsets = [8, 0], sizes = [2, 128], strides = [1, 1]} : vector<16x128xf32> to vector<2x128xf32>
    %cst_136 = arith.constant dense<0.000000e+00> : vector<2x128xf32>
    %464 = tpu.matmul %462, %371, %cst_136 {dimension_numbers = #tpu.dot_dimension_numbers<[1], [0], [0], [1], [0, 0, 1, 1], [], []>} : vector<2x32xf32>, vector<32x128xf32>, vector<2x128xf32> -> vector<2x128xf32>
    %465 = arith.addf %463, %464 : vector<2x128xf32>
    %466 = arith.negf %465 : vector<2x128xf32>
    %467 = math.exp %466 : vector<2x128xf32>
    %cst_137 = arith.constant 1.000000e+00 : f32
    %468 = vector.broadcast %cst_137 : f32 to vector<2x128xf32>
    %469 = arith.addf %468, %467 : vector<2x128xf32>
    %470 = arith.divf %468, %469 : vector<2x128xf32>
    %471 = vector.extract_strided_slice %470 {offsets = [0, 0], sizes = [2, 32], strides = [1, 1]} : vector<2x128xf32> to vector<2x32xf32>
    %472 = vector.extract_strided_slice %470 {offsets = [0, 32], sizes = [2, 32], strides = [1, 1]} : vector<2x128xf32> to vector<2x32xf32>
    %473 = vector.extract_strided_slice %470 {offsets = [0, 64], sizes = [2, 32], strides = [1, 1]} : vector<2x128xf32> to vector<2x32xf32>
    %cst_138 = arith.constant 2.000000e+00 : f32
    %474 = vector.broadcast %cst_138 : f32 to vector<2x32xf32>
    %475 = arith.mulf %474, %473 : vector<2x32xf32>
    %cst_139 = arith.constant 1.000000e+00 : f32
    %476 = vector.broadcast %cst_139 : f32 to vector<2x32xf32>
    %477 = arith.subf %475, %476 : vector<2x32xf32>
    %478 = vector.extract_strided_slice %470 {offsets = [0, 96], sizes = [2, 32], strides = [1, 1]} : vector<2x128xf32> to vector<2x32xf32>
    %479 = arith.mulf %472, %460 : vector<2x32xf32>
    %480 = arith.mulf %471, %477 : vector<2x32xf32>
    %481 = arith.addf %479, %480 : vector<2x32xf32>
    %482 = math.tanh %481 : vector<2x32xf32>
    %483 = arith.mulf %478, %482 : vector<2x32xf32>
    %484 = vector.extract_strided_slice %376 {offsets = [10, 0], sizes = [2, 128], strides = [1, 1]} : vector<16x128xf32> to vector<2x128xf32>
    %cst_140 = arith.constant dense<0.000000e+00> : vector<2x128xf32>
    %485 = tpu.matmul %483, %371, %cst_140 {dimension_numbers = #tpu.dot_dimension_numbers<[1], [0], [0], [1], [0, 0, 1, 1], [], []>} : vector<2x32xf32>, vector<32x128xf32>, vector<2x128xf32> -> vector<2x128xf32>
    %486 = arith.addf %484, %485 : vector<2x128xf32>
    %487 = arith.negf %486 : vector<2x128xf32>
    %488 = math.exp %487 : vector<2x128xf32>
    %cst_141 = arith.constant 1.000000e+00 : f32
    %489 = vector.broadcast %cst_141 : f32 to vector<2x128xf32>
    %490 = arith.addf %489, %488 : vector<2x128xf32>
    %491 = arith.divf %489, %490 : vector<2x128xf32>
    %492 = vector.extract_strided_slice %491 {offsets = [0, 0], sizes = [2, 32], strides = [1, 1]} : vector<2x128xf32> to vector<2x32xf32>
    %493 = vector.extract_strided_slice %491 {offsets = [0, 32], sizes = [2, 32], strides = [1, 1]} : vector<2x128xf32> to vector<2x32xf32>
    %494 = vector.extract_strided_slice %491 {offsets = [0, 64], sizes = [2, 32], strides = [1, 1]} : vector<2x128xf32> to vector<2x32xf32>
    %cst_142 = arith.constant 2.000000e+00 : f32
    %495 = vector.broadcast %cst_142 : f32 to vector<2x32xf32>
    %496 = arith.mulf %495, %494 : vector<2x32xf32>
    %cst_143 = arith.constant 1.000000e+00 : f32
    %497 = vector.broadcast %cst_143 : f32 to vector<2x32xf32>
    %498 = arith.subf %496, %497 : vector<2x32xf32>
    %499 = vector.extract_strided_slice %491 {offsets = [0, 96], sizes = [2, 32], strides = [1, 1]} : vector<2x128xf32> to vector<2x32xf32>
    %500 = arith.mulf %493, %481 : vector<2x32xf32>
    %501 = arith.mulf %492, %498 : vector<2x32xf32>
    %502 = arith.addf %500, %501 : vector<2x32xf32>
    %503 = math.tanh %502 : vector<2x32xf32>
    %504 = arith.mulf %499, %503 : vector<2x32xf32>
    %505 = vector.extract_strided_slice %376 {offsets = [12, 0], sizes = [2, 128], strides = [1, 1]} : vector<16x128xf32> to vector<2x128xf32>
    %cst_144 = arith.constant dense<0.000000e+00> : vector<2x128xf32>
    %506 = tpu.matmul %504, %371, %cst_144 {dimension_numbers = #tpu.dot_dimension_numbers<[1], [0], [0], [1], [0, 0, 1, 1], [], []>} : vector<2x32xf32>, vector<32x128xf32>, vector<2x128xf32> -> vector<2x128xf32>
    %507 = arith.addf %505, %506 : vector<2x128xf32>
    %508 = arith.negf %507 : vector<2x128xf32>
    %509 = math.exp %508 : vector<2x128xf32>
    %cst_145 = arith.constant 1.000000e+00 : f32
    %510 = vector.broadcast %cst_145 : f32 to vector<2x128xf32>
    %511 = arith.addf %510, %509 : vector<2x128xf32>
    %512 = arith.divf %510, %511 : vector<2x128xf32>
    %513 = vector.extract_strided_slice %512 {offsets = [0, 0], sizes = [2, 32], strides = [1, 1]} : vector<2x128xf32> to vector<2x32xf32>
    %514 = vector.extract_strided_slice %512 {offsets = [0, 32], sizes = [2, 32], strides = [1, 1]} : vector<2x128xf32> to vector<2x32xf32>
    %515 = vector.extract_strided_slice %512 {offsets = [0, 64], sizes = [2, 32], strides = [1, 1]} : vector<2x128xf32> to vector<2x32xf32>
    %cst_146 = arith.constant 2.000000e+00 : f32
    %516 = vector.broadcast %cst_146 : f32 to vector<2x32xf32>
    %517 = arith.mulf %516, %515 : vector<2x32xf32>
    %cst_147 = arith.constant 1.000000e+00 : f32
    %518 = vector.broadcast %cst_147 : f32 to vector<2x32xf32>
    %519 = arith.subf %517, %518 : vector<2x32xf32>
    %520 = vector.extract_strided_slice %512 {offsets = [0, 96], sizes = [2, 32], strides = [1, 1]} : vector<2x128xf32> to vector<2x32xf32>
    %521 = arith.mulf %514, %502 : vector<2x32xf32>
    %522 = arith.mulf %513, %519 : vector<2x32xf32>
    %523 = arith.addf %521, %522 : vector<2x32xf32>
    %524 = math.tanh %523 : vector<2x32xf32>
    %525 = arith.mulf %520, %524 : vector<2x32xf32>
    %526 = vector.extract_strided_slice %376 {offsets = [14, 0], sizes = [2, 128], strides = [1, 1]} : vector<16x128xf32> to vector<2x128xf32>
    %cst_148 = arith.constant dense<0.000000e+00> : vector<2x128xf32>
    %527 = tpu.matmul %525, %371, %cst_148 {dimension_numbers = #tpu.dot_dimension_numbers<[1], [0], [0], [1], [0, 0, 1, 1], [], []>} : vector<2x32xf32>, vector<32x128xf32>, vector<2x128xf32> -> vector<2x128xf32>
    %528 = arith.addf %526, %527 : vector<2x128xf32>
    %529 = arith.negf %528 : vector<2x128xf32>
    %530 = math.exp %529 : vector<2x128xf32>
    %cst_149 = arith.constant 1.000000e+00 : f32
    %531 = vector.broadcast %cst_149 : f32 to vector<2x128xf32>
    %532 = arith.addf %531, %530 : vector<2x128xf32>
    %533 = arith.divf %531, %532 : vector<2x128xf32>
    %534 = vector.extract_strided_slice %533 {offsets = [0, 0], sizes = [2, 32], strides = [1, 1]} : vector<2x128xf32> to vector<2x32xf32>
    %535 = vector.extract_strided_slice %533 {offsets = [0, 32], sizes = [2, 32], strides = [1, 1]} : vector<2x128xf32> to vector<2x32xf32>
    %536 = vector.extract_strided_slice %533 {offsets = [0, 64], sizes = [2, 32], strides = [1, 1]} : vector<2x128xf32> to vector<2x32xf32>
    %cst_150 = arith.constant 2.000000e+00 : f32
    %537 = vector.broadcast %cst_150 : f32 to vector<2x32xf32>
    %538 = arith.mulf %537, %536 : vector<2x32xf32>
    %cst_151 = arith.constant 1.000000e+00 : f32
    %539 = vector.broadcast %cst_151 : f32 to vector<2x32xf32>
    %540 = arith.subf %538, %539 : vector<2x32xf32>
    %541 = vector.extract_strided_slice %533 {offsets = [0, 96], sizes = [2, 32], strides = [1, 1]} : vector<2x128xf32> to vector<2x32xf32>
    %542 = arith.mulf %535, %523 : vector<2x32xf32>
    %543 = arith.mulf %534, %540 : vector<2x32xf32>
    %544 = arith.addf %542, %543 : vector<2x32xf32>
    %545 = math.tanh %544 : vector<2x32xf32>
    %546 = arith.mulf %541, %545 : vector<2x32xf32>
    %c0_152 = arith.constant 0 : index
    %c0_153 = arith.constant 0 : index
    %547 = vector.load %arg10[%c0_152, %c0_153] : memref<1x32xf32, #tpu.memory_space<vmem>>, vector<1x32xf32>
    %548 = vector.broadcast %547 : vector<1x32xf32> to vector<2x32xf32>
    %549 = arith.mulf %546, %548 : vector<2x32xf32>
    %cst_154 = arith.constant dense<0.000000e+00> : vector<2xf32>
    %550 = vector.multi_reduction <add>, %549, %cst_154 [1] : vector<2x32xf32> to vector<2xf32>
    %551 = vector.shape_cast %550 : vector<2xf32> to vector<2x1xf32>
    %c0_155 = arith.constant 0 : index
    %c0_156 = arith.constant 0 : index
    %552 = vector.load %arg11[%c0_155, %c0_156] : memref<1x1xf32, #tpu.memory_space<vmem>>, vector<1x1xf32>
    %553 = vector.broadcast %552 : vector<1x1xf32> to vector<2x1xf32>
    %554 = arith.addf %551, %553 : vector<2x1xf32>
    %c0_157 = arith.constant 0 : index
    %c0_158 = arith.constant 0 : index
    %555 = vector.load %arg12[%c0_157, %c0_158] : memref<2x1xf32, #tpu.memory_space<vmem>>, vector<2x1xf32>
    tpu.vector_store %arg12[%c0_157, %c0_158], %554 {strides = array<i32>} : memref<2x1xf32, #tpu.memory_space<vmem>>, vector<2x1xf32>,
    return
  }
}

</mosaic_0001>

<llo_original>
// kernel: tpu_custom_call.1
$region0: #{tpu_custom_call.1}
  #allocation0 [shape = 'u32[]', space=smem, size = 0x4, offset = 0x4, fixed_abs, tag = 'smem constant byte address 0x4 - core index']
  #allocation1 [shape = 'u32[144,128]{1,0:T(1,128)}', space=vmem, size = 0x12000, scoped, tag = 'internal scratch']
  #allocation2 [shape = 'f32[16,32]{1,0:T(8,128)}', space=vmem, size = 0x2000, scoped, tag = 'scratch operand']
  #allocation3 [shape = 'f32[1,1]{1,0:T(1,128)S(1)}', space=vmem, size = 0x200, scoped, tag = 'scoped memory for tpu_custom_call.1']
  %s0 = inlined_call_operand.vmem [shape: f32[16,4], index: 0, kind: input, shape index: {}]
  %s1 = inlined_call_operand.vmem [shape: f32[4,128], index: 1, kind: input, shape index: {}]
  %s2 = inlined_call_operand.hbm [shape: f32[32,128], index: 2, kind: input, shape index: {}]
  %s3 = inlined_call_operand.vmem [shape: f32[1,128], index: 3, kind: input, shape index: {}]
  %s4 = inlined_call_operand.vmem [shape: f32[32,128], index: 4, kind: input, shape index: {}]
  %s5 = inlined_call_operand.hbm [shape: f32[32,128], index: 5, kind: input, shape index: {}]
  %s6 = inlined_call_operand.vmem [shape: f32[1,128], index: 6, kind: input, shape index: {}]
  %s7 = inlined_call_operand.hbm [shape: f32[32,128], index: 7, kind: input, shape index: {}]
  %s8 = inlined_call_operand.hbm [shape: f32[32,128], index: 8, kind: input, shape index: {}]
  %s9 = inlined_call_operand.vmem [shape: f32[1,128], index: 9, kind: input, shape index: {}]
  %s10 = inlined_call_operand.vmem [shape: f32[1,32], index: 10, kind: input, shape index: {}]
  %s11 = inlined_call_operand.<no memory space> [shape: f32[1,1], index: 11, kind: input, shape index: {}]
  %s12 = inlined_call_operand.vmem [shape: f32[2,1], index: 12, kind: output, shape index: {}]
  %s13 = sld [smem:[#allocation0]]
  $region74: #{tpu_custom_call.1} parent=0
    _
  %s15 = ssub.s32 1, %s13
  %s16 = scalar_select 0, %s15, %s13
  %v17 = vstv %s11
  %18 = vst [vmem:[#allocation3] sm:$0x1] %v17
  $region1: #{tpu_custom_call.1} parent=0
    #allocation4 [shape = 'u8[16384]{0}', space=vmem, size = 0x4000, scoped, tag = 'input window, operand 2, single buffered']
    #allocation5 [shape = 's32[1]{0}', space=sflag, size = 0x4, scoped, tag = 'scoped memory for tpu_custom_call.1']
    #allocation6 [shape = 'u8[16384]{0}', space=vmem, size = 0x4000, scoped, tag = 'input window, operand 5, single buffered']
    #allocation7 [shape = 's32[1]{0}', space=sflag, size = 0x4, scoped, tag = 'scoped memory for tpu_custom_call.1']
    #allocation8 [shape = 'u8[16384]{0}', space=vmem, size = 0x4000, scoped, tag = 'input window, operand 7, single buffered']
    #allocation9 [shape = 'u8[16384]{0}', space=vmem, size = 0x4000, scoped, tag = 'input window, operand 8, single buffered']
    #allocation10 [shape = 's32[1]{0}', space=sflag, size = 0x4, scoped, tag = 'scoped memory for tpu_custom_call.1']
    %19 = vsyncpa [#allocation5], 0
    %20 = vsyncpa [#allocation7], 0
    %21 = vsyncpa [#allocation10], 0
    // Predicated region
    $region2: #{tpu_custom_call.1} parent=1 // pred_check
      _
    $region3: #{tpu_custom_call.1} parent=1 // pred_check_branch
      %23 = sbr.rel (0) target = $region5
    $region4: #{tpu_custom_call.1} parent=1 // pred_region
      _
    $region5: #{tpu_custom_call.1} parent=1 // pred_fallthru
      _
    // Predicated region
    $region6: #{tpu_custom_call.1} parent=1 // pred_check
      _
    $region7: #{tpu_custom_call.1} parent=1 // pred_check_branch
      %25 = sbr.rel (0) target = $region9
    $region8: #{tpu_custom_call.1} parent=1 // pred_region
      _
    $region9: #{tpu_custom_call.1} parent=1 // pred_fallthru
      _
    // Predicated region
    $region10: #{tpu_custom_call.1} parent=1 // pred_check
      _
    $region11: #{tpu_custom_call.1} parent=1 // pred_check_branch
      %27 = sbr.rel (0) target = $region13
    $region12: #{tpu_custom_call.1} parent=1 // pred_region
      %s29 = ssub.s32 512, 512
      %30 = vsyncadd [#allocation5], %s29
      %s31 = sshll.u32 [#allocation4], 4
      %s32 = int_to_ptr.vmem [resolvable:$true] %s31
      %37 = dma.hbm_to_vmem [thread:$0]  %s2, 512, %s32, [#allocation5], 128, 128, 8
    $region13: #{tpu_custom_call.1} parent=1 // pred_fallthru
      _
    // Predicated region
    $region14: #{tpu_custom_call.1} parent=1 // pred_check
      _
    $region15: #{tpu_custom_call.1} parent=1 // pred_check_branch
      %39 = sbr.rel (0) target = $region17
    $region16: #{tpu_custom_call.1} parent=1 // pred_region
      _
    $region17: #{tpu_custom_call.1} parent=1 // pred_fallthru
      _
    // Predicated region
    $region18: #{tpu_custom_call.1} parent=1 // pred_check
      _
    $region19: #{tpu_custom_call.1} parent=1 // pred_check_branch
      %41 = sbr.rel (0) target = $region21
    $region20: #{tpu_custom_call.1} parent=1 // pred_region
      _
    $region21: #{tpu_custom_call.1} parent=1 // pred_fallthru
      _
    // Predicated region
    $region22: #{tpu_custom_call.1} parent=1 // pred_check
      _
    $region23: #{tpu_custom_call.1} parent=1 // pred_check_branch
      %43 = sbr.rel (0) target = $region25
    $region24: #{tpu_custom_call.1} parent=1 // pred_region
      %s45 = ssub.s32 512, 512
      %46 = vsyncadd [#allocation7], %s45
      %s47 = sshll.u32 [#allocation6], 4
      %s48 = int_to_ptr.vmem [resolvable:$true] %s47
      %53 = dma.hbm_to_vmem [thread:$0]  %s5, 512, %s48, [#allocation7], 128, 128, 8
    $region25: #{tpu_custom_call.1} parent=1 // pred_fallthru
      _
    // Predicated region
    $region26: #{tpu_custom_call.1} parent=1 // pred_check
      _
    $region27: #{tpu_custom_call.1} parent=1 // pred_check_branch
      %55 = sbr.rel (0) target = $region29
    $region28: #{tpu_custom_call.1} parent=1 // pred_region
      _
    $region29: #{tpu_custom_call.1} parent=1 // pred_fallthru
      _
    // Predicated region
    $region30: #{tpu_custom_call.1} parent=1 // pred_check
      _
    $region31: #{tpu_custom_call.1} parent=1 // pred_check_branch
      %57 = sbr.rel (0) target = $region33
    $region32: #{tpu_custom_call.1} parent=1 // pred_region
      %s59 = ssub.s32 512, 512
      %60 = vsyncadd [#allocation7], %s59
      %s61 = sshll.u32 [#allocation8], 4
      %s62 = int_to_ptr.vmem [resolvable:$true] %s61
      %67 = dma.hbm_to_vmem [thread:$0]  %s7, 512, %s62, [#allocation7], 128, 128, 8
    $region33: #{tpu_custom_call.1} parent=1 // pred_fallthru
      _
    // Predicated region
    $region34: #{tpu_custom_call.1} parent=1 // pred_check
      _
    $region35: #{tpu_custom_call.1} parent=1 // pred_check_branch
      %69 = sbr.rel (0) target = $region37
    $region36: #{tpu_custom_call.1} parent=1 // pred_region
      %s71 = ssub.s32 512, 512
      %72 = vsyncadd [#allocation10], %s71
      %s73 = sshll.u32 [#allocation9], 4
      %s74 = int_to_ptr.vmem [resolvable:$true] %s73
      %79 = dma.hbm_to_vmem [thread:$0]  %s8, 512, %s74, [#allocation10], 128, 128, 8
    $region37: #{tpu_custom_call.1} parent=1 // pred_fallthru
      _
    // Predicated region
    $region38: #{tpu_custom_call.1} parent=1 // pred_check
      _
    $region39: #{tpu_custom_call.1} parent=1 // pred_check_branch
      %81 = sbr.rel (0) target = $region41
    $region40: #{tpu_custom_call.1} parent=1 // pred_region
      _
    $region41: #{tpu_custom_call.1} parent=1 // pred_fallthru
      _
    // Predicated region
    $region42: #{tpu_custom_call.1} parent=1 // pred_check
      _
    $region43: #{tpu_custom_call.1} parent=1 // pred_check_branch
      %83 = sbr.rel (0) target = $region45
    $region44: #{tpu_custom_call.1} parent=1 // pred_region
      _
    $region45: #{tpu_custom_call.1} parent=1 // pred_fallthru
      _
    // Predicated region
    $region46: #{tpu_custom_call.1} parent=1 // pred_check
      _
    $region47: #{tpu_custom_call.1} parent=1 // pred_check_branch
      %85 = sbr.rel (0) target = $region49
    $region48: #{tpu_custom_call.1} parent=1 // pred_region
      _
    $region49: #{tpu_custom_call.1} parent=1 // pred_fallthru
      _
    // Predicated region
    $region50: #{tpu_custom_call.1} parent=1 // pred_check
      _
    $region51: #{tpu_custom_call.1} parent=1 // pred_check_branch
      %87 = sbr.rel (0) target = $region53
    $region52: #{tpu_custom_call.1} parent=1 // pred_region
      %88 = dma.done [#allocation5], 512
    $region53: #{tpu_custom_call.1} parent=1 // pred_fallthru
      _
    // Predicated region
    $region54: #{tpu_custom_call.1} parent=1 // pred_check
      _
    $region55: #{tpu_custom_call.1} parent=1 // pred_check_branch
      %90 = sbr.rel (0) target = $region57
    $region56: #{tpu_custom_call.1} parent=1 // pred_region
      %91 = dma.done [#allocation7], 512
    $region57: #{tpu_custom_call.1} parent=1 // pred_fallthru
      _
    // Predicated region
    $region58: #{tpu_custom_call.1} parent=1 // pred_check
      _
    $region59: #{tpu_custom_call.1} parent=1 // pred_check_branch
      %93 = sbr.rel (0) target = $region61
    $region60: #{tpu_custom_call.1} parent=1 // pred_region
      %94 = dma.done [#allocation7], 512
    $region61: #{tpu_custom_call.1} parent=1 // pred_fallthru
      _
    // Predicated region
    $region62: #{tpu_custom_call.1} parent=1 // pred_check
      _
    $region63: #{tpu_custom_call.1} parent=1 // pred_check_branch
      %96 = sbr.rel (0) target = $region65
    $region64: #{tpu_custom_call.1} parent=1 // pred_region
      %97 = dma.done [#allocation10], 512
    $region65: #{tpu_custom_call.1} parent=1 // pred_fallthru
      _
    %v98 = vld [vmem:[%s1] sm:$0xf]
    %v99 = vld [vmem:[#allocation4] sm:$0xff]
    %v100 = vld [vmem:[#allocation4 + $0x8] sm:$0xff]
    %v101 = vld [vmem:[#allocation4 + $0x10] sm:$0xff]
    %v102 = vld [vmem:[#allocation4 + $0x18] sm:$0xff]
    %v103 = vld [vmem:[%s3] sm:$0x1]
    %v104 = vld [vmem:[%s0] sm:$0xff]
    %v105 = vld [vmem:[%s0 + $0x8] sm:$0xff]
    %v107 = vlaneseq
    %v108 = vshrl.u32 %v107, 7
    %v109 = vsub.s32 0, %v108
    %v110 = vrot.slane %v103, %v109
    %vm112 = vcmask 31744
    %v114 = vsel %vm112, %v104, 0
    %v117 = vsel %vm112, %v105, 0
    %vm119 = vcmask 1043456
    %v121 = vsel %vm119, %v98, 0
    %123 = vmatprep.subr.mxu0 0.0
    %124 = vmatpush1.msra.mxu0 %v121
    %125 = vmatprep.subr.mxu0 0.0
    %126 = vmatpush1.msra.mxu0 0.0
    %127 = vmatprep.subr.mxu0 0.0
    %128 = vmatpush1.msra.mxu0 0.0
    %129 = vmatprep.subr.mxu0 0.0
    %130 = vmatpush1.msra.mxu0 0.0
    %131 = vmatprep.subr.mxu0 0.0
    %132 = vmatpush1.msra.mxu0 0.0
    %133 = vmatprep.subr.mxu0 0.0
    %134 = vmatpush1.msra.mxu0 0.0
    %135 = vmatprep.subr.mxu0 0.0
    %136 = vmatpush1.msra.mxu0 0.0
    %137 = vmatprep.subr.mxu0 0.0
    %138 = vmatpush1.msra.mxu0 0.0
    %139 = vmatprep.subr.mxu0 0.0
    %140 = vmatpush1.msra.mxu0 0.0
    %141 = vmatprep.subr.mxu0 0.0
    %142 = vmatpush1.msra.mxu0 0.0
    %143 = vmatprep.subr.mxu0 0.0
    %144 = vmatpush1.msra.mxu0 0.0
    %145 = vmatprep.subr.mxu0 0.0
    %146 = vmatpush1.msra.mxu0 0.0
    %147 = vmatprep.subr.mxu0 0.0
    %148 = vmatpush1.msra.mxu0 0.0
    %149 = vmatprep.subr.mxu0 0.0
    %150 = vmatpush1.msra.mxu0 0.0
    %151 = vmatprep.subr.mxu0 0.0
    %152 = vmatpush1.msra.mxu0 0.0
    %153 = vmatprep.subr.mxu0 0.0
    %154 = vmatpush1.msra.mxu0 0.0
    %155 = vmatprep.subr.mxu0 0.0
    %156 = vmatpush1.msra.mxu0 0.0
    %157 = vmatprep.subr.mxu0 0.0
    %158 = vmatpush1.msra.mxu0 0.0
    %159 = vmatprep.subr.mxu0 0.0
    %160 = vmatpush1.msra.mxu0 0.0
    %161 = vmatprep.subr.mxu0 0.0
    %162 = vmatpush1.msra.mxu0 0.0
    %163 = vmatprep.subr.mxu0 0.0
    %164 = vmatpush1.msra.mxu0 0.0
    %165 = vmatprep.subr.mxu0 0.0
    %166 = vmatpush1.msra.mxu0 0.0
    %167 = vmatprep.subr.mxu0 0.0
    %168 = vmatpush1.msra.mxu0 0.0
    %169 = vmatprep.subr.mxu0 0.0
    %170 = vmatpush1.msra.mxu0 0.0
    %171 = vmatprep.subr.mxu0 0.0
    %172 = vmatpush1.msra.mxu0 0.0
    %173 = vmatprep.subr.mxu0 0.0
    %174 = vmatpush1.msra.mxu0 0.0
    %175 = vmatprep.subr.mxu0 0.0
    %176 = vmatpush1.msra.mxu0 0.0
    %177 = vmatprep.subr.mxu0 0.0
    %178 = vmatpush1.msra.mxu0 0.0
    %179 = vmatprep.subr.mxu0 0.0
    %180 = vmatpush1.msra.mxu0 0.0
    %181 = vmatprep.subr.mxu0 0.0
    %182 = vmatpush1.msra.mxu0 0.0
    %183 = vmatprep.subr.mxu0 0.0
    %184 = vmatpush1.msra.mxu0 0.0
    %185 = vmatprep.subr.mxu0 0.0
    %186 = vmatpush1.msra.mxu0 0.0
    %187 = vmatprep.mubr.f32.mxu0 0.0
    %188 = vmatmul.mubr.f32.gmra.mrb[0].mxu0 %v114
    %v189 = vpop.f32.mrb[0].mxu0
    %v190 = vadd.f32 %v110, %v189
    %v191 = vpop.f32.mrb[0].mxu0
    %192 = vmatprep.mubr.f32.mxu0 0.0
    %193 = vmatmul.mubr.f32.gmra.mrb[0].mxu0 %v117
    %v194 = vpop.f32.mrb[0].mxu0
    %v195 = vadd.f32 %v110, %v194
    %v196 = vpop.f32.mrb[0].mxu0
    %197 = vdwg.mxu0
    %vm198 = vcmask 261120
    %v200 = vsel %vm198, 0.0, 0
    %202 = vmatprep.subr.mxu0 0.0
    %203 = vmatpush1.msra.mxu0 %v99
    %204 = vmatprep.subr.mxu0 0.0
    %205 = vmatpush1.msra.mxu0 %v100
    %206 = vmatprep.subr.mxu0 0.0
    %207 = vmatpush1.msra.mxu0 %v101
    %208 = vmatprep.subr.mxu0 0.0
    %209 = vmatpush1.msra.mxu0 %v102
    %210 = vmatprep.subr.mxu0 0.0
    %211 = vmatpush1.msra.mxu0 0.0
    %212 = vmatprep.subr.mxu0 0.0
    %213 = vmatpush1.msra.mxu0 0.0
    %214 = vmatprep.subr.mxu0 0.0
    %215 = vmatpush1.msra.mxu0 0.0
    %216 = vmatprep.subr.mxu0 0.0
    %217 = vmatpush1.msra.mxu0 0.0
    %218 = vmatprep.subr.mxu0 0.0
    %219 = vmatpush1.msra.mxu0 0.0
    %220 = vmatprep.subr.mxu0 0.0
    %221 = vmatpush1.msra.mxu0 0.0
    %222 = vmatprep.subr.mxu0 0.0
    %223 = vmatpush1.msra.mxu0 0.0
    %224 = vmatprep.subr.mxu0 0.0
    %225 = vmatpush1.msra.mxu0 0.0
    %226 = vmatprep.subr.mxu0 0.0
    %227 = vmatpush1.msra.mxu0 0.0
    %228 = vmatprep.subr.mxu0 0.0
    %229 = vmatpush1.msra.mxu0 0.0
    %230 = vmatprep.subr.mxu0 0.0
    %231 = vmatpush1.msra.mxu0 0.0
    %232 = vmatprep.subr.mxu0 0.0
    %233 = vmatpush1.msra.mxu0 0.0
    %234 = vmatprep.subr.mxu0 0.0
    %235 = vmatpush1.msra.mxu0 0.0
    %236 = vmatprep.subr.mxu0 0.0
    %237 = vmatpush1.msra.mxu0 0.0
    %238 = vmatprep.subr.mxu0 0.0
    %239 = vmatpush1.msra.mxu0 0.0
    %240 = vmatprep.subr.mxu0 0.0
    %241 = vmatpush1.msra.mxu0 0.0
    %242 = vmatprep.subr.mxu0 0.0
    %243 = vmatpush1.msra.mxu0 0.0
    %244 = vmatprep.subr.mxu0 0.0
    %245 = vmatpush1.msra.mxu0 0.0
    %246 = vmatprep.subr.mxu0 0.0
    %247 = vmatpush1.msra.mxu0 0.0
    %248 = vmatprep.subr.mxu0 0.0
    %249 = vmatpush1.msra.mxu0 0.0
    %250 = vmatprep.subr.mxu0 0.0
    %251 = vmatpush1.msra.mxu0 0.0
    %252 = vmatprep.subr.mxu0 0.0
    %253 = vmatpush1.msra.mxu0 0.0
    %254 = vmatprep.subr.mxu0 0.0
    %255 = vmatpush1.msra.mxu0 0.0
    %256 = vmatprep.subr.mxu0 0.0
    %257 = vmatpush1.msra.mxu0 0.0
    %258 = vmatprep.subr.mxu0 0.0
    %259 = vmatpush1.msra.mxu0 0.0
    %260 = vmatprep.subr.mxu0 0.0
    %261 = vmatpush1.msra.mxu0 0.0
    %262 = vmatprep.subr.mxu0 0.0
    %263 = vmatpush1.msra.mxu0 0.0
    %264 = vmatprep.subr.mxu0 0.0
    %265 = vmatpush1.msra.mxu0 0.0
    %266 = vmatprep.mubr.f32.mxu0 0.0
    %267 = vmatmul.mubr.f32.gmra.mrb[0].mxu0 %v200
    %v268 = vpop.f32.mrb[0].mxu0
    %v269 = vadd.f32 0.0, %v268
    %v270 = vpop.f32.mrb[0].mxu0
    %271 = vdwg.mxu0
    %v272 = vadd.f32 %v190, %v269
    %v273 = vxor.u32 %v272, 2147483648
    %v274 = vmul.f32 %v273, 1.442695
    %v275 = vpow.pop %v274
    %v276 = vadd.f32 %v275, 1.0
    %v277 = vrcp.pop %v276
    %v278 = vmul.f32 1.0, %v277
    %v279 = vmul.f32 %v278, 2.0
    %v280 = vsub.f32 %v279, 1.0
    %v281 = vmul.f32 %v278, 0.0
    %283 = vrot.lane.b32.xlu0 %v280, 64
    %v284 = vpop.permute.xlu0 %283
    %v286 = vmul.f32 %v278, %v284
    %288 = vrot.lane.b32.xlu0 %v286, 32
    %v289 = vpop.permute.xlu0 %288
    %v291 = vadd.f32 %v281, %v289
    %v292 = vtanh.pop %v291
    %294 = vrot.lane.b32.xlu0 %v292, 64
    %v295 = vpop.permute.xlu0 %294
    %v297 = vmul.f32 %v278, %v295
    %299 = vrot.lane.b32.xlu0 %v297, 32
    %v300 = vpop.permute.xlu0 %299
    %vm302 = vcmask 254976
    %303 = vst.msk [vmem:[#allocation2] sm:$0x3] %vm302, %v300
    %v304 = vsel %vm198, %v300, 0
    %306 = vmatprep.subr.mxu0 0.0
    %307 = vmatpush1.msra.mxu0 %v99
    %308 = vmatprep.subr.mxu0 0.0
    %309 = vmatpush1.msra.mxu0 %v100
    %310 = vmatprep.subr.mxu0 0.0
    %311 = vmatpush1.msra.mxu0 %v101
    %312 = vmatprep.subr.mxu0 0.0
    %313 = vmatpush1.msra.mxu0 %v102
    %314 = vmatprep.subr.mxu0 0.0
    %315 = vmatpush1.msra.mxu0 0.0
    %316 = vmatprep.subr.mxu0 0.0
    %317 = vmatpush1.msra.mxu0 0.0
    %318 = vmatprep.subr.mxu0 0.0
    %319 = vmatpush1.msra.mxu0 0.0
    %320 = vmatprep.subr.mxu0 0.0
    %321 = vmatpush1.msra.mxu0 0.0
    %322 = vmatprep.subr.mxu0 0.0
    %323 = vmatpush1.msra.mxu0 0.0
    %324 = vmatprep.subr.mxu0 0.0
    %325 = vmatpush1.msra.mxu0 0.0
    %326 = vmatprep.subr.mxu0 0.0
    %327 = vmatpush1.msra.mxu0 0.0
    %328 = vmatprep.subr.mxu0 0.0
    %329 = vmatpush1.msra.mxu0 0.0
    %330 = vmatprep.subr.mxu0 0.0
    %331 = vmatpush1.msra.mxu0 0.0
    %332 = vmatprep.subr.mxu0 0.0
    %333 = vmatpush1.msra.mxu0 0.0
    %334 = vmatprep.subr.mxu0 0.0
    %335 = vmatpush1.msra.mxu0 0.0
    %336 = vmatprep.subr.mxu0 0.0
    %337 = vmatpush1.msra.mxu0 0.0
    %338 = vmatprep.subr.mxu0 0.0
    %339 = vmatpush1.msra.mxu0 0.0
    %340 = vmatprep.subr.mxu0 0.0
    %341 = vmatpush1.msra.mxu0 0.0
    %342 = vmatprep.subr.mxu0 0.0
    %343 = vmatpush1.msra.mxu0 0.0
    %344 = vmatprep.subr.mxu0 0.0
    %345 = vmatpush1.msra.mxu0 0.0
    %346 = vmatprep.subr.mxu0 0.0
    %347 = vmatpush1.msra.mxu0 0.0
    %348 = vmatprep.subr.mxu0 0.0
    %349 = vmatpush1.msra.mxu0 0.0
    %350 = vmatprep.subr.mxu0 0.0
    %351 = vmatpush1.msra.mxu0 0.0
    %352 = vmatprep.subr.mxu0 0.0
    %353 = vmatpush1.msra.mxu0 0.0
    %354 = vmatprep.subr.mxu0 0.0
    %355 = vmatpush1.msra.mxu0 0.0
    %356 = vmatprep.subr.mxu0 0.0
    %357 = vmatpush1.msra.mxu0 0.0
    %358 = vmatprep.subr.mxu0 0.0
    %359 = vmatpush1.msra.mxu0 0.0
    %360 = vmatprep.subr.mxu0 0.0
    %361 = vmatpush1.msra.mxu0 0.0
    %362 = vmatprep.subr.mxu0 0.0
    %363 = vmatpush1.msra.mxu0 0.0
    %364 = vmatprep.subr.mxu0 0.0
    %365 = vmatpush1.msra.mxu0 0.0
    %366 = vmatprep.subr.mxu0 0.0
    %367 = vmatpush1.msra.mxu0 0.0
    %368 = vmatprep.subr.mxu0 0.0
    %369 = vmatpush1.msra.mxu0 0.0
    %370 = vmatprep.mubr.f32.mxu0 0.0
    %371 = vmatmul.mubr.f32.gmra.mrb[0].mxu0 %v304
    %v372 = vpop.f32.mrb[0].mxu0
    %v373 = vadd.f32 0.0, %v372
    %v374 = vpop.f32.mrb[0].mxu0
    %375 = vdwg.mxu0
    %v377 = vrot.slane %v373, 6
    %v379 = vadd.f32 %v190, %v377
    %v380 = vxor.u32 %v379, 2147483648
    %v381 = vmul.f32 %v380, 1.442695
    %v382 = vpow.pop %v381
    %v383 = vadd.f32 %v382, 1.0
    %v384 = vrcp.pop %v383
    %v385 = vmul.f32 1.0, %v384
    %v386 = vmul.f32 %v385, 2.0
    %v387 = vsub.f32 %v386, 1.0
    %v389 = vrot.slane %v291, 6
    %v391 = vmul.f32 %v385, %v389
    %393 = vrot.lane.b32.xlu0 %v387, 64
    %v394 = vpop.permute.xlu0 %393
    %v396 = vmul.f32 %v385, %v394
    %398 = vrot.lane.b32.xlu0 %v396, 32
    %v399 = vpop.permute.xlu0 %398
    %v401 = vadd.f32 %v391, %v399
    %v402 = vtanh.pop %v401
    %404 = vrot.lane.b32.xlu0 %v402, 64
    %v405 = vpop.permute.xlu0 %404
    %v407 = vmul.f32 %v385, %v405
    %409 = vrot.lane.b32.xlu0 %v407, 32
    %v410 = vpop.permute.xlu0 %409
    %vm412 = vcmask 257026
    %413 = vst.msk [vmem:[#allocation2] sm:$0xc] %vm412, %v410
    %v414 = vrot.slane %v407, 2
    %415 = vrot.lane.b32.xlu0 %v414, 32
    %v416 = vpop.permute.xlu0 %415
    %v417 = vsel %vm198, %v416, 0
    %419 = vmatprep.subr.mxu0 0.0
    %420 = vmatpush1.msra.mxu0 %v99
    %421 = vmatprep.subr.mxu0 0.0
    %422 = vmatpush1.msra.mxu0 %v100
    %423 = vmatprep.subr.mxu0 0.0
    %424 = vmatpush1.msra.mxu0 %v101
    %425 = vmatprep.subr.mxu0 0.0
    %426 = vmatpush1.msra.mxu0 %v102
    %427 = vmatprep.subr.mxu0 0.0
    %428 = vmatpush1.msra.mxu0 0.0
    %429 = vmatprep.subr.mxu0 0.0
    %430 = vmatpush1.msra.mxu0 0.0
    %431 = vmatprep.subr.mxu0 0.0
    %432 = vmatpush1.msra.mxu0 0.0
    %433 = vmatprep.subr.mxu0 0.0
    %434 = vmatpush1.msra.mxu0 0.0
    %435 = vmatprep.subr.mxu0 0.0
    %436 = vmatpush1.msra.mxu0 0.0
    %437 = vmatprep.subr.mxu0 0.0
    %438 = vmatpush1.msra.mxu0 0.0
    %439 = vmatprep.subr.mxu0 0.0
    %440 = vmatpush1.msra.mxu0 0.0
    %441 = vmatprep.subr.mxu0 0.0
    %442 = vmatpush1.msra.mxu0 0.0
    %443 = vmatprep.subr.mxu0 0.0
    %444 = vmatpush1.msra.mxu0 0.0
    %445 = vmatprep.subr.mxu0 0.0
    %446 = vmatpush1.msra.mxu0 0.0
    %447 = vmatprep.subr.mxu0 0.0
    %448 = vmatpush1.msra.mxu0 0.0
    %449 = vmatprep.subr.mxu0 0.0
    %450 = vmatpush1.msra.mxu0 0.0
    %451 = vmatprep.subr.mxu0 0.0
    %452 = vmatpush1.msra.mxu0 0.0
    %453 = vmatprep.subr.mxu0 0.0
    %454 = vmatpush1.msra.mxu0 0.0
    %455 = vmatprep.subr.mxu0 0.0
    %456 = vmatpush1.msra.mxu0 0.0
    %457 = vmatprep.subr.mxu0 0.0
    %458 = vmatpush1.msra.mxu0 0.0
    %459 = vmatprep.subr.mxu0 0.0
    %460 = vmatpush1.msra.mxu0 0.0
    %461 = vmatprep.subr.mxu0 0.0
    %462 = vmatpush1.msra.mxu0 0.0
    %463 = vmatprep.subr.mxu0 0.0
    %464 = vmatpush1.msra.mxu0 0.0
    %465 = vmatprep.subr.mxu0 0.0
    %466 = vmatpush1.msra.mxu0 0.0
    %467 = vmatprep.subr.mxu0 0.0
    %468 = vmatpush1.msra.mxu0 0.0
    %469 = vmatprep.subr.mxu0 0.0
    %470 = vmatpush1.msra.mxu0 0.0
    %471 = vmatprep.subr.mxu0 0.0
    %472 = vmatpush1.msra.mxu0 0.0
    %473 = vmatprep.subr.mxu0 0.0
    %474 = vmatpush1.msra.mxu0 0.0
    %475 = vmatprep.subr.mxu0 0.0
    %476 = vmatpush1.msra.mxu0 0.0
    %477 = vmatprep.subr.mxu0 0.0
    %478 = vmatpush1.msra.mxu0 0.0
    %479 = vmatprep.subr.mxu0 0.0
    %480 = vmatpush1.msra.mxu0 0.0
    %481 = vmatprep.subr.mxu0 0.0
    %482 = vmatpush1.msra.mxu0 0.0
    %483 = vmatprep.mubr.f32.mxu0 0.0
    %484 = vmatmul.mubr.f32.gmra.mrb[0].mxu0 %v417
    %v485 = vpop.f32.mrb[0].mxu0
    %v486 = vadd.f32 0.0, %v485
    %v487 = vpop.f32.mrb[0].mxu0
    %488 = vdwg.mxu0
    %v490 = vrot.slane %v486, 4
    %v492 = vadd.f32 %v190, %v490
    %v493 = vxor.u32 %v492, 2147483648
    %v494 = vmul.f32 %v493, 1.442695
    %v495 = vpow.pop %v494
    %v496 = vadd.f32 %v495, 1.0
    %v497 = vrcp.pop %v496
    %v498 = vmul.f32 1.0, %v497
    %v499 = vmul.f32 %v498, 2.0
    %v500 = vsub.f32 %v499, 1.0
    %v502 = vrot.slane %v401, 6
    %v504 = vmul.f32 %v498, %v502
    %506 = vrot.lane.b32.xlu0 %v500, 64
    %v507 = vpop.permute.xlu0 %506
    %v509 = vmul.f32 %v498, %v507
    %511 = vrot.lane.b32.xlu0 %v509, 32
    %v512 = vpop.permute.xlu0 %511
    %v514 = vadd.f32 %v504, %v512
    %v515 = vtanh.pop %v514
    %517 = vrot.lane.b32.xlu0 %v515, 64
    %v518 = vpop.permute.xlu0 %517
    %v520 = vmul.f32 %v498, %v518
    %522 = vrot.lane.b32.xlu0 %v520, 32
    %v523 = vpop.permute.xlu0 %522
    %vm525 = vcmask 259076
    %526 = vst.msk [vmem:[#allocation2] sm:$0x30] %vm525, %v523
    %v527 = vrot.slane %v520, 4
    %528 = vrot.lane.b32.xlu0 %v527, 32
    %v529 = vpop.permute.xlu0 %528
    %v530 = vsel %vm198, %v529, 0
    %532 = vmatprep.subr.mxu0 0.0
    %533 = vmatpush1.msra.mxu0 %v99
    %534 = vmatprep.subr.mxu0 0.0
    %535 = vmatpush1.msra.mxu0 %v100
    %536 = vmatprep.subr.mxu0 0.0
    %537 = vmatpush1.msra.mxu0 %v101
    %538 = vmatprep.subr.mxu0 0.0
    %539 = vmatpush1.msra.mxu0 %v102
    %540 = vmatprep.subr.mxu0 0.0
    %541 = vmatpush1.msra.mxu0 0.0
    %542 = vmatprep.subr.mxu0 0.0
    %543 = vmatpush1.msra.mxu0 0.0
    %544 = vmatprep.subr.mxu0 0.0
    %545 = vmatpush1.msra.mxu0 0.0
    %546 = vmatprep.subr.mxu0 0.0
    %547 = vmatpush1.msra.mxu0 0.0
    %548 = vmatprep.subr.mxu0 0.0
    %549 = vmatpush1.msra.mxu0 0.0
    %550 = vmatprep.subr.mxu0 0.0
    %551 = vmatpush1.msra.mxu0 0.0
    %552 = vmatprep.subr.mxu0 0.0
    %553 = vmatpush1.msra.mxu0 0.0
    %554 = vmatprep.subr.mxu0 0.0
    %555 = vmatpush1.msra.mxu0 0.0
    %556 = vmatprep.subr.mxu0 0.0
    %557 = vmatpush1.msra.mxu0 0.0
    %558 = vmatprep.subr.mxu0 0.0
    %559 = vmatpush1.msra.mxu0 0.0
    %560 = vmatprep.subr.mxu0 0.0
    %561 = vmatpush1.msra.mxu0 0.0
    %562 = vmatprep.subr.mxu0 0.0
    %563 = vmatpush1.msra.mxu0 0.0
    %564 = vmatprep.subr.mxu0 0.0
    %565 = vmatpush1.msra.mxu0 0.0
    %566 = vmatprep.subr.mxu0 0.0
    %567 = vmatpush1.msra.mxu0 0.0
    %568 = vmatprep.subr.mxu0 0.0
    %569 = vmatpush1.msra.mxu0 0.0
    %570 = vmatprep.subr.mxu0 0.0
    %571 = vmatpush1.msra.mxu0 0.0
    %572 = vmatprep.subr.mxu0 0.0
    %573 = vmatpush1.msra.mxu0 0.0
    %574 = vmatprep.subr.mxu0 0.0
    %575 = vmatpush1.msra.mxu0 0.0
    %576 = vmatprep.subr.mxu0 0.0
    %577 = vmatpush1.msra.mxu0 0.0
    %578 = vmatprep.subr.mxu0 0.0
    %579 = vmatpush1.msra.mxu0 0.0
    %580 = vmatprep.subr.mxu0 0.0
    %581 = vmatpush1.msra.mxu0 0.0
    %582 = vmatprep.subr.mxu0 0.0
    %583 = vmatpush1.msra.mxu0 0.0
    %584 = vmatprep.subr.mxu0 0.0
    %585 = vmatpush1.msra.mxu0 0.0
    %586 = vmatprep.subr.mxu0 0.0
    %587 = vmatpush1.msra.mxu0 0.0
    %588 = vmatprep.subr.mxu0 0.0
    %589 = vmatpush1.msra.mxu0 0.0
    %590 = vmatprep.subr.mxu0 0.0
    %591 = vmatpush1.msra.mxu0 0.0
    %592 = vmatprep.subr.mxu0 0.0
    %593 = vmatpush1.msra.mxu0 0.0
    %594 = vmatprep.subr.mxu0 0.0
    %595 = vmatpush1.msra.mxu0 0.0
    %596 = vmatprep.mubr.f32.mxu0 0.0
    %597 = vmatmul.mubr.f32.gmra.mrb[0].mxu0 %v530
    %v598 = vpop.f32.mrb[0].mxu0
    %v599 = vadd.f32 0.0, %v598
    %v600 = vpop.f32.mrb[0].mxu0
    %601 = vdwg.mxu0
    %v603 = vrot.slane %v599, 2
    %v605 = vadd.f32 %v190, %v603
    %v606 = vxor.u32 %v605, 2147483648
    %v607 = vmul.f32 %v606, 1.442695
    %v608 = vpow.pop %v607
    %v609 = vadd.f32 %v608, 1.0
    %v610 = vrcp.pop %v609
    %v611 = vmul.f32 1.0, %v610
    %v612 = vmul.f32 %v611, 2.0
    %v613 = vsub.f32 %v612, 1.0
    %v615 = vrot.slane %v514, 6
    %v617 = vmul.f32 %v611, %v615
    %619 = vrot.lane.b32.xlu0 %v613, 64
    %v620 = vpop.permute.xlu0 %619
    %v622 = vmul.f32 %v611, %v620
    %624 = vrot.lane.b32.xlu0 %v622, 32
    %v625 = vpop.permute.xlu0 %624
    %v627 = vadd.f32 %v617, %v625
    %v628 = vtanh.pop %v627
    %630 = vrot.lane.b32.xlu0 %v628, 64
    %v631 = vpop.permute.xlu0 %630
    %v633 = vmul.f32 %v611, %v631
    %635 = vrot.lane.b32.xlu0 %v633, 32
    %v636 = vpop.permute.xlu0 %635
    %vm638 = vcmask 261126
    %639 = vst.msk [vmem:[#allocation2] sm:$0xc0] %vm638, %v636
    %v640 = vrot.slane %v633, 6
    %641 = vrot.lane.b32.xlu0 %v640, 32
    %v642 = vpop.permute.xlu0 %641
    %v643 = vsel %vm198, %v642, 0
    %645 = vmatprep.subr.mxu0 0.0
    %646 = vmatpush1.msra.mxu0 %v99
    %647 = vmatprep.subr.mxu0 0.0
    %648 = vmatpush1.msra.mxu0 %v100
    %649 = vmatprep.subr.mxu0 0.0
    %650 = vmatpush1.msra.mxu0 %v101
    %651 = vmatprep.subr.mxu0 0.0
    %652 = vmatpush1.msra.mxu0 %v102
    %653 = vmatprep.subr.mxu0 0.0
    %654 = vmatpush1.msra.mxu0 0.0
    %655 = vmatprep.subr.mxu0 0.0
    %656 = vmatpush1.msra.mxu0 0.0
    %657 = vmatprep.subr.mxu0 0.0
    %658 = vmatpush1.msra.mxu0 0.0
    %659 = vmatprep.subr.mxu0 0.0
    %660 = vmatpush1.msra.mxu0 0.0
    %661 = vmatprep.subr.mxu0 0.0
    %662 = vmatpush1.msra.mxu0 0.0
    %663 = vmatprep.subr.mxu0 0.0
    %664 = vmatpush1.msra.mxu0 0.0
    %665 = vmatprep.subr.mxu0 0.0
    %666 = vmatpush1.msra.mxu0 0.0
    %667 = vmatprep.subr.mxu0 0.0
    %668 = vmatpush1.msra.mxu0 0.0
    %669 = vmatprep.subr.mxu0 0.0
    %670 = vmatpush1.msra.mxu0 0.0
    %671 = vmatprep.subr.mxu0 0.0
    %672 = vmatpush1.msra.mxu0 0.0
    %673 = vmatprep.subr.mxu0 0.0
    %674 = vmatpush1.msra.mxu0 0.0
    %675 = vmatprep.subr.mxu0 0.0
    %676 = vmatpush1.msra.mxu0 0.0
    %677 = vmatprep.subr.mxu0 0.0
    %678 = vmatpush1.msra.mxu0 0.0
    %679 = vmatprep.subr.mxu0 0.0
    %680 = vmatpush1.msra.mxu0 0.0
    %681 = vmatprep.subr.mxu0 0.0
    %682 = vmatpush1.msra.mxu0 0.0
    %683 = vmatprep.subr.mxu0 0.0
    %684 = vmatpush1.msra.mxu0 0.0
    %685 = vmatprep.subr.mxu0 0.0
    %686 = vmatpush1.msra.mxu0 0.0
    %687 = vmatprep.subr.mxu0 0.0
    %688 = vmatpush1.msra.mxu0 0.0
    %689 = vmatprep.subr.mxu0 0.0
    %690 = vmatpush1.msra.mxu0 0.0
    %691 = vmatprep.subr.mxu0 0.0
    %692 = vmatpush1.msra.mxu0 0.0
    %693 = vmatprep.subr.mxu0 0.0
    %694 = vmatpush1.msra.mxu0 0.0
    %695 = vmatprep.subr.mxu0 0.0
    %696 = vmatpush1.msra.mxu0 0.0
    %697 = vmatprep.subr.mxu0 0.0
    %698 = vmatpush1.msra.mxu0 0.0
    %699 = vmatprep.subr.mxu0 0.0
    %700 = vmatpush1.msra.mxu0 0.0
    %701 = vmatprep.subr.mxu0 0.0
    %702 = vmatpush1.msra.mxu0 0.0
    %703 = vmatprep.subr.mxu0 0.0
    %704 = vmatpush1.msra.mxu0 0.0
    %705 = vmatprep.subr.mxu0 0.0
    %706 = vmatpush1.msra.mxu0 0.0
    %707 = vmatprep.subr.mxu0 0.0
    %708 = vmatpush1.msra.mxu0 0.0
    %709 = vmatprep.mubr.f32.mxu0 0.0
    %710 = vmatmul.mubr.f32.gmra.mrb[0].mxu0 %v643
    %v711 = vpop.f32.mrb[0].mxu0
    %v712 = vadd.f32 0.0, %v711
    %v713 = vpop.f32.mrb[0].mxu0
    %714 = vdwg.mxu0
    %v715 = vadd.f32 %v195, %v712
    %v716 = vxor.u32 %v715, 2147483648
    %v717 = vmul.f32 %v716, 1.442695
    %v718 = vpow.pop %v717
    %v719 = vadd.f32 %v718, 1.0
    %v720 = vrcp.pop %v719
    %v721 = vmul.f32 1.0, %v720
    %v722 = vmul.f32 %v721, 2.0
    %v723 = vsub.f32 %v722, 1.0
    %v725 = vrot.slane %v627, 6
    %v727 = vmul.f32 %v721, %v725
    %729 = vrot.lane.b32.xlu0 %v723, 64
    %v730 = vpop.permute.xlu0 %729
    %v732 = vmul.f32 %v721, %v730
    %734 = vrot.lane.b32.xlu0 %v732, 32
    %v735 = vpop.permute.xlu0 %734
    %v737 = vadd.f32 %v727, %v735
    %v738 = vtanh.pop %v737
    %740 = vrot.lane.b32.xlu0 %v738, 64
    %v741 = vpop.permute.xlu0 %740
    %v743 = vmul.f32 %v721, %v741
    %745 = vrot.lane.b32.xlu0 %v743, 32
    %v746 = vpop.permute.xlu0 %745
    %748 = vst.msk [vmem:[#allocation2 + $0x8] sm:$0x3] %vm302, %v746
    %v749 = vsel %vm198, %v746, 0
    %751 = vmatprep.subr.mxu0 0.0
    %752 = vmatpush1.msra.mxu0 %v99
    %753 = vmatprep.subr.mxu0 0.0
    %754 = vmatpush1.msra.mxu0 %v100
    %755 = vmatprep.subr.mxu0 0.0
    %756 = vmatpush1.msra.mxu0 %v101
    %757 = vmatprep.subr.mxu0 0.0
    %758 = vmatpush1.msra.mxu0 %v102
    %759 = vmatprep.subr.mxu0 0.0
    %760 = vmatpush1.msra.mxu0 0.0
    %761 = vmatprep.subr.mxu0 0.0
    %762 = vmatpush1.msra.mxu0 0.0
    %763 = vmatprep.subr.mxu0 0.0
    %764 = vmatpush1.msra.mxu0 0.0
    %765 = vmatprep.subr.mxu0 0.0
    %766 = vmatpush1.msra.mxu0 0.0
    %767 = vmatprep.subr.mxu0 0.0
    %768 = vmatpush1.msra.mxu0 0.0
    %769 = vmatprep.subr.mxu0 0.0
    %770 = vmatpush1.msra.mxu0 0.0
    %771 = vmatprep.subr.mxu0 0.0
    %772 = vmatpush1.msra.mxu0 0.0
    %773 = vmatprep.subr.mxu0 0.0
    %774 = vmatpush1.msra.mxu0 0.0
    %775 = vmatprep.subr.mxu0 0.0
    %776 = vmatpush1.msra.mxu0 0.0
    %777 = vmatprep.subr.mxu0 0.0
    %778 = vmatpush1.msra.mxu0 0.0
    %779 = vmatprep.subr.mxu0 0.0
    %780 = vmatpush1.msra.mxu0 0.0
    %781 = vmatprep.subr.mxu0 0.0
    %782 = vmatpush1.msra.mxu0 0.0
    %783 = vmatprep.subr.mxu0 0.0
    %784 = vmatpush1.msra.mxu0 0.0
    %785 = vmatprep.subr.mxu0 0.0
    %786 = vmatpush1.msra.mxu0 0.0
    %787 = vmatprep.subr.mxu0 0.0
    %788 = vmatpush1.msra.mxu0 0.0
    %789 = vmatprep.subr.mxu0 0.0
    %790 = vmatpush1.msra.mxu0 0.0
    %791 = vmatprep.subr.mxu0 0.0
    %792 = vmatpush1.msra.mxu0 0.0
    %793 = vmatprep.subr.mxu0 0.0
    %794 = vmatpush1.msra.mxu0 0.0
    %795 = vmatprep.subr.mxu0 0.0
    %796 = vmatpush1.msra.mxu0 0.0
    %797 = vmatprep.subr.mxu0 0.0
    %798 = vmatpush1.msra.mxu0 0.0
    %799 = vmatprep.subr.mxu0 0.0
    %800 = vmatpush1.msra.mxu0 0.0
    %801 = vmatprep.subr.mxu0 0.0
    %802 = vmatpush1.msra.mxu0 0.0
    %803 = vmatprep.subr.mxu0 0.0
    %804 = vmatpush1.msra.mxu0 0.0
    %805 = vmatprep.subr.mxu0 0.0
    %806 = vmatpush1.msra.mxu0 0.0
    %807 = vmatprep.subr.mxu0 0.0
    %808 = vmatpush1.msra.mxu0 0.0
    %809 = vmatprep.subr.mxu0 0.0
    %810 = vmatpush1.msra.mxu0 0.0
    %811 = vmatprep.subr.mxu0 0.0
    %812 = vmatpush1.msra.mxu0 0.0
    %813 = vmatprep.subr.mxu0 0.0
    %814 = vmatpush1.msra.mxu0 0.0
    %815 = vmatprep.mubr.f32.mxu0 0.0
    %816 = vmatmul.mubr.f32.gmra.mrb[0].mxu0 %v749
    %v817 = vpop.f32.mrb[0].mxu0
    %v818 = vadd.f32 0.0, %v817
    %v819 = vpop.f32.mrb[0].mxu0
    %820 = vdwg.mxu0
    %v822 = vrot.slane %v818, 6
    %v824 = vadd.f32 %v195, %v822
    %v825 = vxor.u32 %v824, 2147483648
    %v826 = vmul.f32 %v825, 1.442695
    %v827 = vpow.pop %v826
    %v828 = vadd.f32 %v827, 1.0
    %v829 = vrcp.pop %v828
    %v830 = vmul.f32 1.0, %v829
    %v831 = vmul.f32 %v830, 2.0
    %v832 = vsub.f32 %v831, 1.0
    %v834 = vrot.slane %v737, 6
    %v836 = vmul.f32 %v830, %v834
    %838 = vrot.lane.b32.xlu0 %v832, 64
    %v839 = vpop.permute.xlu0 %838
    %v841 = vmul.f32 %v830, %v839
    %843 = vrot.lane.b32.xlu0 %v841, 32
    %v844 = vpop.permute.xlu0 %843
    %v846 = vadd.f32 %v836, %v844
    %v847 = vtanh.pop %v846
    %849 = vrot.lane.b32.xlu0 %v847, 64
    %v850 = vpop.permute.xlu0 %849
    %v852 = vmul.f32 %v830, %v850
    %854 = vrot.lane.b32.xlu0 %v852, 32
    %v855 = vpop.permute.xlu0 %854
    %857 = vst.msk [vmem:[#allocation2 + $0x8] sm:$0xc] %vm412, %v855
    %v858 = vrot.slane %v852, 2
    %859 = vrot.lane.b32.xlu0 %v858, 32
    %v860 = vpop.permute.xlu0 %859
    %v861 = vsel %vm198, %v860, 0
    %863 = vmatprep.subr.mxu0 0.0
    %864 = vmatpush1.msra.mxu0 %v99
    %865 = vmatprep.subr.mxu0 0.0
    %866 = vmatpush1.msra.mxu0 %v100
    %867 = vmatprep.subr.mxu0 0.0
    %868 = vmatpush1.msra.mxu0 %v101
    %869 = vmatprep.subr.mxu0 0.0
    %870 = vmatpush1.msra.mxu0 %v102
    %871 = vmatprep.subr.mxu0 0.0
    %872 = vmatpush1.msra.mxu0 0.0
    %873 = vmatprep.subr.mxu0 0.0
    %874 = vmatpush1.msra.mxu0 0.0
    %875 = vmatprep.subr.mxu0 0.0
    %876 = vmatpush1.msra.mxu0 0.0
    %877 = vmatprep.subr.mxu0 0.0
    %878 = vmatpush1.msra.mxu0 0.0
    %879 = vmatprep.subr.mxu0 0.0
    %880 = vmatpush1.msra.mxu0 0.0
    %881 = vmatprep.subr.mxu0 0.0
    %882 = vmatpush1.msra.mxu0 0.0
    %883 = vmatprep.subr.mxu0 0.0
    %884 = vmatpush1.msra.mxu0 0.0
    %885 = vmatprep.subr.mxu0 0.0
    %886 = vmatpush1.msra.mxu0 0.0
    %887 = vmatprep.subr.mxu0 0.0
    %888 = vmatpush1.msra.mxu0 0.0
    %889 = vmatprep.subr.mxu0 0.0
    %890 = vmatpush1.msra.mxu0 0.0
    %891 = vmatprep.subr.mxu0 0.0
    %892 = vmatpush1.msra.mxu0 0.0
    %893 = vmatprep.subr.mxu0 0.0
    %894 = vmatpush1.msra.mxu0 0.0
    %895 = vmatprep.subr.mxu0 0.0
    %896 = vmatpush1.msra.mxu0 0.0
    %897 = vmatprep.subr.mxu0 0.0
    %898 = vmatpush1.msra.mxu0 0.0
    %899 = vmatprep.subr.mxu0 0.0
    %900 = vmatpush1.msra.mxu0 0.0
    %901 = vmatprep.subr.mxu0 0.0
    %902 = vmatpush1.msra.mxu0 0.0
    %903 = vmatprep.subr.mxu0 0.0
    %904 = vmatpush1.msra.mxu0 0.0
    %905 = vmatprep.subr.mxu0 0.0
    %906 = vmatpush1.msra.mxu0 0.0
    %907 = vmatprep.subr.mxu0 0.0
    %908 = vmatpush1.msra.mxu0 0.0
    %909 = vmatprep.subr.mxu0 0.0
    %910 = vmatpush1.msra.mxu0 0.0
    %911 = vmatprep.subr.mxu0 0.0
    %912 = vmatpush1.msra.mxu0 0.0
    %913 = vmatprep.subr.mxu0 0.0
    %914 = vmatpush1.msra.mxu0 0.0
    %915 = vmatprep.subr.mxu0 0.0
    %916 = vmatpush1.msra.mxu0 0.0
    %917 = vmatprep.subr.mxu0 0.0
    %918 = vmatpush1.msra.mxu0 0.0
    %919 = vmatprep.subr.mxu0 0.0
    %920 = vmatpush1.msra.mxu0 0.0
    %921 = vmatprep.subr.mxu0 0.0
    %922 = vmatpush1.msra.mxu0 0.0
    %923 = vmatprep.subr.mxu0 0.0
    %924 = vmatpush1.msra.mxu0 0.0
    %925 = vmatprep.subr.mxu0 0.0
    %926 = vmatpush1.msra.mxu0 0.0
    %927 = vmatprep.mubr.f32.mxu0 0.0
    %928 = vmatmul.mubr.f32.gmra.mrb[0].mxu0 %v861
    %v929 = vpop.f32.mrb[0].mxu0
    %v930 = vadd.f32 0.0, %v929
    %v931 = vpop.f32.mrb[0].mxu0
    %932 = vdwg.mxu0
    %v934 = vrot.slane %v930, 4
    %v936 = vadd.f32 %v195, %v934
    %v937 = vxor.u32 %v936, 2147483648
    %v938 = vmul.f32 %v937, 1.442695
    %v939 = vpow.pop %v938
    %v940 = vadd.f32 %v939, 1.0
    %v941 = vrcp.pop %v940
    %v942 = vmul.f32 1.0, %v941
    %v943 = vmul.f32 %v942, 2.0
    %v944 = vsub.f32 %v943, 1.0
    %v946 = vrot.slane %v846, 6
    %v948 = vmul.f32 %v942, %v946
    %950 = vrot.lane.b32.xlu0 %v944, 64
    %v951 = vpop.permute.xlu0 %950
    %v953 = vmul.f32 %v942, %v951
    %955 = vrot.lane.b32.xlu0 %v953, 32
    %v956 = vpop.permute.xlu0 %955
    %v958 = vadd.f32 %v948, %v956
    %v959 = vtanh.pop %v958
    %961 = vrot.lane.b32.xlu0 %v959, 64
    %v962 = vpop.permute.xlu0 %961
    %v964 = vmul.f32 %v942, %v962
    %966 = vrot.lane.b32.xlu0 %v964, 32
    %v967 = vpop.permute.xlu0 %966
    %969 = vst.msk [vmem:[#allocation2 + $0x8] sm:$0x30] %vm525, %v967
    %v970 = vrot.slane %v964, 4
    %971 = vrot.lane.b32.xlu0 %v970, 32
    %v972 = vpop.permute.xlu0 %971
    %v973 = vsel %vm198, %v972, 0
    %975 = vmatprep.subr.mxu0 0.0
    %976 = vmatpush1.msra.mxu0 %v99
    %977 = vmatprep.subr.mxu0 0.0
    %978 = vmatpush1.msra.mxu0 %v100
    %979 = vmatprep.subr.mxu0 0.0
    %980 = vmatpush1.msra.mxu0 %v101
    %981 = vmatprep.subr.mxu0 0.0
    %982 = vmatpush1.msra.mxu0 %v102
    %983 = vmatprep.subr.mxu0 0.0
    %984 = vmatpush1.msra.mxu0 0.0
    %985 = vmatprep.subr.mxu0 0.0
    %986 = vmatpush1.msra.mxu0 0.0
    %987 = vmatprep.subr.mxu0 0.0
    %988 = vmatpush1.msra.mxu0 0.0
    %989 = vmatprep.subr.mxu0 0.0
    %990 = vmatpush1.msra.mxu0 0.0
    %991 = vmatprep.subr.mxu0 0.0
    %992 = vmatpush1.msra.mxu0 0.0
    %993 = vmatprep.subr.mxu0 0.0
    %994 = vmatpush1.msra.mxu0 0.0
    %995 = vmatprep.subr.mxu0 0.0
    %996 = vmatpush1.msra.mxu0 0.0
    %997 = vmatprep.subr.mxu0 0.0
    %998 = vmatpush1.msra.mxu0 0.0
    %999 = vmatprep.subr.mxu0 0.0
    %1000 = vmatpush1.msra.mxu0 0.0
    %1001 = vmatprep.subr.mxu0 0.0
    %1002 = vmatpush1.msra.mxu0 0.0
    %1003 = vmatprep.subr.mxu0 0.0
    %1004 = vmatpush1.msra.mxu0 0.0
    %1005 = vmatprep.subr.mxu0 0.0
    %1006 = vmatpush1.msra.mxu0 0.0
    %1007 = vmatprep.subr.mxu0 0.0
    %1008 = vmatpush1.msra.mxu0 0.0
    %1009 = vmatprep.subr.mxu0 0.0
    %1010 = vmatpush1.msra.mxu0 0.0
    %1011 = vmatprep.subr.mxu0 0.0
    %1012 = vmatpush1.msra.mxu0 0.0
    %1013 = vmatprep.subr.mxu0 0.0
    %1014 = vmatpush1.msra.mxu0 0.0
    %1015 = vmatprep.subr.mxu0 0.0
    %1016 = vmatpush1.msra.mxu0 0.0
    %1017 = vmatprep.subr.mxu0 0.0
    %1018 = vmatpush1.msra.mxu0 0.0
    %1019 = vmatprep.subr.mxu0 0.0
    %1020 = vmatpush1.msra.mxu0 0.0
    %1021 = vmatprep.subr.mxu0 0.0
    %1022 = vmatpush1.msra.mxu0 0.0
    %1023 = vmatprep.subr.mxu0 0.0
    %1024 = vmatpush1.msra.mxu0 0.0
    %1025 = vmatprep.subr.mxu0 0.0
    %1026 = vmatpush1.msra.mxu0 0.0
    %1027 = vmatprep.subr.mxu0 0.0
    %1028 = vmatpush1.msra.mxu0 0.0
    %1029 = vmatprep.subr.mxu0 0.0
    %1030 = vmatpush1.msra.mxu0 0.0
    %1031 = vmatprep.subr.mxu0 0.0
    %1032 = vmatpush1.msra.mxu0 0.0
    %1033 = vmatprep.subr.mxu0 0.0
    %1034 = vmatpush1.msra.mxu0 0.0
    %1035 = vmatprep.subr.mxu0 0.0
    %1036 = vmatpush1.msra.mxu0 0.0
    %1037 = vmatprep.subr.mxu0 0.0
    %1038 = vmatpush1.msra.mxu0 0.0
    %1039 = vmatprep.mubr.f32.mxu0 0.0
    %1040 = vmatmul.mubr.f32.gmra.mrb[0].mxu0 %v973
    %v1041 = vpop.f32.mrb[0].mxu0
    %v1042 = vadd.f32 0.0, %v1041
    %v1043 = vpop.f32.mrb[0].mxu0
    %1044 = vdwg.mxu0
    %v1046 = vrot.slane %v1042, 2
    %v1048 = vadd.f32 %v195, %v1046
    %v1049 = vxor.u32 %v1048, 2147483648
    %v1050 = vmul.f32 %v1049, 1.442695
    %v1051 = vpow.pop %v1050
    %v1052 = vadd.f32 %v1051, 1.0
    %v1053 = vrcp.pop %v1052
    %v1054 = vmul.f32 1.0, %v1053
    %v1055 = vmul.f32 %v1054, 2.0
    %v1056 = vsub.f32 %v1055, 1.0
    %v1058 = vrot.slane %v958, 6
    %v1060 = vmul.f32 %v1054, %v1058
    %1062 = vrot.lane.b32.xlu0 %v1056, 64
    %v1063 = vpop.permute.xlu0 %1062
    %v1065 = vmul.f32 %v1054, %v1063
    %1067 = vrot.lane.b32.xlu0 %v1065, 32
    %v1068 = vpop.permute.xlu0 %1067
    %v1070 = vadd.f32 %v1060, %v1068
    %v1071 = vtanh.pop %v1070
    %1073 = vrot.lane.b32.xlu0 %v1071, 64
    %v1074 = vpop.permute.xlu0 %1073
    %v1076 = vmul.f32 %v1054, %v1074
    %1078 = vrot.lane.b32.xlu0 %v1076, 32
    %v1079 = vpop.permute.xlu0 %1078
    %1081 = vst.msk [vmem:[#allocation2 + $0x8] sm:$0xc0] %vm638, %v1079
    %v1082 = vld [vmem:[%s4] sm:$0xff]
    %v1083 = vld [vmem:[%s4 + $0x8] sm:$0xff]
    %v1084 = vld [vmem:[%s4 + $0x10] sm:$0xff]
    %v1085 = vld [vmem:[%s4 + $0x18] sm:$0xff]
    %v1086 = vld [vmem:[#allocation6] sm:$0xff]
    %v1087 = vld [vmem:[#allocation6 + $0x8] sm:$0xff]
    %v1088 = vld [vmem:[#allocation6 + $0x10] sm:$0xff]
    %v1089 = vld [vmem:[#allocation6 + $0x18] sm:$0xff]
    %v1090 = vld [vmem:[%s6] sm:$0x1]
    %v1091 = vld [vmem:[#allocation2] sm:$0xff]
    %v1092 = vld [vmem:[#allocation2 + $0x8] sm:$0xff]
    %v1094 = vlaneseq
    %v1095 = vshrl.u32 %v1094, 7
    %v1096 = vsub.s32 0, %v1095
    %v1097 = vrot.slane %v1090, %v1096
    %v1100 = vsel %vm198, %v1091, 0
    %v1103 = vsel %vm198, %v1092, 0
    %1105 = vmatprep.subr.mxu0 0.0
    %1106 = vmatpush1.msra.mxu0 %v1082
    %1107 = vmatprep.subr.mxu0 0.0
    %1108 = vmatpush1.msra.mxu0 %v1083
    %1109 = vmatprep.subr.mxu0 0.0
    %1110 = vmatpush1.msra.mxu0 %v1084
    %1111 = vmatprep.subr.mxu0 0.0
    %1112 = vmatpush1.msra.mxu0 %v1085
    %1113 = vmatprep.subr.mxu0 0.0
    %1114 = vmatpush1.msra.mxu0 0.0
    %1115 = vmatprep.subr.mxu0 0.0
    %1116 = vmatpush1.msra.mxu0 0.0
    %1117 = vmatprep.subr.mxu0 0.0
    %1118 = vmatpush1.msra.mxu0 0.0
    %1119 = vmatprep.subr.mxu0 0.0
    %1120 = vmatpush1.msra.mxu0 0.0
    %1121 = vmatprep.subr.mxu0 0.0
    %1122 = vmatpush1.msra.mxu0 0.0
    %1123 = vmatprep.subr.mxu0 0.0
    %1124 = vmatpush1.msra.mxu0 0.0
    %1125 = vmatprep.subr.mxu0 0.0
    %1126 = vmatpush1.msra.mxu0 0.0
    %1127 = vmatprep.subr.mxu0 0.0
    %1128 = vmatpush1.msra.mxu0 0.0
    %1129 = vmatprep.subr.mxu0 0.0
    %1130 = vmatpush1.msra.mxu0 0.0
    %1131 = vmatprep.subr.mxu0 0.0
    %1132 = vmatpush1.msra.mxu0 0.0
    %1133 = vmatprep.subr.mxu0 0.0
    %1134 = vmatpush1.msra.mxu0 0.0
    %1135 = vmatprep.subr.mxu0 0.0
    %1136 = vmatpush1.msra.mxu0 0.0
    %1137 = vmatprep.subr.mxu0 0.0
    %1138 = vmatpush1.msra.mxu0 0.0
    %1139 = vmatprep.subr.mxu0 0.0
    %1140 = vmatpush1.msra.mxu0 0.0
    %1141 = vmatprep.subr.mxu0 0.0
    %1142 = vmatpush1.msra.mxu0 0.0
    %1143 = vmatprep.subr.mxu0 0.0
    %1144 = vmatpush1.msra.mxu0 0.0
    %1145 = vmatprep.subr.mxu0 0.0
    %1146 = vmatpush1.msra.mxu0 0.0
    %1147 = vmatprep.subr.mxu0 0.0
    %1148 = vmatpush1.msra.mxu0 0.0
    %1149 = vmatprep.subr.mxu0 0.0
    %1150 = vmatpush1.msra.mxu0 0.0
    %1151 = vmatprep.subr.mxu0 0.0
    %1152 = vmatpush1.msra.mxu0 0.0
    %1153 = vmatprep.subr.mxu0 0.0
    %1154 = vmatpush1.msra.mxu0 0.0
    %1155 = vmatprep.subr.mxu0 0.0
    %1156 = vmatpush1.msra.mxu0 0.0
    %1157 = vmatprep.subr.mxu0 0.0
    %1158 = vmatpush1.msra.mxu0 0.0
    %1159 = vmatprep.subr.mxu0 0.0
    %1160 = vmatpush1.msra.mxu0 0.0
    %1161 = vmatprep.subr.mxu0 0.0
    %1162 = vmatpush1.msra.mxu0 0.0
    %1163 = vmatprep.subr.mxu0 0.0
    %1164 = vmatpush1.msra.mxu0 0.0
    %1165 = vmatprep.subr.mxu0 0.0
    %1166 = vmatpush1.msra.mxu0 0.0
    %1167 = vmatprep.subr.mxu0 0.0
    %1168 = vmatpush1.msra.mxu0 0.0
    %1169 = vmatprep.mubr.f32.mxu0 0.0
    %1170 = vmatmul.mubr.f32.gmra.mrb[0].mxu0 %v1100
    %v1171 = vpop.f32.mrb[0].mxu0
    %v1172 = vadd.f32 %v1097, %v1171
    %v1173 = vpop.f32.mrb[0].mxu0
    %1174 = vmatprep.mubr.f32.mxu0 0.0
    %1175 = vmatmul.mubr.f32.gmra.mrb[0].mxu0 %v1103
    %v1176 = vpop.f32.mrb[0].mxu0
    %v1177 = vadd.f32 %v1097, %v1176
    %v1178 = vpop.f32.mrb[0].mxu0
    %1179 = vdwg.mxu0
    %1180 = vmatprep.subr.mxu0 0.0
    %1181 = vmatpush1.msra.mxu0 %v1086
    %1182 = vmatprep.subr.mxu0 0.0
    %1183 = vmatpush1.msra.mxu0 %v1087
    %1184 = vmatprep.subr.mxu0 0.0
    %1185 = vmatpush1.msra.mxu0 %v1088
    %1186 = vmatprep.subr.mxu0 0.0
    %1187 = vmatpush1.msra.mxu0 %v1089
    %1188 = vmatprep.subr.mxu0 0.0
    %1189 = vmatpush1.msra.mxu0 0.0
    %1190 = vmatprep.subr.mxu0 0.0
    %1191 = vmatpush1.msra.mxu0 0.0
    %1192 = vmatprep.subr.mxu0 0.0
    %1193 = vmatpush1.msra.mxu0 0.0
    %1194 = vmatprep.subr.mxu0 0.0
    %1195 = vmatpush1.msra.mxu0 0.0
    %1196 = vmatprep.subr.mxu0 0.0
    %1197 = vmatpush1.msra.mxu0 0.0
    %1198 = vmatprep.subr.mxu0 0.0
    %1199 = vmatpush1.msra.mxu0 0.0
    %1200 = vmatprep.subr.mxu0 0.0
    %1201 = vmatpush1.msra.mxu0 0.0
    %1202 = vmatprep.subr.mxu0 0.0
    %1203 = vmatpush1.msra.mxu0 0.0
    %1204 = vmatprep.subr.mxu0 0.0
    %1205 = vmatpush1.msra.mxu0 0.0
    %1206 = vmatprep.subr.mxu0 0.0
    %1207 = vmatpush1.msra.mxu0 0.0
    %1208 = vmatprep.subr.mxu0 0.0
    %1209 = vmatpush1.msra.mxu0 0.0
    %1210 = vmatprep.subr.mxu0 0.0
    %1211 = vmatpush1.msra.mxu0 0.0
    %1212 = vmatprep.subr.mxu0 0.0
    %1213 = vmatpush1.msra.mxu0 0.0
    %1214 = vmatprep.subr.mxu0 0.0
    %1215 = vmatpush1.msra.mxu0 0.0
    %1216 = vmatprep.subr.mxu0 0.0
    %1217 = vmatpush1.msra.mxu0 0.0
    %1218 = vmatprep.subr.mxu0 0.0
    %1219 = vmatpush1.msra.mxu0 0.0
    %1220 = vmatprep.subr.mxu0 0.0
    %1221 = vmatpush1.msra.mxu0 0.0
    %1222 = vmatprep.subr.mxu0 0.0
    %1223 = vmatpush1.msra.mxu0 0.0
    %1224 = vmatprep.subr.mxu0 0.0
    %1225 = vmatpush1.msra.mxu0 0.0
    %1226 = vmatprep.subr.mxu0 0.0
    %1227 = vmatpush1.msra.mxu0 0.0
    %1228 = vmatprep.subr.mxu0 0.0
    %1229 = vmatpush1.msra.mxu0 0.0
    %1230 = vmatprep.subr.mxu0 0.0
    %1231 = vmatpush1.msra.mxu0 0.0
    %1232 = vmatprep.subr.mxu0 0.0
    %1233 = vmatpush1.msra.mxu0 0.0
    %1234 = vmatprep.subr.mxu0 0.0
    %1235 = vmatpush1.msra.mxu0 0.0
    %1236 = vmatprep.subr.mxu0 0.0
    %1237 = vmatpush1.msra.mxu0 0.0
    %1238 = vmatprep.subr.mxu0 0.0
    %1239 = vmatpush1.msra.mxu0 0.0
    %1240 = vmatprep.subr.mxu0 0.0
    %1241 = vmatpush1.msra.mxu0 0.0
    %1242 = vmatprep.subr.mxu0 0.0
    %1243 = vmatpush1.msra.mxu0 0.0
    %1244 = vmatprep.mubr.f32.mxu0 0.0
    %1245 = vmatmul.mubr.f32.gmra.mrb[0].mxu0 %v200
    %v1246 = vpop.f32.mrb[0].mxu0
    %v1247 = vadd.f32 0.0, %v1246
    %v1248 = vpop.f32.mrb[0].mxu0
    %1249 = vdwg.mxu0
    %v1250 = vadd.f32 %v1172, %v1247
    %v1251 = vxor.u32 %v1250, 2147483648
    %v1252 = vmul.f32 %v1251, 1.442695
    %v1253 = vpow.pop %v1252
    %v1254 = vadd.f32 %v1253, 1.0
    %v1255 = vrcp.pop %v1254
    %v1256 = vmul.f32 1.0, %v1255
    %v1257 = vmul.f32 %v1256, 2.0
    %v1258 = vsub.f32 %v1257, 1.0
    %v1259 = vmul.f32 %v1256, 0.0
    %1261 = vrot.lane.b32.xlu0 %v1258, 64
    %v1262 = vpop.permute.xlu0 %1261
    %v1264 = vmul.f32 %v1256, %v1262
    %1266 = vrot.lane.b32.xlu0 %v1264, 32
    %v1267 = vpop.permute.xlu0 %1266
    %v1269 = vadd.f32 %v1259, %v1267
    %v1270 = vtanh.pop %v1269
    %1272 = vrot.lane.b32.xlu0 %v1270, 64
    %v1273 = vpop.permute.xlu0 %1272
    %v1275 = vmul.f32 %v1256, %v1273
    %1277 = vrot.lane.b32.xlu0 %v1275, 32
    %v1278 = vpop.permute.xlu0 %1277
    %1280 = vst.msk [vmem:[#allocation2] sm:$0x3] %vm302, %v1278
    %v1281 = vsel %vm198, %v1278, 0
    %1283 = vmatprep.subr.mxu0 0.0
    %1284 = vmatpush1.msra.mxu0 %v1086
    %1285 = vmatprep.subr.mxu0 0.0
    %1286 = vmatpush1.msra.mxu0 %v1087
    %1287 = vmatprep.subr.mxu0 0.0
    %1288 = vmatpush1.msra.mxu0 %v1088
    %1289 = vmatprep.subr.mxu0 0.0
    %1290 = vmatpush1.msra.mxu0 %v1089
    %1291 = vmatprep.subr.mxu0 0.0
    %1292 = vmatpush1.msra.mxu0 0.0
    %1293 = vmatprep.subr.mxu0 0.0
    %1294 = vmatpush1.msra.mxu0 0.0
    %1295 = vmatprep.subr.mxu0 0.0
    %1296 = vmatpush1.msra.mxu0 0.0
    %1297 = vmatprep.subr.mxu0 0.0
    %1298 = vmatpush1.msra.mxu0 0.0
    %1299 = vmatprep.subr.mxu0 0.0
    %1300 = vmatpush1.msra.mxu0 0.0
    %1301 = vmatprep.subr.mxu0 0.0
    %1302 = vmatpush1.msra.mxu0 0.0
    %1303 = vmatprep.subr.mxu0 0.0
    %1304 = vmatpush1.msra.mxu0 0.0
    %1305 = vmatprep.subr.mxu0 0.0
    %1306 = vmatpush1.msra.mxu0 0.0
    %1307 = vmatprep.subr.mxu0 0.0
    %1308 = vmatpush1.msra.mxu0 0.0
    %1309 = vmatprep.subr.mxu0 0.0
    %1310 = vmatpush1.msra.mxu0 0.0
    %1311 = vmatprep.subr.mxu0 0.0
    %1312 = vmatpush1.msra.mxu0 0.0
    %1313 = vmatprep.subr.mxu0 0.0
    %1314 = vmatpush1.msra.mxu0 0.0
    %1315 = vmatprep.subr.mxu0 0.0
    %1316 = vmatpush1.msra.mxu0 0.0
    %1317 = vmatprep.subr.mxu0 0.0
    %1318 = vmatpush1.msra.mxu0 0.0
    %1319 = vmatprep.subr.mxu0 0.0
    %1320 = vmatpush1.msra.mxu0 0.0
    %1321 = vmatprep.subr.mxu0 0.0
    %1322 = vmatpush1.msra.mxu0 0.0
    %1323 = vmatprep.subr.mxu0 0.0
    %1324 = vmatpush1.msra.mxu0 0.0
    %1325 = vmatprep.subr.mxu0 0.0
    %1326 = vmatpush1.msra.mxu0 0.0
    %1327 = vmatprep.subr.mxu0 0.0
    %1328 = vmatpush1.msra.mxu0 0.0
    %1329 = vmatprep.subr.mxu0 0.0
    %1330 = vmatpush1.msra.mxu0 0.0
    %1331 = vmatprep.subr.mxu0 0.0
    %1332 = vmatpush1.msra.mxu0 0.0
    %1333 = vmatprep.subr.mxu0 0.0
    %1334 = vmatpush1.msra.mxu0 0.0
    %1335 = vmatprep.subr.mxu0 0.0
    %1336 = vmatpush1.msra.mxu0 0.0
    %1337 = vmatprep.subr.mxu0 0.0
    %1338 = vmatpush1.msra.mxu0 0.0
    %1339 = vmatprep.subr.mxu0 0.0
    %1340 = vmatpush1.msra.mxu0 0.0
    %1341 = vmatprep.subr.mxu0 0.0
    %1342 = vmatpush1.msra.mxu0 0.0
    %1343 = vmatprep.subr.mxu0 0.0
    %1344 = vmatpush1.msra.mxu0 0.0
    %1345 = vmatprep.subr.mxu0 0.0
    %1346 = vmatpush1.msra.mxu0 0.0
    %1347 = vmatprep.mubr.f32.mxu0 0.0
    %1348 = vmatmul.mubr.f32.gmra.mrb[0].mxu0 %v1281
    %v1349 = vpop.f32.mrb[0].mxu0
    %v1350 = vadd.f32 0.0, %v1349
    %v1351 = vpop.f32.mrb[0].mxu0
    %1352 = vdwg.mxu0
    %v1354 = vrot.slane %v1350, 6
    %v1356 = vadd.f32 %v1172, %v1354
    %v1357 = vxor.u32 %v1356, 2147483648
    %v1358 = vmul.f32 %v1357, 1.442695
    %v1359 = vpow.pop %v1358
    %v1360 = vadd.f32 %v1359, 1.0
    %v1361 = vrcp.pop %v1360
    %v1362 = vmul.f32 1.0, %v1361
    %v1363 = vmul.f32 %v1362, 2.0
    %v1364 = vsub.f32 %v1363, 1.0
    %v1366 = vrot.slane %v1269, 6
    %v1368 = vmul.f32 %v1362, %v1366
    %1370 = vrot.lane.b32.xlu0 %v1364, 64
    %v1371 = vpop.permute.xlu0 %1370
    %v1373 = vmul.f32 %v1362, %v1371
    %1375 = vrot.lane.b32.xlu0 %v1373, 32
    %v1376 = vpop.permute.xlu0 %1375
    %v1378 = vadd.f32 %v1368, %v1376
    %v1379 = vtanh.pop %v1378
    %1381 = vrot.lane.b32.xlu0 %v1379, 64
    %v1382 = vpop.permute.xlu0 %1381
    %v1384 = vmul.f32 %v1362, %v1382
    %1386 = vrot.lane.b32.xlu0 %v1384, 32
    %v1387 = vpop.permute.xlu0 %1386
    %1389 = vst.msk [vmem:[#allocation2] sm:$0xc] %vm412, %v1387
    %v1390 = vrot.slane %v1384, 2
    %1391 = vrot.lane.b32.xlu0 %v1390, 32
    %v1392 = vpop.permute.xlu0 %1391
    %v1393 = vsel %vm198, %v1392, 0
    %1395 = vmatprep.subr.mxu0 0.0
    %1396 = vmatpush1.msra.mxu0 %v1086
    %1397 = vmatprep.subr.mxu0 0.0
    %1398 = vmatpush1.msra.mxu0 %v1087
    %1399 = vmatprep.subr.mxu0 0.0
    %1400 = vmatpush1.msra.mxu0 %v1088
    %1401 = vmatprep.subr.mxu0 0.0
    %1402 = vmatpush1.msra.mxu0 %v1089
    %1403 = vmatprep.subr.mxu0 0.0
    %1404 = vmatpush1.msra.mxu0 0.0
    %1405 = vmatprep.subr.mxu0 0.0
    %1406 = vmatpush1.msra.mxu0 0.0
    %1407 = vmatprep.subr.mxu0 0.0
    %1408 = vmatpush1.msra.mxu0 0.0
    %1409 = vmatprep.subr.mxu0 0.0
    %1410 = vmatpush1.msra.mxu0 0.0
    %1411 = vmatprep.subr.mxu0 0.0
    %1412 = vmatpush1.msra.mxu0 0.0
    %1413 = vmatprep.subr.mxu0 0.0
    %1414 = vmatpush1.msra.mxu0 0.0
    %1415 = vmatprep.subr.mxu0 0.0
    %1416 = vmatpush1.msra.mxu0 0.0
    %1417 = vmatprep.subr.mxu0 0.0
    %1418 = vmatpush1.msra.mxu0 0.0
    %1419 = vmatprep.subr.mxu0 0.0
    %1420 = vmatpush1.msra.mxu0 0.0
    %1421 = vmatprep.subr.mxu0 0.0
    %1422 = vmatpush1.msra.mxu0 0.0
    %1423 = vmatprep.subr.mxu0 0.0
    %1424 = vmatpush1.msra.mxu0 0.0
    %1425 = vmatprep.subr.mxu0 0.0
    %1426 = vmatpush1.msra.mxu0 0.0
    %1427 = vmatprep.subr.mxu0 0.0
    %1428 = vmatpush1.msra.mxu0 0.0
    %1429 = vmatprep.subr.mxu0 0.0
    %1430 = vmatpush1.msra.mxu0 0.0
    %1431 = vmatprep.subr.mxu0 0.0
    %1432 = vmatpush1.msra.mxu0 0.0
    %1433 = vmatprep.subr.mxu0 0.0
    %1434 = vmatpush1.msra.mxu0 0.0
    %1435 = vmatprep.subr.mxu0 0.0
    %1436 = vmatpush1.msra.mxu0 0.0
    %1437 = vmatprep.subr.mxu0 0.0
    %1438 = vmatpush1.msra.mxu0 0.0
    %1439 = vmatprep.subr.mxu0 0.0
    %1440 = vmatpush1.msra.mxu0 0.0
    %1441 = vmatprep.subr.mxu0 0.0
    %1442 = vmatpush1.msra.mxu0 0.0
    %1443 = vmatprep.subr.mxu0 0.0
    %1444 = vmatpush1.msra.mxu0 0.0
    %1445 = vmatprep.subr.mxu0 0.0
    %1446 = vmatpush1.msra.mxu0 0.0
    %1447 = vmatprep.subr.mxu0 0.0
    %1448 = vmatpush1.msra.mxu0 0.0
    %1449 = vmatprep.subr.mxu0 0.0
    %1450 = vmatpush1.msra.mxu0 0.0
    %1451 = vmatprep.subr.mxu0 0.0
    %1452 = vmatpush1.msra.mxu0 0.0
    %1453 = vmatprep.subr.mxu0 0.0
    %1454 = vmatpush1.msra.mxu0 0.0
    %1455 = vmatprep.subr.mxu0 0.0
    %1456 = vmatpush1.msra.mxu0 0.0
    %1457 = vmatprep.subr.mxu0 0.0
    %1458 = vmatpush1.msra.mxu0 0.0
    %1459 = vmatprep.mubr.f32.mxu0 0.0
    %1460 = vmatmul.mubr.f32.gmra.mrb[0].mxu0 %v1393
    %v1461 = vpop.f32.mrb[0].mxu0
    %v1462 = vadd.f32 0.0, %v1461
    %v1463 = vpop.f32.mrb[0].mxu0
    %1464 = vdwg.mxu0
    %v1466 = vrot.slane %v1462, 4
    %v1468 = vadd.f32 %v1172, %v1466
    %v1469 = vxor.u32 %v1468, 2147483648
    %v1470 = vmul.f32 %v1469, 1.442695
    %v1471 = vpow.pop %v1470
    %v1472 = vadd.f32 %v1471, 1.0
    %v1473 = vrcp.pop %v1472
    %v1474 = vmul.f32 1.0, %v1473
    %v1475 = vmul.f32 %v1474, 2.0
    %v1476 = vsub.f32 %v1475, 1.0
    %v1478 = vrot.slane %v1378, 6
    %v1480 = vmul.f32 %v1474, %v1478
    %1482 = vrot.lane.b32.xlu0 %v1476, 64
    %v1483 = vpop.permute.xlu0 %1482
    %v1485 = vmul.f32 %v1474, %v1483
    %1487 = vrot.lane.b32.xlu0 %v1485, 32
    %v1488 = vpop.permute.xlu0 %1487
    %v1490 = vadd.f32 %v1480, %v1488
    %v1491 = vtanh.pop %v1490
    %1493 = vrot.lane.b32.xlu0 %v1491, 64
    %v1494 = vpop.permute.xlu0 %1493
    %v1496 = vmul.f32 %v1474, %v1494
    %1498 = vrot.lane.b32.xlu0 %v1496, 32
    %v1499 = vpop.permute.xlu0 %1498
    %1501 = vst.msk [vmem:[#allocation2] sm:$0x30] %vm525, %v1499
    %v1502 = vrot.slane %v1496, 4
    %1503 = vrot.lane.b32.xlu0 %v1502, 32
    %v1504 = vpop.permute.xlu0 %1503
    %v1505 = vsel %vm198, %v1504, 0
    %1507 = vmatprep.subr.mxu0 0.0
    %1508 = vmatpush1.msra.mxu0 %v1086
    %1509 = vmatprep.subr.mxu0 0.0
    %1510 = vmatpush1.msra.mxu0 %v1087
    %1511 = vmatprep.subr.mxu0 0.0
    %1512 = vmatpush1.msra.mxu0 %v1088
    %1513 = vmatprep.subr.mxu0 0.0
    %1514 = vmatpush1.msra.mxu0 %v1089
    %1515 = vmatprep.subr.mxu0 0.0
    %1516 = vmatpush1.msra.mxu0 0.0
    %1517 = vmatprep.subr.mxu0 0.0
    %1518 = vmatpush1.msra.mxu0 0.0
    %1519 = vmatprep.subr.mxu0 0.0
    %1520 = vmatpush1.msra.mxu0 0.0
    %1521 = vmatprep.subr.mxu0 0.0
    %1522 = vmatpush1.msra.mxu0 0.0
    %1523 = vmatprep.subr.mxu0 0.0
    %1524 = vmatpush1.msra.mxu0 0.0
    %1525 = vmatprep.subr.mxu0 0.0
    %1526 = vmatpush1.msra.mxu0 0.0
    %1527 = vmatprep.subr.mxu0 0.0
    %1528 = vmatpush1.msra.mxu0 0.0
    %1529 = vmatprep.subr.mxu0 0.0
    %1530 = vmatpush1.msra.mxu0 0.0
    %1531 = vmatprep.subr.mxu0 0.0
    %1532 = vmatpush1.msra.mxu0 0.0
    %1533 = vmatprep.subr.mxu0 0.0
    %1534 = vmatpush1.msra.mxu0 0.0
    %1535 = vmatprep.subr.mxu0 0.0
    %1536 = vmatpush1.msra.mxu0 0.0
    %1537 = vmatprep.subr.mxu0 0.0
    %1538 = vmatpush1.msra.mxu0 0.0
    %1539 = vmatprep.subr.mxu0 0.0
    %1540 = vmatpush1.msra.mxu0 0.0
    %1541 = vmatprep.subr.mxu0 0.0
    %1542 = vmatpush1.msra.mxu0 0.0
    %1543 = vmatprep.subr.mxu0 0.0
    %1544 = vmatpush1.msra.mxu0 0.0
    %1545 = vmatprep.subr.mxu0 0.0
    %1546 = vmatpush1.msra.mxu0 0.0
    %1547 = vmatprep.subr.mxu0 0.0
    %1548 = vmatpush1.msra.mxu0 0.0
    %1549 = vmatprep.subr.mxu0 0.0
    %1550 = vmatpush1.msra.mxu0 0.0
    %1551 = vmatprep.subr.mxu0 0.0
    %1552 = vmatpush1.msra.mxu0 0.0
    %1553 = vmatprep.subr.mxu0 0.0
    %1554 = vmatpush1.msra.mxu0 0.0
    %1555 = vmatprep.subr.mxu0 0.0
    %1556 = vmatpush1.msra.mxu0 0.0
    %1557 = vmatprep.subr.mxu0 0.0
    %1558 = vmatpush1.msra.mxu0 0.0
    %1559 = vmatprep.subr.mxu0 0.0
    %1560 = vmatpush1.msra.mxu0 0.0
    %1561 = vmatprep.subr.mxu0 0.0
    %1562 = vmatpush1.msra.mxu0 0.0
    %1563 = vmatprep.subr.mxu0 0.0
    %1564 = vmatpush1.msra.mxu0 0.0
    %1565 = vmatprep.subr.mxu0 0.0
    %1566 = vmatpush1.msra.mxu0 0.0
    %1567 = vmatprep.subr.mxu0 0.0
    %1568 = vmatpush1.msra.mxu0 0.0
    %1569 = vmatprep.subr.mxu0 0.0
    %1570 = vmatpush1.msra.mxu0 0.0
    %1571 = vmatprep.mubr.f32.mxu0 0.0
    %1572 = vmatmul.mubr.f32.gmra.mrb[0].mxu0 %v1505
    %v1573 = vpop.f32.mrb[0].mxu0
    %v1574 = vadd.f32 0.0, %v1573
    %v1575 = vpop.f32.mrb[0].mxu0
    %1576 = vdwg.mxu0
    %v1578 = vrot.slane %v1574, 2
    %v1580 = vadd.f32 %v1172, %v1578
    %v1581 = vxor.u32 %v1580, 2147483648
    %v1582 = vmul.f32 %v1581, 1.442695
    %v1583 = vpow.pop %v1582
    %v1584 = vadd.f32 %v1583, 1.0
    %v1585 = vrcp.pop %v1584
    %v1586 = vmul.f32 1.0, %v1585
    %v1587 = vmul.f32 %v1586, 2.0
    %v1588 = vsub.f32 %v1587, 1.0
    %v1590 = vrot.slane %v1490, 6
    %v1592 = vmul.f32 %v1586, %v1590
    %1594 = vrot.lane.b32.xlu0 %v1588, 64
    %v1595 = vpop.permute.xlu0 %1594
    %v1597 = vmul.f32 %v1586, %v1595
    %1599 = vrot.lane.b32.xlu0 %v1597, 32
    %v1600 = vpop.permute.xlu0 %1599
    %v1602 = vadd.f32 %v1592, %v1600
    %v1603 = vtanh.pop %v1602
    %1605 = vrot.lane.b32.xlu0 %v1603, 64
    %v1606 = vpop.permute.xlu0 %1605
    %v1608 = vmul.f32 %v1586, %v1606
    %1610 = vrot.lane.b32.xlu0 %v1608, 32
    %v1611 = vpop.permute.xlu0 %1610
    %1613 = vst.msk [vmem:[#allocation2] sm:$0xc0] %vm638, %v1611
    %v1614 = vrot.slane %v1608, 6
    %1615 = vrot.lane.b32.xlu0 %v1614, 32
    %v1616 = vpop.permute.xlu0 %1615
    %v1617 = vsel %vm198, %v1616, 0
    %1619 = vmatprep.subr.mxu0 0.0
    %1620 = vmatpush1.msra.mxu0 %v1086
    %1621 = vmatprep.subr.mxu0 0.0
    %1622 = vmatpush1.msra.mxu0 %v1087
    %1623 = vmatprep.subr.mxu0 0.0
    %1624 = vmatpush1.msra.mxu0 %v1088
    %1625 = vmatprep.subr.mxu0 0.0
    %1626 = vmatpush1.msra.mxu0 %v1089
    %1627 = vmatprep.subr.mxu0 0.0
    %1628 = vmatpush1.msra.mxu0 0.0
    %1629 = vmatprep.subr.mxu0 0.0
    %1630 = vmatpush1.msra.mxu0 0.0
    %1631 = vmatprep.subr.mxu0 0.0
    %1632 = vmatpush1.msra.mxu0 0.0
    %1633 = vmatprep.subr.mxu0 0.0
    %1634 = vmatpush1.msra.mxu0 0.0
    %1635 = vmatprep.subr.mxu0 0.0
    %1636 = vmatpush1.msra.mxu0 0.0
    %1637 = vmatprep.subr.mxu0 0.0
    %1638 = vmatpush1.msra.mxu0 0.0
    %1639 = vmatprep.subr.mxu0 0.0
    %1640 = vmatpush1.msra.mxu0 0.0
    %1641 = vmatprep.subr.mxu0 0.0
    %1642 = vmatpush1.msra.mxu0 0.0
    %1643 = vmatprep.subr.mxu0 0.0
    %1644 = vmatpush1.msra.mxu0 0.0
    %1645 = vmatprep.subr.mxu0 0.0
    %1646 = vmatpush1.msra.mxu0 0.0
    %1647 = vmatprep.subr.mxu0 0.0
    %1648 = vmatpush1.msra.mxu0 0.0
    %1649 = vmatprep.subr.mxu0 0.0
    %1650 = vmatpush1.msra.mxu0 0.0
    %1651 = vmatprep.subr.mxu0 0.0
    %1652 = vmatpush1.msra.mxu0 0.0
    %1653 = vmatprep.subr.mxu0 0.0
    %1654 = vmatpush1.msra.mxu0 0.0
    %1655 = vmatprep.subr.mxu0 0.0
    %1656 = vmatpush1.msra.mxu0 0.0
    %1657 = vmatprep.subr.mxu0 0.0
    %1658 = vmatpush1.msra.mxu0 0.0
    %1659 = vmatprep.subr.mxu0 0.0
    %1660 = vmatpush1.msra.mxu0 0.0
    %1661 = vmatprep.subr.mxu0 0.0
    %1662 = vmatpush1.msra.mxu0 0.0
    %1663 = vmatprep.subr.mxu0 0.0
    %1664 = vmatpush1.msra.mxu0 0.0
    %1665 = vmatprep.subr.mxu0 0.0
    %1666 = vmatpush1.msra.mxu0 0.0
    %1667 = vmatprep.subr.mxu0 0.0
    %1668 = vmatpush1.msra.mxu0 0.0
    %1669 = vmatprep.subr.mxu0 0.0
    %1670 = vmatpush1.msra.mxu0 0.0
    %1671 = vmatprep.subr.mxu0 0.0
    %1672 = vmatpush1.msra.mxu0 0.0
    %1673 = vmatprep.subr.mxu0 0.0
    %1674 = vmatpush1.msra.mxu0 0.0
    %1675 = vmatprep.subr.mxu0 0.0
    %1676 = vmatpush1.msra.mxu0 0.0
    %1677 = vmatprep.subr.mxu0 0.0
    %1678 = vmatpush1.msra.mxu0 0.0
    %1679 = vmatprep.subr.mxu0 0.0
    %1680 = vmatpush1.msra.mxu0 0.0
    %1681 = vmatprep.subr.mxu0 0.0
    %1682 = vmatpush1.msra.mxu0 0.0
    %1683 = vmatprep.mubr.f32.mxu0 0.0
    %1684 = vmatmul.mubr.f32.gmra.mrb[0].mxu0 %v1617
    %v1685 = vpop.f32.mrb[0].mxu0
    %v1686 = vadd.f32 0.0, %v1685
    %v1687 = vpop.f32.mrb[0].mxu0
    %1688 = vdwg.mxu0
    %v1689 = vadd.f32 %v1177, %v1686
    %v1690 = vxor.u32 %v1689, 2147483648
    %v1691 = vmul.f32 %v1690, 1.442695
    %v1692 = vpow.pop %v1691
    %v1693 = vadd.f32 %v1692, 1.0
    %v1694 = vrcp.pop %v1693
    %v1695 = vmul.f32 1.0, %v1694
    %v1696 = vmul.f32 %v1695, 2.0
    %v1697 = vsub.f32 %v1696, 1.0
    %v1699 = vrot.slane %v1602, 6
    %v1701 = vmul.f32 %v1695, %v1699
    %1703 = vrot.lane.b32.xlu0 %v1697, 64
    %v1704 = vpop.permute.xlu0 %1703
    %v1706 = vmul.f32 %v1695, %v1704
    %1708 = vrot.lane.b32.xlu0 %v1706, 32
    %v1709 = vpop.permute.xlu0 %1708
    %v1711 = vadd.f32 %v1701, %v1709
    %v1712 = vtanh.pop %v1711
    %1714 = vrot.lane.b32.xlu0 %v1712, 64
    %v1715 = vpop.permute.xlu0 %1714
    %v1717 = vmul.f32 %v1695, %v1715
    %1719 = vrot.lane.b32.xlu0 %v1717, 32
    %v1720 = vpop.permute.xlu0 %1719
    %1722 = vst.msk [vmem:[#allocation2 + $0x8] sm:$0x3] %vm302, %v1720
    %v1723 = vsel %vm198, %v1720, 0
    %1725 = vmatprep.subr.mxu0 0.0
    %1726 = vmatpush1.msra.mxu0 %v1086
    %1727 = vmatprep.subr.mxu0 0.0
    %1728 = vmatpush1.msra.mxu0 %v1087
    %1729 = vmatprep.subr.mxu0 0.0
    %1730 = vmatpush1.msra.mxu0 %v1088
    %1731 = vmatprep.subr.mxu0 0.0
    %1732 = vmatpush1.msra.mxu0 %v1089
    %1733 = vmatprep.subr.mxu0 0.0
    %1734 = vmatpush1.msra.mxu0 0.0
    %1735 = vmatprep.subr.mxu0 0.0
    %1736 = vmatpush1.msra.mxu0 0.0
    %1737 = vmatprep.subr.mxu0 0.0
    %1738 = vmatpush1.msra.mxu0 0.0
    %1739 = vmatprep.subr.mxu0 0.0
    %1740 = vmatpush1.msra.mxu0 0.0
    %1741 = vmatprep.subr.mxu0 0.0
    %1742 = vmatpush1.msra.mxu0 0.0
    %1743 = vmatprep.subr.mxu0 0.0
    %1744 = vmatpush1.msra.mxu0 0.0
    %1745 = vmatprep.subr.mxu0 0.0
    %1746 = vmatpush1.msra.mxu0 0.0
    %1747 = vmatprep.subr.mxu0 0.0
    %1748 = vmatpush1.msra.mxu0 0.0
    %1749 = vmatprep.subr.mxu0 0.0
    %1750 = vmatpush1.msra.mxu0 0.0
    %1751 = vmatprep.subr.mxu0 0.0
    %1752 = vmatpush1.msra.mxu0 0.0
    %1753 = vmatprep.subr.mxu0 0.0
    %1754 = vmatpush1.msra.mxu0 0.0
    %1755 = vmatprep.subr.mxu0 0.0
    %1756 = vmatpush1.msra.mxu0 0.0
    %1757 = vmatprep.subr.mxu0 0.0
    %1758 = vmatpush1.msra.mxu0 0.0
    %1759 = vmatprep.subr.mxu0 0.0
    %1760 = vmatpush1.msra.mxu0 0.0
    %1761 = vmatprep.subr.mxu0 0.0
    %1762 = vmatpush1.msra.mxu0 0.0
    %1763 = vmatprep.subr.mxu0 0.0
    %1764 = vmatpush1.msra.mxu0 0.0
    %1765 = vmatprep.subr.mxu0 0.0
    %1766 = vmatpush1.msra.mxu0 0.0
    %1767 = vmatprep.subr.mxu0 0.0
    %1768 = vmatpush1.msra.mxu0 0.0
    %1769 = vmatprep.subr.mxu0 0.0
    %1770 = vmatpush1.msra.mxu0 0.0
    %1771 = vmatprep.subr.mxu0 0.0
    %1772 = vmatpush1.msra.mxu0 0.0
    %1773 = vmatprep.subr.mxu0 0.0
    %1774 = vmatpush1.msra.mxu0 0.0
    %1775 = vmatprep.subr.mxu0 0.0
    %1776 = vmatpush1.msra.mxu0 0.0
    %1777 = vmatprep.subr.mxu0 0.0
    %1778 = vmatpush1.msra.mxu0 0.0
    %1779 = vmatprep.subr.mxu0 0.0
    %1780 = vmatpush1.msra.mxu0 0.0
    %1781 = vmatprep.subr.mxu0 0.0
    %1782 = vmatpush1.msra.mxu0 0.0
    %1783 = vmatprep.subr.mxu0 0.0
    %1784 = vmatpush1.msra.mxu0 0.0
    %1785 = vmatprep.subr.mxu0 0.0
    %1786 = vmatpush1.msra.mxu0 0.0
    %1787 = vmatprep.subr.mxu0 0.0
    %1788 = vmatpush1.msra.mxu0 0.0
    %1789 = vmatprep.mubr.f32.mxu0 0.0
    %1790 = vmatmul.mubr.f32.gmra.mrb[0].mxu0 %v1723
    %v1791 = vpop.f32.mrb[0].mxu0
    %v1792 = vadd.f32 0.0, %v1791
    %v1793 = vpop.f32.mrb[0].mxu0
    %1794 = vdwg.mxu0
    %v1796 = vrot.slane %v1792, 6
    %v1798 = vadd.f32 %v1177, %v1796
    %v1799 = vxor.u32 %v1798, 2147483648
    %v1800 = vmul.f32 %v1799, 1.442695
    %v1801 = vpow.pop %v1800
    %v1802 = vadd.f32 %v1801, 1.0
    %v1803 = vrcp.pop %v1802
    %v1804 = vmul.f32 1.0, %v1803
    %v1805 = vmul.f32 %v1804, 2.0
    %v1806 = vsub.f32 %v1805, 1.0
    %v1808 = vrot.slane %v1711, 6
    %v1810 = vmul.f32 %v1804, %v1808
    %1812 = vrot.lane.b32.xlu0 %v1806, 64
    %v1813 = vpop.permute.xlu0 %1812
    %v1815 = vmul.f32 %v1804, %v1813
    %1817 = vrot.lane.b32.xlu0 %v1815, 32
    %v1818 = vpop.permute.xlu0 %1817
    %v1820 = vadd.f32 %v1810, %v1818
    %v1821 = vtanh.pop %v1820
    %1823 = vrot.lane.b32.xlu0 %v1821, 64
    %v1824 = vpop.permute.xlu0 %1823
    %v1826 = vmul.f32 %v1804, %v1824
    %1828 = vrot.lane.b32.xlu0 %v1826, 32
    %v1829 = vpop.permute.xlu0 %1828
    %1831 = vst.msk [vmem:[#allocation2 + $0x8] sm:$0xc] %vm412, %v1829
    %v1832 = vrot.slane %v1826, 2
    %1833 = vrot.lane.b32.xlu0 %v1832, 32
    %v1834 = vpop.permute.xlu0 %1833
    %v1835 = vsel %vm198, %v1834, 0
    %1837 = vmatprep.subr.mxu0 0.0
    %1838 = vmatpush1.msra.mxu0 %v1086
    %1839 = vmatprep.subr.mxu0 0.0
    %1840 = vmatpush1.msra.mxu0 %v1087
    %1841 = vmatprep.subr.mxu0 0.0
    %1842 = vmatpush1.msra.mxu0 %v1088
    %1843 = vmatprep.subr.mxu0 0.0
    %1844 = vmatpush1.msra.mxu0 %v1089
    %1845 = vmatprep.subr.mxu0 0.0
    %1846 = vmatpush1.msra.mxu0 0.0
    %1847 = vmatprep.subr.mxu0 0.0
    %1848 = vmatpush1.msra.mxu0 0.0
    %1849 = vmatprep.subr.mxu0 0.0
    %1850 = vmatpush1.msra.mxu0 0.0
    %1851 = vmatprep.subr.mxu0 0.0
    %1852 = vmatpush1.msra.mxu0 0.0
    %1853 = vmatprep.subr.mxu0 0.0
    %1854 = vmatpush1.msra.mxu0 0.0
    %1855 = vmatprep.subr.mxu0 0.0
    %1856 = vmatpush1.msra.mxu0 0.0
    %1857 = vmatprep.subr.mxu0 0.0
    %1858 = vmatpush1.msra.mxu0 0.0
    %1859 = vmatprep.subr.mxu0 0.0
    %1860 = vmatpush1.msra.mxu0 0.0
    %1861 = vmatprep.subr.mxu0 0.0
    %1862 = vmatpush1.msra.mxu0 0.0
    %1863 = vmatprep.subr.mxu0 0.0
    %1864 = vmatpush1.msra.mxu0 0.0
    %1865 = vmatprep.subr.mxu0 0.0
    %1866 = vmatpush1.msra.mxu0 0.0
    %1867 = vmatprep.subr.mxu0 0.0
    %1868 = vmatpush1.msra.mxu0 0.0
    %1869 = vmatprep.subr.mxu0 0.0
    %1870 = vmatpush1.msra.mxu0 0.0
    %1871 = vmatprep.subr.mxu0 0.0
    %1872 = vmatpush1.msra.mxu0 0.0
    %1873 = vmatprep.subr.mxu0 0.0
    %1874 = vmatpush1.msra.mxu0 0.0
    %1875 = vmatprep.subr.mxu0 0.0
    %1876 = vmatpush1.msra.mxu0 0.0
    %1877 = vmatprep.subr.mxu0 0.0
    %1878 = vmatpush1.msra.mxu0 0.0
    %1879 = vmatprep.subr.mxu0 0.0
    %1880 = vmatpush1.msra.mxu0 0.0
    %1881 = vmatprep.subr.mxu0 0.0
    %1882 = vmatpush1.msra.mxu0 0.0
    %1883 = vmatprep.subr.mxu0 0.0
    %1884 = vmatpush1.msra.mxu0 0.0
    %1885 = vmatprep.subr.mxu0 0.0
    %1886 = vmatpush1.msra.mxu0 0.0
    %1887 = vmatprep.subr.mxu0 0.0
    %1888 = vmatpush1.msra.mxu0 0.0
    %1889 = vmatprep.subr.mxu0 0.0
    %1890 = vmatpush1.msra.mxu0 0.0
    %1891 = vmatprep.subr.mxu0 0.0
    %1892 = vmatpush1.msra.mxu0 0.0
    %1893 = vmatprep.subr.mxu0 0.0
    %1894 = vmatpush1.msra.mxu0 0.0
    %1895 = vmatprep.subr.mxu0 0.0
    %1896 = vmatpush1.msra.mxu0 0.0
    %1897 = vmatprep.subr.mxu0 0.0
    %1898 = vmatpush1.msra.mxu0 0.0
    %1899 = vmatprep.subr.mxu0 0.0
    %1900 = vmatpush1.msra.mxu0 0.0
    %1901 = vmatprep.mubr.f32.mxu0 0.0
    %1902 = vmatmul.mubr.f32.gmra.mrb[0].mxu0 %v1835
    %v1903 = vpop.f32.mrb[0].mxu0
    %v1904 = vadd.f32 0.0, %v1903
    %v1905 = vpop.f32.mrb[0].mxu0
    %1906 = vdwg.mxu0
    %v1908 = vrot.slane %v1904, 4
    %v1910 = vadd.f32 %v1177, %v1908
    %v1911 = vxor.u32 %v1910, 2147483648
    %v1912 = vmul.f32 %v1911, 1.442695
    %v1913 = vpow.pop %v1912
    %v1914 = vadd.f32 %v1913, 1.0
    %v1915 = vrcp.pop %v1914
    %v1916 = vmul.f32 1.0, %v1915
    %v1917 = vmul.f32 %v1916, 2.0
    %v1918 = vsub.f32 %v1917, 1.0
    %v1920 = vrot.slane %v1820, 6
    %v1922 = vmul.f32 %v1916, %v1920
    %1924 = vrot.lane.b32.xlu0 %v1918, 64
    %v1925 = vpop.permute.xlu0 %1924
    %v1927 = vmul.f32 %v1916, %v1925
    %1929 = vrot.lane.b32.xlu0 %v1927, 32
    %v1930 = vpop.permute.xlu0 %1929
    %v1932 = vadd.f32 %v1922, %v1930
    %v1933 = vtanh.pop %v1932
    %1935 = vrot.lane.b32.xlu0 %v1933, 64
    %v1936 = vpop.permute.xlu0 %1935
    %v1938 = vmul.f32 %v1916, %v1936
    %1940 = vrot.lane.b32.xlu0 %v1938, 32
    %v1941 = vpop.permute.xlu0 %1940
    %1943 = vst.msk [vmem:[#allocation2 + $0x8] sm:$0x30] %vm525, %v1941
    %v1944 = vrot.slane %v1938, 4
    %1945 = vrot.lane.b32.xlu0 %v1944, 32
    %v1946 = vpop.permute.xlu0 %1945
    %v1947 = vsel %vm198, %v1946, 0
    %1949 = vmatprep.subr.mxu0 0.0
    %1950 = vmatpush1.msra.mxu0 %v1086
    %1951 = vmatprep.subr.mxu0 0.0
    %1952 = vmatpush1.msra.mxu0 %v1087
    %1953 = vmatprep.subr.mxu0 0.0
    %1954 = vmatpush1.msra.mxu0 %v1088
    %1955 = vmatprep.subr.mxu0 0.0
    %1956 = vmatpush1.msra.mxu0 %v1089
    %1957 = vmatprep.subr.mxu0 0.0
    %1958 = vmatpush1.msra.mxu0 0.0
    %1959 = vmatprep.subr.mxu0 0.0
    %1960 = vmatpush1.msra.mxu0 0.0
    %1961 = vmatprep.subr.mxu0 0.0
    %1962 = vmatpush1.msra.mxu0 0.0
    %1963 = vmatprep.subr.mxu0 0.0
    %1964 = vmatpush1.msra.mxu0 0.0
    %1965 = vmatprep.subr.mxu0 0.0
    %1966 = vmatpush1.msra.mxu0 0.0
    %1967 = vmatprep.subr.mxu0 0.0
    %1968 = vmatpush1.msra.mxu0 0.0
    %1969 = vmatprep.subr.mxu0 0.0
    %1970 = vmatpush1.msra.mxu0 0.0
    %1971 = vmatprep.subr.mxu0 0.0
    %1972 = vmatpush1.msra.mxu0 0.0
    %1973 = vmatprep.subr.mxu0 0.0
    %1974 = vmatpush1.msra.mxu0 0.0
    %1975 = vmatprep.subr.mxu0 0.0
    %1976 = vmatpush1.msra.mxu0 0.0
    %1977 = vmatprep.subr.mxu0 0.0
    %1978 = vmatpush1.msra.mxu0 0.0
    %1979 = vmatprep.subr.mxu0 0.0
    %1980 = vmatpush1.msra.mxu0 0.0
    %1981 = vmatprep.subr.mxu0 0.0
    %1982 = vmatpush1.msra.mxu0 0.0
    %1983 = vmatprep.subr.mxu0 0.0
    %1984 = vmatpush1.msra.mxu0 0.0
    %1985 = vmatprep.subr.mxu0 0.0
    %1986 = vmatpush1.msra.mxu0 0.0
    %1987 = vmatprep.subr.mxu0 0.0
    %1988 = vmatpush1.msra.mxu0 0.0
    %1989 = vmatprep.subr.mxu0 0.0
    %1990 = vmatpush1.msra.mxu0 0.0
    %1991 = vmatprep.subr.mxu0 0.0
    %1992 = vmatpush1.msra.mxu0 0.0
    %1993 = vmatprep.subr.mxu0 0.0
    %1994 = vmatpush1.msra.mxu0 0.0
    %1995 = vmatprep.subr.mxu0 0.0
    %1996 = vmatpush1.msra.mxu0 0.0
    %1997 = vmatprep.subr.mxu0 0.0
    %1998 = vmatpush1.msra.mxu0 0.0
    %1999 = vmatprep.subr.mxu0 0.0
    %2000 = vmatpush1.msra.mxu0 0.0
    %2001 = vmatprep.subr.mxu0 0.0
    %2002 = vmatpush1.msra.mxu0 0.0
    %2003 = vmatprep.subr.mxu0 0.0
    %2004 = vmatpush1.msra.mxu0 0.0
    %2005 = vmatprep.subr.mxu0 0.0
    %2006 = vmatpush1.msra.mxu0 0.0
    %2007 = vmatprep.subr.mxu0 0.0
    %2008 = vmatpush1.msra.mxu0 0.0
    %2009 = vmatprep.subr.mxu0 0.0
    %2010 = vmatpush1.msra.mxu0 0.0
    %2011 = vmatprep.subr.mxu0 0.0
    %2012 = vmatpush1.msra.mxu0 0.0
    %2013 = vmatprep.mubr.f32.mxu0 0.0
    %2014 = vmatmul.mubr.f32.gmra.mrb[0].mxu0 %v1947
    %v2015 = vpop.f32.mrb[0].mxu0
    %v2016 = vadd.f32 0.0, %v2015
    %v2017 = vpop.f32.mrb[0].mxu0
    %2018 = vdwg.mxu0
    %v2020 = vrot.slane %v2016, 2
    %v2022 = vadd.f32 %v1177, %v2020
    %v2023 = vxor.u32 %v2022, 2147483648
    %v2024 = vmul.f32 %v2023, 1.442695
    %v2025 = vpow.pop %v2024
    %v2026 = vadd.f32 %v2025, 1.0
    %v2027 = vrcp.pop %v2026
    %v2028 = vmul.f32 1.0, %v2027
    %v2029 = vmul.f32 %v2028, 2.0
    %v2030 = vsub.f32 %v2029, 1.0
    %v2032 = vrot.slane %v1932, 6
    %v2034 = vmul.f32 %v2028, %v2032
    %2036 = vrot.lane.b32.xlu0 %v2030, 64
    %v2037 = vpop.permute.xlu0 %2036
    %v2039 = vmul.f32 %v2028, %v2037
    %2041 = vrot.lane.b32.xlu0 %v2039, 32
    %v2042 = vpop.permute.xlu0 %2041
    %v2044 = vadd.f32 %v2034, %v2042
    %v2045 = vtanh.pop %v2044
    %2047 = vrot.lane.b32.xlu0 %v2045, 64
    %v2048 = vpop.permute.xlu0 %2047
    %v2050 = vmul.f32 %v2028, %v2048
    %2052 = vrot.lane.b32.xlu0 %v2050, 32
    %v2053 = vpop.permute.xlu0 %2052
    %2055 = vst.msk [vmem:[#allocation2 + $0x8] sm:$0xc0] %vm638, %v2053
    %v2056 = vld [vmem:[#allocation8] sm:$0xff]
    %v2057 = vld [vmem:[#allocation8 + $0x8] sm:$0xff]
    %v2058 = vld [vmem:[#allocation8 + $0x10] sm:$0xff]
    %v2059 = vld [vmem:[#allocation8 + $0x18] sm:$0xff]
    %v2060 = vld [vmem:[#allocation9] sm:$0xff]
    %v2061 = vld [vmem:[#allocation9 + $0x8] sm:$0xff]
    %v2062 = vld [vmem:[#allocation9 + $0x10] sm:$0xff]
    %v2063 = vld [vmem:[#allocation9 + $0x18] sm:$0xff]
    %v2064 = vld [vmem:[%s9] sm:$0x1]
    %v2065 = vld [vmem:[#allocation2] sm:$0xff]
    %v2066 = vld [vmem:[#allocation2 + $0x8] sm:$0xff]
    %v2068 = vlaneseq
    %v2069 = vshrl.u32 %v2068, 7
    %v2070 = vsub.s32 0, %v2069
    %v2071 = vrot.slane %v2064, %v2070
    %v2074 = vsel %vm198, %v2065, 0
    %v2077 = vsel %vm198, %v2066, 0
    %2079 = vmatprep.subr.mxu0 0.0
    %2080 = vmatpush1.msra.mxu0 %v2056
    %2081 = vmatprep.subr.mxu0 0.0
    %2082 = vmatpush1.msra.mxu0 %v2057
    %2083 = vmatprep.subr.mxu0 0.0
    %2084 = vmatpush1.msra.mxu0 %v2058
    %2085 = vmatprep.subr.mxu0 0.0
    %2086 = vmatpush1.msra.mxu0 %v2059
    %2087 = vmatprep.subr.mxu0 0.0
    %2088 = vmatpush1.msra.mxu0 0.0
    %2089 = vmatprep.subr.mxu0 0.0
    %2090 = vmatpush1.msra.mxu0 0.0
    %2091 = vmatprep.subr.mxu0 0.0
    %2092 = vmatpush1.msra.mxu0 0.0
    %2093 = vmatprep.subr.mxu0 0.0
    %2094 = vmatpush1.msra.mxu0 0.0
    %2095 = vmatprep.subr.mxu0 0.0
    %2096 = vmatpush1.msra.mxu0 0.0
    %2097 = vmatprep.subr.mxu0 0.0
    %2098 = vmatpush1.msra.mxu0 0.0
    %2099 = vmatprep.subr.mxu0 0.0
    %2100 = vmatpush1.msra.mxu0 0.0
    %2101 = vmatprep.subr.mxu0 0.0
    %2102 = vmatpush1.msra.mxu0 0.0
    %2103 = vmatprep.subr.mxu0 0.0
    %2104 = vmatpush1.msra.mxu0 0.0
    %2105 = vmatprep.subr.mxu0 0.0
    %2106 = vmatpush1.msra.mxu0 0.0
    %2107 = vmatprep.subr.mxu0 0.0
    %2108 = vmatpush1.msra.mxu0 0.0
    %2109 = vmatprep.subr.mxu0 0.0
    %2110 = vmatpush1.msra.mxu0 0.0
    %2111 = vmatprep.subr.mxu0 0.0
    %2112 = vmatpush1.msra.mxu0 0.0
    %2113 = vmatprep.subr.mxu0 0.0
    %2114 = vmatpush1.msra.mxu0 0.0
    %2115 = vmatprep.subr.mxu0 0.0
    %2116 = vmatpush1.msra.mxu0 0.0
    %2117 = vmatprep.subr.mxu0 0.0
    %2118 = vmatpush1.msra.mxu0 0.0
    %2119 = vmatprep.subr.mxu0 0.0
    %2120 = vmatpush1.msra.mxu0 0.0
    %2121 = vmatprep.subr.mxu0 0.0
    %2122 = vmatpush1.msra.mxu0 0.0
    %2123 = vmatprep.subr.mxu0 0.0
    %2124 = vmatpush1.msra.mxu0 0.0
    %2125 = vmatprep.subr.mxu0 0.0
    %2126 = vmatpush1.msra.mxu0 0.0
    %2127 = vmatprep.subr.mxu0 0.0
    %2128 = vmatpush1.msra.mxu0 0.0
    %2129 = vmatprep.subr.mxu0 0.0
    %2130 = vmatpush1.msra.mxu0 0.0
    %2131 = vmatprep.subr.mxu0 0.0
    %2132 = vmatpush1.msra.mxu0 0.0
    %2133 = vmatprep.subr.mxu0 0.0
    %2134 = vmatpush1.msra.mxu0 0.0
    %2135 = vmatprep.subr.mxu0 0.0
    %2136 = vmatpush1.msra.mxu0 0.0
    %2137 = vmatprep.subr.mxu0 0.0
    %2138 = vmatpush1.msra.mxu0 0.0
    %2139 = vmatprep.subr.mxu0 0.0
    %2140 = vmatpush1.msra.mxu0 0.0
    %2141 = vmatprep.subr.mxu0 0.0
    %2142 = vmatpush1.msra.mxu0 0.0
    %2143 = vmatprep.mubr.f32.mxu0 0.0
    %2144 = vmatmul.mubr.f32.gmra.mrb[0].mxu0 %v2074
    %v2145 = vpop.f32.mrb[0].mxu0
    %v2146 = vadd.f32 %v2071, %v2145
    %v2147 = vpop.f32.mrb[0].mxu0
    %2148 = vmatprep.mubr.f32.mxu0 0.0
    %2149 = vmatmul.mubr.f32.gmra.mrb[0].mxu0 %v2077
    %v2150 = vpop.f32.mrb[0].mxu0
    %v2151 = vadd.f32 %v2071, %v2150
    %v2152 = vpop.f32.mrb[0].mxu0
    %2153 = vdwg.mxu0
    %2154 = vmatprep.subr.mxu0 0.0
    %2155 = vmatpush1.msra.mxu0 %v2060
    %2156 = vmatprep.subr.mxu0 0.0
    %2157 = vmatpush1.msra.mxu0 %v2061
    %2158 = vmatprep.subr.mxu0 0.0
    %2159 = vmatpush1.msra.mxu0 %v2062
    %2160 = vmatprep.subr.mxu0 0.0
    %2161 = vmatpush1.msra.mxu0 %v2063
    %2162 = vmatprep.subr.mxu0 0.0
    %2163 = vmatpush1.msra.mxu0 0.0
    %2164 = vmatprep.subr.mxu0 0.0
    %2165 = vmatpush1.msra.mxu0 0.0
    %2166 = vmatprep.subr.mxu0 0.0
    %2167 = vmatpush1.msra.mxu0 0.0
    %2168 = vmatprep.subr.mxu0 0.0
    %2169 = vmatpush1.msra.mxu0 0.0
    %2170 = vmatprep.subr.mxu0 0.0
    %2171 = vmatpush1.msra.mxu0 0.0
    %2172 = vmatprep.subr.mxu0 0.0
    %2173 = vmatpush1.msra.mxu0 0.0
    %2174 = vmatprep.subr.mxu0 0.0
    %2175 = vmatpush1.msra.mxu0 0.0
    %2176 = vmatprep.subr.mxu0 0.0
    %2177 = vmatpush1.msra.mxu0 0.0
    %2178 = vmatprep.subr.mxu0 0.0
    %2179 = vmatpush1.msra.mxu0 0.0
    %2180 = vmatprep.subr.mxu0 0.0
    %2181 = vmatpush1.msra.mxu0 0.0
    %2182 = vmatprep.subr.mxu0 0.0
    %2183 = vmatpush1.msra.mxu0 0.0
    %2184 = vmatprep.subr.mxu0 0.0
    %2185 = vmatpush1.msra.mxu0 0.0
    %2186 = vmatprep.subr.mxu0 0.0
    %2187 = vmatpush1.msra.mxu0 0.0
    %2188 = vmatprep.subr.mxu0 0.0
    %2189 = vmatpush1.msra.mxu0 0.0
    %2190 = vmatprep.subr.mxu0 0.0
    %2191 = vmatpush1.msra.mxu0 0.0
    %2192 = vmatprep.subr.mxu0 0.0
    %2193 = vmatpush1.msra.mxu0 0.0
    %2194 = vmatprep.subr.mxu0 0.0
    %2195 = vmatpush1.msra.mxu0 0.0
    %2196 = vmatprep.subr.mxu0 0.0
    %2197 = vmatpush1.msra.mxu0 0.0
    %2198 = vmatprep.subr.mxu0 0.0
    %2199 = vmatpush1.msra.mxu0 0.0
    %2200 = vmatprep.subr.mxu0 0.0
    %2201 = vmatpush1.msra.mxu0 0.0
    %2202 = vmatprep.subr.mxu0 0.0
    %2203 = vmatpush1.msra.mxu0 0.0
    %2204 = vmatprep.subr.mxu0 0.0
    %2205 = vmatpush1.msra.mxu0 0.0
    %2206 = vmatprep.subr.mxu0 0.0
    %2207 = vmatpush1.msra.mxu0 0.0
    %2208 = vmatprep.subr.mxu0 0.0
    %2209 = vmatpush1.msra.mxu0 0.0
    %2210 = vmatprep.subr.mxu0 0.0
    %2211 = vmatpush1.msra.mxu0 0.0
    %2212 = vmatprep.subr.mxu0 0.0
    %2213 = vmatpush1.msra.mxu0 0.0
    %2214 = vmatprep.subr.mxu0 0.0
    %2215 = vmatpush1.msra.mxu0 0.0
    %2216 = vmatprep.subr.mxu0 0.0
    %2217 = vmatpush1.msra.mxu0 0.0
    %2218 = vmatprep.mubr.f32.mxu0 0.0
    %2219 = vmatmul.mubr.f32.gmra.mrb[0].mxu0 %v200
    %v2220 = vpop.f32.mrb[0].mxu0
    %v2221 = vadd.f32 0.0, %v2220
    %v2222 = vpop.f32.mrb[0].mxu0
    %2223 = vdwg.mxu0
    %v2224 = vadd.f32 %v2146, %v2221
    %v2225 = vxor.u32 %v2224, 2147483648
    %v2226 = vmul.f32 %v2225, 1.442695
    %v2227 = vpow.pop %v2226
    %v2228 = vadd.f32 %v2227, 1.0
    %v2229 = vrcp.pop %v2228
    %v2230 = vmul.f32 1.0, %v2229
    %v2231 = vmul.f32 %v2230, 2.0
    %v2232 = vsub.f32 %v2231, 1.0
    %v2233 = vmul.f32 %v2230, 0.0
    %2235 = vrot.lane.b32.xlu0 %v2232, 64
    %v2236 = vpop.permute.xlu0 %2235
    %v2238 = vmul.f32 %v2230, %v2236
    %2240 = vrot.lane.b32.xlu0 %v2238, 32
    %v2241 = vpop.permute.xlu0 %2240
    %v2243 = vadd.f32 %v2233, %v2241
    %v2244 = vtanh.pop %v2243
    %2246 = vrot.lane.b32.xlu0 %v2244, 64
    %v2247 = vpop.permute.xlu0 %2246
    %v2249 = vmul.f32 %v2230, %v2247
    %2251 = vrot.lane.b32.xlu0 %v2249, 32
    %v2252 = vpop.permute.xlu0 %2251
    %v2253 = vsel %vm198, %v2252, 0
    %2255 = vmatprep.subr.mxu0 0.0
    %2256 = vmatpush1.msra.mxu0 %v2060
    %2257 = vmatprep.subr.mxu0 0.0
    %2258 = vmatpush1.msra.mxu0 %v2061
    %2259 = vmatprep.subr.mxu0 0.0
    %2260 = vmatpush1.msra.mxu0 %v2062
    %2261 = vmatprep.subr.mxu0 0.0
    %2262 = vmatpush1.msra.mxu0 %v2063
    %2263 = vmatprep.subr.mxu0 0.0
    %2264 = vmatpush1.msra.mxu0 0.0
    %2265 = vmatprep.subr.mxu0 0.0
    %2266 = vmatpush1.msra.mxu0 0.0
    %2267 = vmatprep.subr.mxu0 0.0
    %2268 = vmatpush1.msra.mxu0 0.0
    %2269 = vmatprep.subr.mxu0 0.0
    %2270 = vmatpush1.msra.mxu0 0.0
    %2271 = vmatprep.subr.mxu0 0.0
    %2272 = vmatpush1.msra.mxu0 0.0
    %2273 = vmatprep.subr.mxu0 0.0
    %2274 = vmatpush1.msra.mxu0 0.0
    %2275 = vmatprep.subr.mxu0 0.0
    %2276 = vmatpush1.msra.mxu0 0.0
    %2277 = vmatprep.subr.mxu0 0.0
    %2278 = vmatpush1.msra.mxu0 0.0
    %2279 = vmatprep.subr.mxu0 0.0
    %2280 = vmatpush1.msra.mxu0 0.0
    %2281 = vmatprep.subr.mxu0 0.0
    %2282 = vmatpush1.msra.mxu0 0.0
    %2283 = vmatprep.subr.mxu0 0.0
    %2284 = vmatpush1.msra.mxu0 0.0
    %2285 = vmatprep.subr.mxu0 0.0
    %2286 = vmatpush1.msra.mxu0 0.0
    %2287 = vmatprep.subr.mxu0 0.0
    %2288 = vmatpush1.msra.mxu0 0.0
    %2289 = vmatprep.subr.mxu0 0.0
    %2290 = vmatpush1.msra.mxu0 0.0
    %2291 = vmatprep.subr.mxu0 0.0
    %2292 = vmatpush1.msra.mxu0 0.0
    %2293 = vmatprep.subr.mxu0 0.0
    %2294 = vmatpush1.msra.mxu0 0.0
    %2295 = vmatprep.subr.mxu0 0.0
    %2296 = vmatpush1.msra.mxu0 0.0
    %2297 = vmatprep.subr.mxu0 0.0
    %2298 = vmatpush1.msra.mxu0 0.0
    %2299 = vmatprep.subr.mxu0 0.0
    %2300 = vmatpush1.msra.mxu0 0.0
    %2301 = vmatprep.subr.mxu0 0.0
    %2302 = vmatpush1.msra.mxu0 0.0
    %2303 = vmatprep.subr.mxu0 0.0
    %2304 = vmatpush1.msra.mxu0 0.0
    %2305 = vmatprep.subr.mxu0 0.0
    %2306 = vmatpush1.msra.mxu0 0.0
    %2307 = vmatprep.subr.mxu0 0.0
    %2308 = vmatpush1.msra.mxu0 0.0
    %2309 = vmatprep.subr.mxu0 0.0
    %2310 = vmatpush1.msra.mxu0 0.0
    %2311 = vmatprep.subr.mxu0 0.0
    %2312 = vmatpush1.msra.mxu0 0.0
    %2313 = vmatprep.subr.mxu0 0.0
    %2314 = vmatpush1.msra.mxu0 0.0
    %2315 = vmatprep.subr.mxu0 0.0
    %2316 = vmatpush1.msra.mxu0 0.0
    %2317 = vmatprep.subr.mxu0 0.0
    %2318 = vmatpush1.msra.mxu0 0.0
    %2319 = vmatprep.mubr.f32.mxu0 0.0
    %2320 = vmatmul.mubr.f32.gmra.mrb[0].mxu0 %v2253
    %v2321 = vpop.f32.mrb[0].mxu0
    %v2322 = vadd.f32 0.0, %v2321
    %v2323 = vpop.f32.mrb[0].mxu0
    %2324 = vdwg.mxu0
    %v2326 = vrot.slane %v2322, 6
    %v2328 = vadd.f32 %v2146, %v2326
    %v2329 = vxor.u32 %v2328, 2147483648
    %v2330 = vmul.f32 %v2329, 1.442695
    %v2331 = vpow.pop %v2330
    %v2332 = vadd.f32 %v2331, 1.0
    %v2333 = vrcp.pop %v2332
    %v2334 = vmul.f32 1.0, %v2333
    %v2335 = vmul.f32 %v2334, 2.0
    %v2336 = vsub.f32 %v2335, 1.0
    %v2338 = vrot.slane %v2243, 6
    %v2340 = vmul.f32 %v2334, %v2338
    %2342 = vrot.lane.b32.xlu0 %v2336, 64
    %v2343 = vpop.permute.xlu0 %2342
    %v2345 = vmul.f32 %v2334, %v2343
    %2347 = vrot.lane.b32.xlu0 %v2345, 32
    %v2348 = vpop.permute.xlu0 %2347
    %v2350 = vadd.f32 %v2340, %v2348
    %v2351 = vtanh.pop %v2350
    %2353 = vrot.lane.b32.xlu0 %v2351, 64
    %v2354 = vpop.permute.xlu0 %2353
    %v2356 = vmul.f32 %v2334, %v2354
    %v2358 = vrot.slane %v2356, 2
    %2359 = vrot.lane.b32.xlu0 %v2358, 32
    %v2360 = vpop.permute.xlu0 %2359
    %v2361 = vsel %vm198, %v2360, 0
    %2363 = vmatprep.subr.mxu0 0.0
    %2364 = vmatpush1.msra.mxu0 %v2060
    %2365 = vmatprep.subr.mxu0 0.0
    %2366 = vmatpush1.msra.mxu0 %v2061
    %2367 = vmatprep.subr.mxu0 0.0
    %2368 = vmatpush1.msra.mxu0 %v2062
    %2369 = vmatprep.subr.mxu0 0.0
    %2370 = vmatpush1.msra.mxu0 %v2063
    %2371 = vmatprep.subr.mxu0 0.0
    %2372 = vmatpush1.msra.mxu0 0.0
    %2373 = vmatprep.subr.mxu0 0.0
    %2374 = vmatpush1.msra.mxu0 0.0
    %2375 = vmatprep.subr.mxu0 0.0
    %2376 = vmatpush1.msra.mxu0 0.0
    %2377 = vmatprep.subr.mxu0 0.0
    %2378 = vmatpush1.msra.mxu0 0.0
    %2379 = vmatprep.subr.mxu0 0.0
    %2380 = vmatpush1.msra.mxu0 0.0
    %2381 = vmatprep.subr.mxu0 0.0
    %2382 = vmatpush1.msra.mxu0 0.0
    %2383 = vmatprep.subr.mxu0 0.0
    %2384 = vmatpush1.msra.mxu0 0.0
    %2385 = vmatprep.subr.mxu0 0.0
    %2386 = vmatpush1.msra.mxu0 0.0
    %2387 = vmatprep.subr.mxu0 0.0
    %2388 = vmatpush1.msra.mxu0 0.0
    %2389 = vmatprep.subr.mxu0 0.0
    %2390 = vmatpush1.msra.mxu0 0.0
    %2391 = vmatprep.subr.mxu0 0.0
    %2392 = vmatpush1.msra.mxu0 0.0
    %2393 = vmatprep.subr.mxu0 0.0
    %2394 = vmatpush1.msra.mxu0 0.0
    %2395 = vmatprep.subr.mxu0 0.0
    %2396 = vmatpush1.msra.mxu0 0.0
    %2397 = vmatprep.subr.mxu0 0.0
    %2398 = vmatpush1.msra.mxu0 0.0
    %2399 = vmatprep.subr.mxu0 0.0
    %2400 = vmatpush1.msra.mxu0 0.0
    %2401 = vmatprep.subr.mxu0 0.0
    %2402 = vmatpush1.msra.mxu0 0.0
    %2403 = vmatprep.subr.mxu0 0.0
    %2404 = vmatpush1.msra.mxu0 0.0
    %2405 = vmatprep.subr.mxu0 0.0
    %2406 = vmatpush1.msra.mxu0 0.0
    %2407 = vmatprep.subr.mxu0 0.0
    %2408 = vmatpush1.msra.mxu0 0.0
    %2409 = vmatprep.subr.mxu0 0.0
    %2410 = vmatpush1.msra.mxu0 0.0
    %2411 = vmatprep.subr.mxu0 0.0
    %2412 = vmatpush1.msra.mxu0 0.0
    %2413 = vmatprep.subr.mxu0 0.0
    %2414 = vmatpush1.msra.mxu0 0.0
    %2415 = vmatprep.subr.mxu0 0.0
    %2416 = vmatpush1.msra.mxu0 0.0
    %2417 = vmatprep.subr.mxu0 0.0
    %2418 = vmatpush1.msra.mxu0 0.0
    %2419 = vmatprep.subr.mxu0 0.0
    %2420 = vmatpush1.msra.mxu0 0.0
    %2421 = vmatprep.subr.mxu0 0.0
    %2422 = vmatpush1.msra.mxu0 0.0
    %2423 = vmatprep.subr.mxu0 0.0
    %2424 = vmatpush1.msra.mxu0 0.0
    %2425 = vmatprep.subr.mxu0 0.0
    %2426 = vmatpush1.msra.mxu0 0.0
    %2427 = vmatprep.mubr.f32.mxu0 0.0
    %2428 = vmatmul.mubr.f32.gmra.mrb[0].mxu0 %v2361
    %v2429 = vpop.f32.mrb[0].mxu0
    %v2430 = vadd.f32 0.0, %v2429
    %v2431 = vpop.f32.mrb[0].mxu0
    %2432 = vdwg.mxu0
    %v2434 = vrot.slane %v2430, 4
    %v2436 = vadd.f32 %v2146, %v2434
    %v2437 = vxor.u32 %v2436, 2147483648
    %v2438 = vmul.f32 %v2437, 1.442695
    %v2439 = vpow.pop %v2438
    %v2440 = vadd.f32 %v2439, 1.0
    %v2441 = vrcp.pop %v2440
    %v2442 = vmul.f32 1.0, %v2441
    %v2443 = vmul.f32 %v2442, 2.0
    %v2444 = vsub.f32 %v2443, 1.0
    %v2446 = vrot.slane %v2350, 6
    %v2448 = vmul.f32 %v2442, %v2446
    %2450 = vrot.lane.b32.xlu0 %v2444, 64
    %v2451 = vpop.permute.xlu0 %2450
    %v2453 = vmul.f32 %v2442, %v2451
    %2455 = vrot.lane.b32.xlu0 %v2453, 32
    %v2456 = vpop.permute.xlu0 %2455
    %v2458 = vadd.f32 %v2448, %v2456
    %v2459 = vtanh.pop %v2458
    %2461 = vrot.lane.b32.xlu0 %v2459, 64
    %v2462 = vpop.permute.xlu0 %2461
    %v2464 = vmul.f32 %v2442, %v2462
    %v2466 = vrot.slane %v2464, 4
    %2467 = vrot.lane.b32.xlu0 %v2466, 32
    %v2468 = vpop.permute.xlu0 %2467
    %v2469 = vsel %vm198, %v2468, 0
    %2471 = vmatprep.subr.mxu0 0.0
    %2472 = vmatpush1.msra.mxu0 %v2060
    %2473 = vmatprep.subr.mxu0 0.0
    %2474 = vmatpush1.msra.mxu0 %v2061
    %2475 = vmatprep.subr.mxu0 0.0
    %2476 = vmatpush1.msra.mxu0 %v2062
    %2477 = vmatprep.subr.mxu0 0.0
    %2478 = vmatpush1.msra.mxu0 %v2063
    %2479 = vmatprep.subr.mxu0 0.0
    %2480 = vmatpush1.msra.mxu0 0.0
    %2481 = vmatprep.subr.mxu0 0.0
    %2482 = vmatpush1.msra.mxu0 0.0
    %2483 = vmatprep.subr.mxu0 0.0
    %2484 = vmatpush1.msra.mxu0 0.0
    %2485 = vmatprep.subr.mxu0 0.0
    %2486 = vmatpush1.msra.mxu0 0.0
    %2487 = vmatprep.subr.mxu0 0.0
    %2488 = vmatpush1.msra.mxu0 0.0
    %2489 = vmatprep.subr.mxu0 0.0
    %2490 = vmatpush1.msra.mxu0 0.0
    %2491 = vmatprep.subr.mxu0 0.0
    %2492 = vmatpush1.msra.mxu0 0.0
    %2493 = vmatprep.subr.mxu0 0.0
    %2494 = vmatpush1.msra.mxu0 0.0
    %2495 = vmatprep.subr.mxu0 0.0
    %2496 = vmatpush1.msra.mxu0 0.0
    %2497 = vmatprep.subr.mxu0 0.0
    %2498 = vmatpush1.msra.mxu0 0.0
    %2499 = vmatprep.subr.mxu0 0.0
    %2500 = vmatpush1.msra.mxu0 0.0
    %2501 = vmatprep.subr.mxu0 0.0
    %2502 = vmatpush1.msra.mxu0 0.0
    %2503 = vmatprep.subr.mxu0 0.0
    %2504 = vmatpush1.msra.mxu0 0.0
    %2505 = vmatprep.subr.mxu0 0.0
    %2506 = vmatpush1.msra.mxu0 0.0
    %2507 = vmatprep.subr.mxu0 0.0
    %2508 = vmatpush1.msra.mxu0 0.0
    %2509 = vmatprep.subr.mxu0 0.0
    %2510 = vmatpush1.msra.mxu0 0.0
    %2511 = vmatprep.subr.mxu0 0.0
    %2512 = vmatpush1.msra.mxu0 0.0
    %2513 = vmatprep.subr.mxu0 0.0
    %2514 = vmatpush1.msra.mxu0 0.0
    %2515 = vmatprep.subr.mxu0 0.0
    %2516 = vmatpush1.msra.mxu0 0.0
    %2517 = vmatprep.subr.mxu0 0.0
    %2518 = vmatpush1.msra.mxu0 0.0
    %2519 = vmatprep.subr.mxu0 0.0
    %2520 = vmatpush1.msra.mxu0 0.0
    %2521 = vmatprep.subr.mxu0 0.0
    %2522 = vmatpush1.msra.mxu0 0.0
    %2523 = vmatprep.subr.mxu0 0.0
    %2524 = vmatpush1.msra.mxu0 0.0
    %2525 = vmatprep.subr.mxu0 0.0
    %2526 = vmatpush1.msra.mxu0 0.0
    %2527 = vmatprep.subr.mxu0 0.0
    %2528 = vmatpush1.msra.mxu0 0.0
    %2529 = vmatprep.subr.mxu0 0.0
    %2530 = vmatpush1.msra.mxu0 0.0
    %2531 = vmatprep.subr.mxu0 0.0
    %2532 = vmatpush1.msra.mxu0 0.0
    %2533 = vmatprep.subr.mxu0 0.0
    %2534 = vmatpush1.msra.mxu0 0.0
    %2535 = vmatprep.mubr.f32.mxu0 0.0
    %2536 = vmatmul.mubr.f32.gmra.mrb[0].mxu0 %v2469
    %v2537 = vpop.f32.mrb[0].mxu0
    %v2538 = vadd.f32 0.0, %v2537
    %v2539 = vpop.f32.mrb[0].mxu0
    %2540 = vdwg.mxu0
    %v2542 = vrot.slane %v2538, 2
    %v2544 = vadd.f32 %v2146, %v2542
    %v2545 = vxor.u32 %v2544, 2147483648
    %v2546 = vmul.f32 %v2545, 1.442695
    %v2547 = vpow.pop %v2546
    %v2548 = vadd.f32 %v2547, 1.0
    %v2549 = vrcp.pop %v2548
    %v2550 = vmul.f32 1.0, %v2549
    %v2551 = vmul.f32 %v2550, 2.0
    %v2552 = vsub.f32 %v2551, 1.0
    %v2554 = vrot.slane %v2458, 6
    %v2556 = vmul.f32 %v2550, %v2554
    %2558 = vrot.lane.b32.xlu0 %v2552, 64
    %v2559 = vpop.permute.xlu0 %2558
    %v2561 = vmul.f32 %v2550, %v2559
    %2563 = vrot.lane.b32.xlu0 %v2561, 32
    %v2564 = vpop.permute.xlu0 %2563
    %v2566 = vadd.f32 %v2556, %v2564
    %v2567 = vtanh.pop %v2566
    %2569 = vrot.lane.b32.xlu0 %v2567, 64
    %v2570 = vpop.permute.xlu0 %2569
    %v2572 = vmul.f32 %v2550, %v2570
    %v2574 = vrot.slane %v2572, 6
    %2575 = vrot.lane.b32.xlu0 %v2574, 32
    %v2576 = vpop.permute.xlu0 %2575
    %v2577 = vsel %vm198, %v2576, 0
    %2579 = vmatprep.subr.mxu0 0.0
    %2580 = vmatpush1.msra.mxu0 %v2060
    %2581 = vmatprep.subr.mxu0 0.0
    %2582 = vmatpush1.msra.mxu0 %v2061
    %2583 = vmatprep.subr.mxu0 0.0
    %2584 = vmatpush1.msra.mxu0 %v2062
    %2585 = vmatprep.subr.mxu0 0.0
    %2586 = vmatpush1.msra.mxu0 %v2063
    %2587 = vmatprep.subr.mxu0 0.0
    %2588 = vmatpush1.msra.mxu0 0.0
    %2589 = vmatprep.subr.mxu0 0.0
    %2590 = vmatpush1.msra.mxu0 0.0
    %2591 = vmatprep.subr.mxu0 0.0
    %2592 = vmatpush1.msra.mxu0 0.0
    %2593 = vmatprep.subr.mxu0 0.0
    %2594 = vmatpush1.msra.mxu0 0.0
    %2595 = vmatprep.subr.mxu0 0.0
    %2596 = vmatpush1.msra.mxu0 0.0
    %2597 = vmatprep.subr.mxu0 0.0
    %2598 = vmatpush1.msra.mxu0 0.0
    %2599 = vmatprep.subr.mxu0 0.0
    %2600 = vmatpush1.msra.mxu0 0.0
    %2601 = vmatprep.subr.mxu0 0.0
    %2602 = vmatpush1.msra.mxu0 0.0
    %2603 = vmatprep.subr.mxu0 0.0
    %2604 = vmatpush1.msra.mxu0 0.0
    %2605 = vmatprep.subr.mxu0 0.0
    %2606 = vmatpush1.msra.mxu0 0.0
    %2607 = vmatprep.subr.mxu0 0.0
    %2608 = vmatpush1.msra.mxu0 0.0
    %2609 = vmatprep.subr.mxu0 0.0
    %2610 = vmatpush1.msra.mxu0 0.0
    %2611 = vmatprep.subr.mxu0 0.0
    %2612 = vmatpush1.msra.mxu0 0.0
    %2613 = vmatprep.subr.mxu0 0.0
    %2614 = vmatpush1.msra.mxu0 0.0
    %2615 = vmatprep.subr.mxu0 0.0
    %2616 = vmatpush1.msra.mxu0 0.0
    %2617 = vmatprep.subr.mxu0 0.0
    %2618 = vmatpush1.msra.mxu0 0.0
    %2619 = vmatprep.subr.mxu0 0.0
    %2620 = vmatpush1.msra.mxu0 0.0
    %2621 = vmatprep.subr.mxu0 0.0
    %2622 = vmatpush1.msra.mxu0 0.0
    %2623 = vmatprep.subr.mxu0 0.0
    %2624 = vmatpush1.msra.mxu0 0.0
    %2625 = vmatprep.subr.mxu0 0.0
    %2626 = vmatpush1.msra.mxu0 0.0
    %2627 = vmatprep.subr.mxu0 0.0
    %2628 = vmatpush1.msra.mxu0 0.0
    %2629 = vmatprep.subr.mxu0 0.0
    %2630 = vmatpush1.msra.mxu0 0.0
    %2631 = vmatprep.subr.mxu0 0.0
    %2632 = vmatpush1.msra.mxu0 0.0
    %2633 = vmatprep.subr.mxu0 0.0
    %2634 = vmatpush1.msra.mxu0 0.0
    %2635 = vmatprep.subr.mxu0 0.0
    %2636 = vmatpush1.msra.mxu0 0.0
    %2637 = vmatprep.subr.mxu0 0.0
    %2638 = vmatpush1.msra.mxu0 0.0
    %2639 = vmatprep.subr.mxu0 0.0
    %2640 = vmatpush1.msra.mxu0 0.0
    %2641 = vmatprep.subr.mxu0 0.0
    %2642 = vmatpush1.msra.mxu0 0.0
    %2643 = vmatprep.mubr.f32.mxu0 0.0
    %2644 = vmatmul.mubr.f32.gmra.mrb[0].mxu0 %v2577
    %v2645 = vpop.f32.mrb[0].mxu0
    %v2646 = vadd.f32 0.0, %v2645
    %v2647 = vpop.f32.mrb[0].mxu0
    %2648 = vdwg.mxu0
    %v2649 = vadd.f32 %v2151, %v2646
    %v2650 = vxor.u32 %v2649, 2147483648
    %v2651 = vmul.f32 %v2650, 1.442695
    %v2652 = vpow.pop %v2651
    %v2653 = vadd.f32 %v2652, 1.0
    %v2654 = vrcp.pop %v2653
    %v2655 = vmul.f32 1.0, %v2654
    %v2656 = vmul.f32 %v2655, 2.0
    %v2657 = vsub.f32 %v2656, 1.0
    %v2659 = vrot.slane %v2566, 6
    %v2661 = vmul.f32 %v2655, %v2659
    %2663 = vrot.lane.b32.xlu0 %v2657, 64
    %v2664 = vpop.permute.xlu0 %2663
    %v2666 = vmul.f32 %v2655, %v2664
    %2668 = vrot.lane.b32.xlu0 %v2666, 32
    %v2669 = vpop.permute.xlu0 %2668
    %v2671 = vadd.f32 %v2661, %v2669
    %v2672 = vtanh.pop %v2671
    %2674 = vrot.lane.b32.xlu0 %v2672, 64
    %v2675 = vpop.permute.xlu0 %2674
    %v2677 = vmul.f32 %v2655, %v2675
    %2679 = vrot.lane.b32.xlu0 %v2677, 32
    %v2680 = vpop.permute.xlu0 %2679
    %v2681 = vsel %vm198, %v2680, 0
    %2683 = vmatprep.subr.mxu0 0.0
    %2684 = vmatpush1.msra.mxu0 %v2060
    %2685 = vmatprep.subr.mxu0 0.0
    %2686 = vmatpush1.msra.mxu0 %v2061
    %2687 = vmatprep.subr.mxu0 0.0
    %2688 = vmatpush1.msra.mxu0 %v2062
    %2689 = vmatprep.subr.mxu0 0.0
    %2690 = vmatpush1.msra.mxu0 %v2063
    %2691 = vmatprep.subr.mxu0 0.0
    %2692 = vmatpush1.msra.mxu0 0.0
    %2693 = vmatprep.subr.mxu0 0.0
    %2694 = vmatpush1.msra.mxu0 0.0
    %2695 = vmatprep.subr.mxu0 0.0
    %2696 = vmatpush1.msra.mxu0 0.0
    %2697 = vmatprep.subr.mxu0 0.0
    %2698 = vmatpush1.msra.mxu0 0.0
    %2699 = vmatprep.subr.mxu0 0.0
    %2700 = vmatpush1.msra.mxu0 0.0
    %2701 = vmatprep.subr.mxu0 0.0
    %2702 = vmatpush1.msra.mxu0 0.0
    %2703 = vmatprep.subr.mxu0 0.0
    %2704 = vmatpush1.msra.mxu0 0.0
    %2705 = vmatprep.subr.mxu0 0.0
    %2706 = vmatpush1.msra.mxu0 0.0
    %2707 = vmatprep.subr.mxu0 0.0
    %2708 = vmatpush1.msra.mxu0 0.0
    %2709 = vmatprep.subr.mxu0 0.0
    %2710 = vmatpush1.msra.mxu0 0.0
    %2711 = vmatprep.subr.mxu0 0.0
    %2712 = vmatpush1.msra.mxu0 0.0
    %2713 = vmatprep.subr.mxu0 0.0
    %2714 = vmatpush1.msra.mxu0 0.0
    %2715 = vmatprep.subr.mxu0 0.0
    %2716 = vmatpush1.msra.mxu0 0.0
    %2717 = vmatprep.subr.mxu0 0.0
    %2718 = vmatpush1.msra.mxu0 0.0
    %2719 = vmatprep.subr.mxu0 0.0
    %2720 = vmatpush1.msra.mxu0 0.0
    %2721 = vmatprep.subr.mxu0 0.0
    %2722 = vmatpush1.msra.mxu0 0.0
    %2723 = vmatprep.subr.mxu0 0.0
    %2724 = vmatpush1.msra.mxu0 0.0
    %2725 = vmatprep.subr.mxu0 0.0
    %2726 = vmatpush1.msra.mxu0 0.0
    %2727 = vmatprep.subr.mxu0 0.0
    %2728 = vmatpush1.msra.mxu0 0.0
    %2729 = vmatprep.subr.mxu0 0.0
    %2730 = vmatpush1.msra.mxu0 0.0
    %2731 = vmatprep.subr.mxu0 0.0
    %2732 = vmatpush1.msra.mxu0 0.0
    %2733 = vmatprep.subr.mxu0 0.0
    %2734 = vmatpush1.msra.mxu0 0.0
    %2735 = vmatprep.subr.mxu0 0.0
    %2736 = vmatpush1.msra.mxu0 0.0
    %2737 = vmatprep.subr.mxu0 0.0
    %2738 = vmatpush1.msra.mxu0 0.0
    %2739 = vmatprep.subr.mxu0 0.0
    %2740 = vmatpush1.msra.mxu0 0.0
    %2741 = vmatprep.subr.mxu0 0.0
    %2742 = vmatpush1.msra.mxu0 0.0
    %2743 = vmatprep.subr.mxu0 0.0
    %2744 = vmatpush1.msra.mxu0 0.0
    %2745 = vmatprep.subr.mxu0 0.0
    %2746 = vmatpush1.msra.mxu0 0.0
    %2747 = vmatprep.mubr.f32.mxu0 0.0
    %2748 = vmatmul.mubr.f32.gmra.mrb[0].mxu0 %v2681
    %v2749 = vpop.f32.mrb[0].mxu0
    %v2750 = vadd.f32 0.0, %v2749
    %v2751 = vpop.f32.mrb[0].mxu0
    %2752 = vdwg.mxu0
    %v2754 = vrot.slane %v2750, 6
    %v2756 = vadd.f32 %v2151, %v2754
    %v2757 = vxor.u32 %v2756, 2147483648
    %v2758 = vmul.f32 %v2757, 1.442695
    %v2759 = vpow.pop %v2758
    %v2760 = vadd.f32 %v2759, 1.0
    %v2761 = vrcp.pop %v2760
    %v2762 = vmul.f32 1.0, %v2761
    %v2763 = vmul.f32 %v2762, 2.0
    %v2764 = vsub.f32 %v2763, 1.0
    %v2766 = vrot.slane %v2671, 6
    %v2768 = vmul.f32 %v2762, %v2766
    %2770 = vrot.lane.b32.xlu0 %v2764, 64
    %v2771 = vpop.permute.xlu0 %2770
    %v2773 = vmul.f32 %v2762, %v2771
    %2775 = vrot.lane.b32.xlu0 %v2773, 32
    %v2776 = vpop.permute.xlu0 %2775
    %v2778 = vadd.f32 %v2768, %v2776
    %v2779 = vtanh.pop %v2778
    %2781 = vrot.lane.b32.xlu0 %v2779, 64
    %v2782 = vpop.permute.xlu0 %2781
    %v2784 = vmul.f32 %v2762, %v2782
    %v2786 = vrot.slane %v2784, 2
    %2787 = vrot.lane.b32.xlu0 %v2786, 32
    %v2788 = vpop.permute.xlu0 %2787
    %v2789 = vsel %vm198, %v2788, 0
    %2791 = vmatprep.subr.mxu0 0.0
    %2792 = vmatpush1.msra.mxu0 %v2060
    %2793 = vmatprep.subr.mxu0 0.0
    %2794 = vmatpush1.msra.mxu0 %v2061
    %2795 = vmatprep.subr.mxu0 0.0
    %2796 = vmatpush1.msra.mxu0 %v2062
    %2797 = vmatprep.subr.mxu0 0.0
    %2798 = vmatpush1.msra.mxu0 %v2063
    %2799 = vmatprep.subr.mxu0 0.0
    %2800 = vmatpush1.msra.mxu0 0.0
    %2801 = vmatprep.subr.mxu0 0.0
    %2802 = vmatpush1.msra.mxu0 0.0
    %2803 = vmatprep.subr.mxu0 0.0
    %2804 = vmatpush1.msra.mxu0 0.0
    %2805 = vmatprep.subr.mxu0 0.0
    %2806 = vmatpush1.msra.mxu0 0.0
    %2807 = vmatprep.subr.mxu0 0.0
    %2808 = vmatpush1.msra.mxu0 0.0
    %2809 = vmatprep.subr.mxu0 0.0
    %2810 = vmatpush1.msra.mxu0 0.0
    %2811 = vmatprep.subr.mxu0 0.0
    %2812 = vmatpush1.msra.mxu0 0.0
    %2813 = vmatprep.subr.mxu0 0.0
    %2814 = vmatpush1.msra.mxu0 0.0
    %2815 = vmatprep.subr.mxu0 0.0
    %2816 = vmatpush1.msra.mxu0 0.0
    %2817 = vmatprep.subr.mxu0 0.0
    %2818 = vmatpush1.msra.mxu0 0.0
    %2819 = vmatprep.subr.mxu0 0.0
    %2820 = vmatpush1.msra.mxu0 0.0
    %2821 = vmatprep.subr.mxu0 0.0
    %2822 = vmatpush1.msra.mxu0 0.0
    %2823 = vmatprep.subr.mxu0 0.0
    %2824 = vmatpush1.msra.mxu0 0.0
    %2825 = vmatprep.subr.mxu0 0.0
    %2826 = vmatpush1.msra.mxu0 0.0
    %2827 = vmatprep.subr.mxu0 0.0
    %2828 = vmatpush1.msra.mxu0 0.0
    %2829 = vmatprep.subr.mxu0 0.0
    %2830 = vmatpush1.msra.mxu0 0.0
    %2831 = vmatprep.subr.mxu0 0.0
    %2832 = vmatpush1.msra.mxu0 0.0
    %2833 = vmatprep.subr.mxu0 0.0
    %2834 = vmatpush1.msra.mxu0 0.0
    %2835 = vmatprep.subr.mxu0 0.0
    %2836 = vmatpush1.msra.mxu0 0.0
    %2837 = vmatprep.subr.mxu0 0.0
    %2838 = vmatpush1.msra.mxu0 0.0
    %2839 = vmatprep.subr.mxu0 0.0
    %2840 = vmatpush1.msra.mxu0 0.0
    %2841 = vmatprep.subr.mxu0 0.0
    %2842 = vmatpush1.msra.mxu0 0.0
    %2843 = vmatprep.subr.mxu0 0.0
    %2844 = vmatpush1.msra.mxu0 0.0
    %2845 = vmatprep.subr.mxu0 0.0
    %2846 = vmatpush1.msra.mxu0 0.0
    %2847 = vmatprep.subr.mxu0 0.0
    %2848 = vmatpush1.msra.mxu0 0.0
    %2849 = vmatprep.subr.mxu0 0.0
    %2850 = vmatpush1.msra.mxu0 0.0
    %2851 = vmatprep.subr.mxu0 0.0
    %2852 = vmatpush1.msra.mxu0 0.0
    %2853 = vmatprep.subr.mxu0 0.0
    %2854 = vmatpush1.msra.mxu0 0.0
    %2855 = vmatprep.mubr.f32.mxu0 0.0
    %2856 = vmatmul.mubr.f32.gmra.mrb[0].mxu0 %v2789
    %v2857 = vpop.f32.mrb[0].mxu0
    %v2858 = vadd.f32 0.0, %v2857
    %v2859 = vpop.f32.mrb[0].mxu0
    %2860 = vdwg.mxu0
    %v2862 = vrot.slane %v2858, 4
    %v2864 = vadd.f32 %v2151, %v2862
    %v2865 = vxor.u32 %v2864, 2147483648
    %v2866 = vmul.f32 %v2865, 1.442695
    %v2867 = vpow.pop %v2866
    %v2868 = vadd.f32 %v2867, 1.0
    %v2869 = vrcp.pop %v2868
    %v2870 = vmul.f32 1.0, %v2869
    %v2871 = vmul.f32 %v2870, 2.0
    %v2872 = vsub.f32 %v2871, 1.0
    %v2874 = vrot.slane %v2778, 6
    %v2876 = vmul.f32 %v2870, %v2874
    %2878 = vrot.lane.b32.xlu0 %v2872, 64
    %v2879 = vpop.permute.xlu0 %2878
    %v2881 = vmul.f32 %v2870, %v2879
    %2883 = vrot.lane.b32.xlu0 %v2881, 32
    %v2884 = vpop.permute.xlu0 %2883
    %v2886 = vadd.f32 %v2876, %v2884
    %v2887 = vtanh.pop %v2886
    %2889 = vrot.lane.b32.xlu0 %v2887, 64
    %v2890 = vpop.permute.xlu0 %2889
    %v2892 = vmul.f32 %v2870, %v2890
    %v2894 = vrot.slane %v2892, 4
    %2895 = vrot.lane.b32.xlu0 %v2894, 32
    %v2896 = vpop.permute.xlu0 %2895
    %v2897 = vsel %vm198, %v2896, 0
    %2899 = vmatprep.subr.mxu0 0.0
    %2900 = vmatpush1.msra.mxu0 %v2060
    %2901 = vmatprep.subr.mxu0 0.0
    %2902 = vmatpush1.msra.mxu0 %v2061
    %2903 = vmatprep.subr.mxu0 0.0
    %2904 = vmatpush1.msra.mxu0 %v2062
    %2905 = vmatprep.subr.mxu0 0.0
    %2906 = vmatpush1.msra.mxu0 %v2063
    %2907 = vmatprep.subr.mxu0 0.0
    %2908 = vmatpush1.msra.mxu0 0.0
    %2909 = vmatprep.subr.mxu0 0.0
    %2910 = vmatpush1.msra.mxu0 0.0
    %2911 = vmatprep.subr.mxu0 0.0
    %2912 = vmatpush1.msra.mxu0 0.0
    %2913 = vmatprep.subr.mxu0 0.0
    %2914 = vmatpush1.msra.mxu0 0.0
    %2915 = vmatprep.subr.mxu0 0.0
    %2916 = vmatpush1.msra.mxu0 0.0
    %2917 = vmatprep.subr.mxu0 0.0
    %2918 = vmatpush1.msra.mxu0 0.0
    %2919 = vmatprep.subr.mxu0 0.0
    %2920 = vmatpush1.msra.mxu0 0.0
    %2921 = vmatprep.subr.mxu0 0.0
    %2922 = vmatpush1.msra.mxu0 0.0
    %2923 = vmatprep.subr.mxu0 0.0
    %2924 = vmatpush1.msra.mxu0 0.0
    %2925 = vmatprep.subr.mxu0 0.0
    %2926 = vmatpush1.msra.mxu0 0.0
    %2927 = vmatprep.subr.mxu0 0.0
    %2928 = vmatpush1.msra.mxu0 0.0
    %2929 = vmatprep.subr.mxu0 0.0
    %2930 = vmatpush1.msra.mxu0 0.0
    %2931 = vmatprep.subr.mxu0 0.0
    %2932 = vmatpush1.msra.mxu0 0.0
    %2933 = vmatprep.subr.mxu0 0.0
    %2934 = vmatpush1.msra.mxu0 0.0
    %2935 = vmatprep.subr.mxu0 0.0
    %2936 = vmatpush1.msra.mxu0 0.0
    %2937 = vmatprep.subr.mxu0 0.0
    %2938 = vmatpush1.msra.mxu0 0.0
    %2939 = vmatprep.subr.mxu0 0.0
    %2940 = vmatpush1.msra.mxu0 0.0
    %2941 = vmatprep.subr.mxu0 0.0
    %2942 = vmatpush1.msra.mxu0 0.0
    %2943 = vmatprep.subr.mxu0 0.0
    %2944 = vmatpush1.msra.mxu0 0.0
    %2945 = vmatprep.subr.mxu0 0.0
    %2946 = vmatpush1.msra.mxu0 0.0
    %2947 = vmatprep.subr.mxu0 0.0
    %2948 = vmatpush1.msra.mxu0 0.0
    %2949 = vmatprep.subr.mxu0 0.0
    %2950 = vmatpush1.msra.mxu0 0.0
    %2951 = vmatprep.subr.mxu0 0.0
    %2952 = vmatpush1.msra.mxu0 0.0
    %2953 = vmatprep.subr.mxu0 0.0
    %2954 = vmatpush1.msra.mxu0 0.0
    %2955 = vmatprep.subr.mxu0 0.0
    %2956 = vmatpush1.msra.mxu0 0.0
    %2957 = vmatprep.subr.mxu0 0.0
    %2958 = vmatpush1.msra.mxu0 0.0
    %2959 = vmatprep.subr.mxu0 0.0
    %2960 = vmatpush1.msra.mxu0 0.0
    %2961 = vmatprep.subr.mxu0 0.0
    %2962 = vmatpush1.msra.mxu0 0.0
    %2963 = vmatprep.mubr.f32.mxu0 0.0
    %2964 = vmatmul.mubr.f32.gmra.mrb[0].mxu0 %v2897
    %v2965 = vpop.f32.mrb[0].mxu0
    %v2966 = vadd.f32 0.0, %v2965
    %v2967 = vpop.f32.mrb[0].mxu0
    %2968 = vdwg.mxu0
    %v2970 = vrot.slane %v2966, 2
    %v2972 = vadd.f32 %v2151, %v2970
    %v2973 = vxor.u32 %v2972, 2147483648
    %v2974 = vmul.f32 %v2973, 1.442695
    %v2975 = vpow.pop %v2974
    %v2976 = vadd.f32 %v2975, 1.0
    %v2977 = vrcp.pop %v2976
    %v2978 = vmul.f32 1.0, %v2977
    %v2979 = vmul.f32 %v2978, 2.0
    %v2980 = vsub.f32 %v2979, 1.0
    %v2982 = vrot.slane %v2886, 6
    %v2984 = vmul.f32 %v2978, %v2982
    %2986 = vrot.lane.b32.xlu0 %v2980, 64
    %v2987 = vpop.permute.xlu0 %2986
    %v2989 = vmul.f32 %v2978, %v2987
    %2991 = vrot.lane.b32.xlu0 %v2989, 32
    %v2992 = vpop.permute.xlu0 %2991
    %v2994 = vadd.f32 %v2984, %v2992
    %v2995 = vtanh.pop %v2994
    %2997 = vrot.lane.b32.xlu0 %v2995, 64
    %v2998 = vpop.permute.xlu0 %2997
    %v3000 = vmul.f32 %v2978, %v2998
    %v3001 = vld [vmem:[%s10] sm:$0x1]
    %v3003 = vlaneseq
    %v3004 = vshrl.u32 %v3003, 7
    %v3005 = vsub.s32 0, %v3004
    %v3006 = vrot.slane %v3001, %v3005
    %3007 = vrot.lane.b32.xlu0 %v3006, 96
    %v3008 = vpop.permute.xlu0 %3007
    %v3010 = vmul.f32 %v3000, %v3008
    %3012 = vrot.lane.b32.xlu0 %v3010, 32
    %v3013 = vpop.permute.xlu0 %3012
    %v3015 = vsel %vm638, %v3013, 0.0
    %3016 = vadd.xlane.f32.xlu0 %v3015
    %v3017 = vpop.xlane.xlu0 %3016
    %v3018 = vld [vmem:[#allocation3] sm:$0x1]
    %v3020 = vlaneseq
    %v3021 = vshrl.u32 %v3020, 7
    %v3022 = vsub.s32 0, %v3021
    %v3023 = vrot.slane %v3018, %v3022
    %v3025 = vadd.f32 %v3017, %v3023
    %vm3026 = vcmask 7174
    %3027 = vst.msk [vmem:[%s12 - $0x6] sm:$0xc0] %vm3026, %v3025
    // Predicated region
    $region66: #{tpu_custom_call.1} parent=1 // pred_check
      _
    $region67: #{tpu_custom_call.1} parent=1 // pred_check_branch
      %3029 = sbr.rel (0) target = $region69
    $region68: #{tpu_custom_call.1} parent=1 // pred_region
      _
    $region69: #{tpu_custom_call.1} parent=1 // pred_fallthru
      _
    // Predicated region
    $region70: #{tpu_custom_call.1} parent=1 // pred_check
      _
    $region71: #{tpu_custom_call.1} parent=1 // pred_check_branch
      %3031 = sbr.rel (0) target = $region73
    $region72: #{tpu_custom_call.1} parent=1 // pred_region
      _
    $region73: #{tpu_custom_call.1} parent=1 // pred_fallthru
      _
    %3032 = vsyncpa [#allocation5], 1
    %3033 = vsyncpa [#allocation7], 1
    %3034 = vsyncpa [#allocation10], 1

</llo_original>
